<compile_context>
chip_gen: v7x
topology: tpu7x:2x2x1
jax: 0.10.0
libtpu: 0.0.40
codegen_flags: <defaults>
</compile_context>

<pallas_src>
import jax
import jax.numpy as jnp
import numpy as np
from jax.experimental import pallas as pl
from jax.experimental.pallas import tpu as pltpu

EPS = 1e-8       # WS fusion eps
BN_EPS = 1e-5    # nn.BatchNorm2d default eps


# ------------------------------- kernel ----------------------------------- #

def _ws_kernel(fw_ref,                              # (3,) f32 normalized fuse weights (SMEM)
               xb_ref, rb_ref, ab_ref,              # band blocks      (th*Wp8, C) bf16
               xt_ref, rt_ref, at_ref,              # top-halo rows    (Wp8, C)    bf16
               xd_ref, rd_ref, ad_ref,              # bottom-halo rows (Wp8, C)    bf16
               w1t_ref,                             # 1x1 conv weight^T, fw0 folded (C, C) bf16
               w3w_ref,                             # wide-N 3x3 conv weight (3C, 3D) bf16
               bias_ref,                             # folded BN bias (1, D) f32
               o_ref,                               # output block (th*Wp8, D) bf16
               s_ref,                               # VMEM ((th+2)*Wp8 + 8, C) bf16 : padded fused
               t_ref,                               # VMEM ((th+2)*Wp8, 3C) bf16 : dx-staged LHS
               r_ref):                              # VMEM ((th+2)*Wp8, 3D) f32 : wide-N result
    mb, C = xb_ref.shape                            # mb = th * Wp8 (flattened band rows)
    Wp8 = xt_ref.shape[0]                           # padded image-row pitch
    th = mb // Wp8                                  # image rows per band
    D = o_ref.shape[-1]
    rows = (th + 2) * Wp8                           # band rows incl. top/bottom halo rows
    i = pl.program_id(1)
    nb = pl.num_programs(1)

    f1 = fw_ref[1]
    f2 = fw_ref[2]

    def fuse(r_rows, x_rows, a_rows):
        # fw0*Conv1x1(res) + fw1*x + fw2*ade  (fw0 folded into w1t; bf16 MXU, f32 acc)
        pre = jnp.dot(r_rows, w1t_ref[...], preferred_element_type=jnp.float32)
        return (pre + f1 * x_rows.astype(jnp.float32)
                + f2 * a_rows.astype(jnp.float32)).astype(jnp.bfloat16)

    # ---- stage 1: weighted fusion, written into the row-padded VMEM scratch ----
    s_ref[pl.ds(Wp8, mb), :] = fuse(rb_ref[...], xb_ref[...], ab_ref[...])

    @pl.when(i > 0)                                 # real row above the band
    def _():
        s_ref[pl.ds(0, Wp8), :] = fuse(rt_ref[...], xt_ref[...], at_ref[...])

    @pl.when(i == 0)                                # zero conv padding above image row 0
    def _():
        s_ref[pl.ds(0, Wp8), :] = jnp.zeros((Wp8, C), jnp.bfloat16)

    @pl.when(i < nb - 1)                            # real row below the band
    def _():
        s_ref[pl.ds((th + 1) * Wp8, Wp8), :] = fuse(rd_ref[...], xd_ref[...], ad_ref[...])

    @pl.when(i == nb - 1)                           # zero conv padding below the last row
    def _():
        s_ref[pl.ds((th + 1) * Wp8, Wp8), :] = jnp.zeros((Wp8, C), jnp.bfloat16)

    # tiny zero tail so the dx-shifted staging reads never see stale VMEM (1 vst)
    s_ref[pl.ds(rows, 8), :] = jnp.zeros((8, C), jnp.bfloat16)

    # ---- stage 2: 3x3 conv as ONE wide-N MXU matmul (K = 3C, N = 3D) ----
    # dx staging: 3 aligned-destination copies; T[r, dx*C:(dx+1)*C] = s[r + dx]
    for dx in range(3):
        t_ref[:, pl.ds(dx * C, C)] = s_ref[pl.ds(dx, rows), :]

    r_ref[...] = jnp.dot(t_ref[...], w3w_ref[...], preferred_element_type=jnp.float32)

    # dy accumulation: out[p] = R[p, :D] + R[p+Wp8, D:2D] + R[p+2*Wp8, 2D:3D]
    # (row shifts are multiples of Wp8 -> sublane-aligned; lane offsets multiples of 128)
    o_ref[...] = jnp.clip(
        r_ref[pl.ds(0, mb), pl.ds(0, D)]
        + r_ref[pl.ds(Wp8, mb), pl.ds(D, D)]
        + r_ref[pl.ds(2 * Wp8, mb), pl.ds(2 * D, D)]
        + bias_ref[...],
        0.0, 6.0).astype(o_ref.dtype)


# ------------------------------- wrapper ----------------------------------- #

def ws_forward(x_nchw, res_nchw, ade_nchw, params):
    N, C, H, W = x_nchw.shape
    D = params["w3"].shape[-1]
    assert C % 128 == 0 and D % 128 == 0, "kernel assumes lane-width channel counts"

    # padded width: 1 zero col (conv pad) on the left, zeros up to a multiple of 8
    Wp8 = ((W + 2 + 7) // 8) * 8

    # rows per band sized from an explicit per-step VMEM footprint budget.
    # per fused row: inputs 3*2*2C + s_ref 2C + t_ref 6C (bf16) + r_ref 12D (f32) + out 4D (bf16)
    bytes_per_row = C * (12 + 2 + 6) + D * (12 + 4)
    vmem_budget = 12 * 1024 * 1024                 # safe on v5e/v6e (128 MiB) and v7x (64 MiB)
    max_mb = max(Wp8, vmem_budget // bytes_per_row)
    th = max(1, min(H, max_mb // Wp8))
    nb = -(-H // th)                               # ceil-div; no divisibility restriction on H
    if N * nb < 2 and H >= 2:                      # >= 2 grid steps so both v7x TCs get work
        th = -(-H // 2)
        nb = -(-H // th)
    Hpad = nb * th
    mb = th * Wp8
    rows = (th + 2) * Wp8

    def prep(a):  # NCHW f32 -> zero-padded NHWC bf16, flattened to (N, Hpad*Wp8, C)
        a = jnp.transpose(a, (0, 2, 3, 1)).astype(jnp.bfloat16)
        a = jnp.pad(a, ((0, 0), (0, Hpad - H), (1, Wp8 - 1 - W), (0, 0)))
        return a.reshape(N, Hpad * Wp8, C)

    xh, rh, ah = prep(x_nchw), prep(res_nchw), prep(ade_nchw)

    # normalized fuse weights -> SMEM scalar prefetch (only fw[1], fw[2] read in-kernel)
    w = jnp.maximum(params["weights"].astype(jnp.float32), 0.0)
    fw = w / (jnp.sum(w) + EPS)

    # fw[0] folded into the 1x1 weight; BN scale folded into the 3x3 weight, bias separate
    w1t = (fw[0] * params["w1t"].astype(jnp.float32)).astype(jnp.bfloat16)
    scale = params["bn_gamma"] * jax.lax.rsqrt(params["bn_var"] + BN_EPS)
    bias = (params["bn_beta"] - params["bn_mean"] * scale).reshape(1, D).astype(jnp.float32)
    w3s = (params["w3"] * scale[None, None, None, :]).astype(jnp.bfloat16)   # (3,3,C,D)
    # wide-N RHS: W_wide[dx*C + cin, dy*D + cout] = w3s[dy, dx, cin, cout]
    w3w = jnp.transpose(w3s, (1, 2, 0, 3)).reshape(3 * C, 3 * D)

    band = lambda n, i, fw_: (n, i, 0)
    top = lambda n, i, fw_: (n, jnp.maximum(i * th - 1, 0), 0)          # row above the band
    bot = lambda n, i, fw_: (n, jnp.minimum((i + 1) * th, Hpad - 1), 0)  # row below the band
    whole = lambda n, i, fw_: (0, 0)

    band_spec = pl.BlockSpec((None, mb, C), band)
    top_spec = pl.BlockSpec((None, Wp8, C), top)
    bot_spec = pl.BlockSpec((None, Wp8, C), bot)

    out = pl.pallas_call(
        _ws_kernel,
        out_shape=jax.ShapeDtypeStruct((N, Hpad * Wp8, D), jnp.bfloat16),
        grid_spec=pltpu.PrefetchScalarGridSpec(
            num_scalar_prefetch=1,                    # fw (3,) -> SMEM
            grid=(N, nb),
            in_specs=[
                band_spec, band_spec, band_spec,      # x, res, ade bands
                top_spec, top_spec, top_spec,         # x, res, ade top halo rows
                bot_spec, bot_spec, bot_spec,         # x, res, ade bottom halo rows
                pl.BlockSpec((C, C), whole),          # 1x1 conv weight^T (fw0 folded)
                pl.BlockSpec((3 * C, 3 * D), whole),  # wide-N 3x3 conv weight (BN folded)
                pl.BlockSpec((1, D), whole),          # folded BN bias
            ],
            out_specs=pl.BlockSpec((None, mb, D), band),
            scratch_shapes=[
                pltpu.VMEM((rows + 8, C), jnp.bfloat16),   # padded fused tensor
                pltpu.VMEM((rows, 3 * C), jnp.bfloat16),   # dx-staged LHS (K = 3C)
                pltpu.VMEM((rows, 3 * D), jnp.float32),    # wide-N matmul result
            ],
        ),
        compiler_params=pltpu.CompilerParams(
            dimension_semantics=("parallel", "parallel"),
            vmem_limit_bytes=32 * 1024 * 1024,
        ),
    )(fw, xh, rh, ah, xh, rh, ah, xh, rh, ah, w1t, w3w, bias)

    out = out.reshape(N, Hpad, Wp8, D)[:, :H, :W, :]  # drop pitch/pad garbage columns & rows
    return jnp.transpose(out, (0, 3, 1, 2))           # NHWC -> NCHW (bf16)


# ------------------------- params & reference ------------------------------ #

def init_params(key, C=128, D=128):
    k1, k2, k3, k4, k5, k6 = jax.random.split(key, 6)
    return dict(
        weights=jnp.ones((3,), jnp.float32),                        # nn.Parameter(torch.ones(3))
        w1t=jax.random.normal(k1, (C, C), jnp.float32) * 0.05,      # 1x1 pre_conv weight^T (Cin,Cout)
        w3=jax.random.normal(k2, (3, 3, C, D), jnp.float32) * 0.05, # 3x3 post_conv weight (HWIO)
        bn_gamma=1.0 + 0.1 * jax.random.normal(k3, (D,), jnp.float32),
        bn_beta=0.1 * jax.random.normal(k4, (D,), jnp.float32),
        bn_mean=0.1 * jax.random.normal(k5, (D,), jnp.float32),
        bn_var=0.5 + jax.random.uniform(k6, (D,), jnp.float32),
    )


def ws_ref(x, res, ade, p):
    """Pure-JAX NCHW reference mirroring the kernel's bf16-operand / f32-accumulate math."""
    N, C, H, W = x.shape
    D = p["w3"].shape[-1]
    w = jnp.maximum(p["weights"].astype(jnp.float32), 0.0)
    fw = w / (jnp.sum(w) + EPS)

    to_hwc = lambda a: jnp.transpose(a, (0, 2, 3, 1)).astype(jnp.bfloat16)
    xh, rh, ah = to_hwc(x), to_hwc(res), to_hwc(ade)
    w1t = (fw[0] * p["w1t"].astype(jnp.float32)).astype(jnp.bfloat16)
    pre = jnp.einsum("nhwc,cd->nhwd", rh, w1t, preferred_element_type=jnp.float32)
    fused = (pre + fw[1] * xh.astype(jnp.float32)
             + fw[2] * ah.astype(jnp.float32)).astype(jnp.bfloat16)

    scale = p["bn_gamma"] * jax.lax.rsqrt(p["bn_var"] + BN_EPS)
    bias = p["bn_beta"] - p["bn_mean"] * scale
    w3s = (p["w3"] * scale[None, None, None, :]).astype(jnp.bfloat16)

    fp = jnp.pad(fused, ((0, 0), (1, 1), (1, 1), (0, 0)))
    out = jnp.zeros((N, H, W, D), jnp.float32)
    for dy in range(3):
        for dx in range(3):
            out = out + jnp.einsum("nhwc,cd->nhwd",
                                   fp[:, dy:dy + H, dx:dx + W, :], w3s[dy, dx],
                                   preferred_element_type=jnp.float32)
    out = jnp.clip(out + bias[None, None, None, :], 0.0, 6.0)
    return jnp.transpose(out, (0, 3, 1, 2))


# --------------------------------- main ------------------------------------ #

if __name__ == "__main__":
    key = jax.random.PRNGKey(0)
    kx, kr, ka, kp = jax.random.split(key, 4)
    N, C, H, W = 2, 128, 16, 16          # in_channels = decode_channels = 128 (module default)
    x = jax.random.normal(kx, (N, C, H, W), jnp.float32)
    res = jax.random.normal(kr, (N, C, H, W), jnp.float32)
    ade = jax.random.normal(ka, (N, C, H, W), jnp.float32)
    params = init_params(kp, C, C)

    out = jax.jit(ws_forward)(x, res, ade, params)
    out = jax.block_until_ready(out)
    assert out.shape == (N, C, H, W)

    ref = ws_ref(x, res, ade, params)
    # kernel output is bf16 (f32 accumulation internally) -> bf16-rounding tolerance
    np.testing.assert_allclose(np.asarray(out, dtype=np.float32), np.asarray(ref),
                               rtol=2e-2, atol=2e-2)
    print("KERNEL_OK")
</pallas_src>

<mosaic_0001>
module attributes {stable_mosaic.version = 11 : i64} {
  func.func @_ws_kernel(%arg0: i32, %arg1: i32, %arg2: memref<3xf32, #tpu.memory_space<smem>>, %arg3: memref<1x384x128xbf16, #tpu.memory_space<vmem>>, %arg4: memref<1x384x128xbf16, #tpu.memory_space<vmem>>, %arg5: memref<1x384x128xbf16, #tpu.memory_space<vmem>>, %arg6: memref<1x24x128xbf16, #tpu.memory_space<vmem>>, %arg7: memref<1x24x128xbf16, #tpu.memory_space<vmem>>, %arg8: memref<1x24x128xbf16, #tpu.memory_space<vmem>>, %arg9: memref<1x24x128xbf16, #tpu.memory_space<vmem>>, %arg10: memref<1x24x128xbf16, #tpu.memory_space<vmem>>, %arg11: memref<1x24x128xbf16, #tpu.memory_space<vmem>>, %arg12: memref<128x128xbf16, #tpu.memory_space<vmem>>, %arg13: memref<384x384xbf16, #tpu.memory_space<vmem>>, %arg14: memref<1x128xf32, #tpu.memory_space<vmem>>, %arg15: memref<1x384x128xbf16, #tpu.memory_space<vmem>>, %arg16: memref<440x128xbf16, #tpu.memory_space<vmem>>, %arg17: memref<432x384xbf16, #tpu.memory_space<vmem>>, %arg18: memref<432x384xf32, #tpu.memory_space<vmem>>) attributes {dimension_semantics = [#tpu.dimension_semantics<parallel>, #tpu.dimension_semantics<parallel>], iteration_bounds = array<i64: 2, 1>, scalar_prefetch = 1 : i64, scratch_operands = 3 : i64, tpu.core_type = #tpu.core_type<tc>, window_params = [{transform_indices = @transform_0, window_bounds = array<i64: 1, 384, 128>}, {transform_indices = @transform_1, window_bounds = array<i64: 1, 384, 128>}, {transform_indices = @transform_2, window_bounds = array<i64: 1, 384, 128>}, {transform_indices = @transform_3, window_bounds = array<i64: 1, 24, 128>}, {transform_indices = @transform_4, window_bounds = array<i64: 1, 24, 128>}, {transform_indices = @transform_5, window_bounds = array<i64: 1, 24, 128>}, {transform_indices = @transform_6, window_bounds = array<i64: 1, 24, 128>}, {transform_indices = @transform_7, window_bounds = array<i64: 1, 24, 128>}, {transform_indices = @transform_8, window_bounds = array<i64: 1, 24, 128>}, {pipeline_mode = #tpu.pipeline_mode<synchronous>, transform_indices = @transform_9, window_bounds = array<i64: 128, 128>}, {pipeline_mode = #tpu.pipeline_mode<synchronous>, transform_indices = @transform_10, window_bounds = array<i64: 384, 384>}, {pipeline_mode = #tpu.pipeline_mode<synchronous>, transform_indices = @transform_11, window_bounds = array<i64: 1, 128>}, {transform_indices = @transform_12, window_bounds = array<i64: 1, 384, 128>}]} {
    %c1 = arith.constant 1 : index
    %0 = memref.load %arg2[%c1] : memref<3xf32, #tpu.memory_space<smem>>
    %c2 = arith.constant 2 : index
    %1 = memref.load %arg2[%c2] : memref<3xf32, #tpu.memory_space<smem>>
    %c0 = arith.constant 0 : index
    %c0_0 = arith.constant 0 : index
    %c0_1 = arith.constant 0 : index
    %2 = vector.load %arg4[%c0, %c0_0, %c0_1] : memref<1x384x128xbf16, #tpu.memory_space<vmem>>, vector<1x384x128xbf16>
    %3 = vector.shape_cast %2 : vector<1x384x128xbf16> to vector<384x128xbf16>
    %c0_2 = arith.constant 0 : index
    %c0_3 = arith.constant 0 : index
    %c0_4 = arith.constant 0 : index
    %4 = vector.load %arg3[%c0_2, %c0_3, %c0_4] : memref<1x384x128xbf16, #tpu.memory_space<vmem>>, vector<1x384x128xbf16>
    %5 = vector.shape_cast %4 : vector<1x384x128xbf16> to vector<384x128xbf16>
    %c0_5 = arith.constant 0 : index
    %c0_6 = arith.constant 0 : index
    %c0_7 = arith.constant 0 : index
    %6 = vector.load %arg5[%c0_5, %c0_6, %c0_7] : memref<1x384x128xbf16, #tpu.memory_space<vmem>>, vector<1x384x128xbf16>
    %7 = vector.shape_cast %6 : vector<1x384x128xbf16> to vector<384x128xbf16>
    %c0_8 = arith.constant 0 : index
    %c0_9 = arith.constant 0 : index
    %8 = vector.load %arg12[%c0_8, %c0_9] : memref<128x128xbf16, #tpu.memory_space<vmem>>, vector<128x128xbf16>
    %cst = arith.constant dense<0.000000e+00> : vector<384x128xf32>
    %9 = tpu.matmul %3, %8, %cst {dimension_numbers = #tpu.dot_dimension_numbers<[1], [0], [0], [1], [0, 0, 1, 1], [], []>} : vector<384x128xbf16>, vector<128x128xbf16>, vector<384x128xf32> -> vector<384x128xf32>
    %10 = arith.extf %5 : vector<384x128xbf16> to vector<384x128xf32>
    %11 = vector.broadcast %0 : f32 to vector<384x128xf32>
    %12 = arith.mulf %11, %10 : vector<384x128xf32>
    %13 = arith.addf %9, %12 : vector<384x128xf32>
    %14 = arith.extf %7 : vector<384x128xbf16> to vector<384x128xf32>
    %15 = vector.broadcast %1 : f32 to vector<384x128xf32>
    %16 = arith.mulf %15, %14 : vector<384x128xf32>
    %17 = arith.addf %13, %16 : vector<384x128xf32>
    %18 = arith.truncf %17 : vector<384x128xf32> to vector<384x128xbf16>
    %c24 = arith.constant 24 : index
    %c0_10 = arith.constant 0 : index
    %19 = vector.load %arg16[%c24, %c0_10] : memref<440x128xbf16, #tpu.memory_space<vmem>>, vector<384x128xbf16>
    tpu.vector_store %arg16[%c24, %c0_10], %18 {strides = array<i32>} : memref<440x128xbf16, #tpu.memory_space<vmem>>, vector<384x128xbf16>,
    %c0_i32 = arith.constant 0 : i32
    %20 = arith.cmpi sgt, %arg1, %c0_i32 : i32
    %21 = arith.extui %20 : i1 to i32
    %c0_i32_11 = arith.constant 0 : i32
    %22 = arith.cmpi ne, %21, %c0_i32_11 : i32
    scf.if %22 {
      %c0_49 = arith.constant 0 : index
      %c0_50 = arith.constant 0 : index
      %c0_51 = arith.constant 0 : index
      %60 = vector.load %arg7[%c0_49, %c0_50, %c0_51] : memref<1x24x128xbf16, #tpu.memory_space<vmem>>, vector<1x24x128xbf16>
      %61 = vector.shape_cast %60 : vector<1x24x128xbf16> to vector<24x128xbf16>
      %c0_52 = arith.constant 0 : index
      %c0_53 = arith.constant 0 : index
      %c0_54 = arith.constant 0 : index
      %62 = vector.load %arg6[%c0_52, %c0_53, %c0_54] : memref<1x24x128xbf16, #tpu.memory_space<vmem>>, vector<1x24x128xbf16>
      %63 = vector.shape_cast %62 : vector<1x24x128xbf16> to vector<24x128xbf16>
      %c0_55 = arith.constant 0 : index
      %c0_56 = arith.constant 0 : index
      %c0_57 = arith.constant 0 : index
      %64 = vector.load %arg8[%c0_55, %c0_56, %c0_57] : memref<1x24x128xbf16, #tpu.memory_space<vmem>>, vector<1x24x128xbf16>
      %65 = vector.shape_cast %64 : vector<1x24x128xbf16> to vector<24x128xbf16>
      %c0_58 = arith.constant 0 : index
      %c0_59 = arith.constant 0 : index
      %66 = vector.load %arg12[%c0_58, %c0_59] : memref<128x128xbf16, #tpu.memory_space<vmem>>, vector<128x128xbf16>
      %cst_60 = arith.constant dense<0.000000e+00> : vector<24x128xf32>
      %67 = tpu.matmul %61, %66, %cst_60 {dimension_numbers = #tpu.dot_dimension_numbers<[1], [0], [0], [1], [0, 0, 1, 1], [], []>} : vector<24x128xbf16>, vector<128x128xbf16>, vector<24x128xf32> -> vector<24x128xf32>
      %68 = arith.extf %63 : vector<24x128xbf16> to vector<24x128xf32>
      %69 = vector.broadcast %0 : f32 to vector<24x128xf32>
      %70 = arith.mulf %69, %68 : vector<24x128xf32>
      %71 = arith.addf %67, %70 : vector<24x128xf32>
      %72 = arith.extf %65 : vector<24x128xbf16> to vector<24x128xf32>
      %73 = vector.broadcast %1 : f32 to vector<24x128xf32>
      %74 = arith.mulf %73, %72 : vector<24x128xf32>
      %75 = arith.addf %71, %74 : vector<24x128xf32>
      %76 = arith.truncf %75 : vector<24x128xf32> to vector<24x128xbf16>
      %c0_61 = arith.constant 0 : index
      %c0_62 = arith.constant 0 : index
      %77 = vector.load %arg16[%c0_61, %c0_62] : memref<440x128xbf16, #tpu.memory_space<vmem>>, vector<24x128xbf16>
      tpu.vector_store %arg16[%c0_61, %c0_62], %76 {strides = array<i32>} : memref<440x128xbf16, #tpu.memory_space<vmem>>, vector<24x128xbf16>,
    } else {
    }
    %c0_i32_12 = arith.constant 0 : i32
    %23 = arith.cmpi eq, %arg1, %c0_i32_12 : i32
    %24 = arith.extui %23 : i1 to i32
    %c0_i32_13 = arith.constant 0 : i32
    %25 = arith.cmpi ne, %24, %c0_i32_13 : i32
    scf.if %25 {
      %cst_49 = arith.constant 0.000000e+00 : bf16
      %60 = vector.broadcast %cst_49 : bf16 to vector<24x128xbf16>
      %c0_50 = arith.constant 0 : index
      %c0_51 = arith.constant 0 : index
      %61 = vector.load %arg16[%c0_50, %c0_51] : memref<440x128xbf16, #tpu.memory_space<vmem>>, vector<24x128xbf16>
      tpu.vector_store %arg16[%c0_50, %c0_51], %60 {strides = array<i32>} : memref<440x128xbf16, #tpu.memory_space<vmem>>, vector<24x128xbf16>,
    } else {
    }
    %c0_i32_14 = arith.constant 0 : i32
    %26 = arith.cmpi slt, %arg1, %c0_i32_14 : i32
    %27 = arith.extui %26 : i1 to i32
    %c0_i32_15 = arith.constant 0 : i32
    %28 = arith.cmpi ne, %27, %c0_i32_15 : i32
    scf.if %28 {
      %c0_49 = arith.constant 0 : index
      %c0_50 = arith.constant 0 : index
      %c0_51 = arith.constant 0 : index
      %60 = vector.load %arg10[%c0_49, %c0_50, %c0_51] : memref<1x24x128xbf16, #tpu.memory_space<vmem>>, vector<1x24x128xbf16>
      %61 = vector.shape_cast %60 : vector<1x24x128xbf16> to vector<24x128xbf16>
      %c0_52 = arith.constant 0 : index
      %c0_53 = arith.constant 0 : index
      %c0_54 = arith.constant 0 : index
      %62 = vector.load %arg9[%c0_52, %c0_53, %c0_54] : memref<1x24x128xbf16, #tpu.memory_space<vmem>>, vector<1x24x128xbf16>
      %63 = vector.shape_cast %62 : vector<1x24x128xbf16> to vector<24x128xbf16>
      %c0_55 = arith.constant 0 : index
      %c0_56 = arith.constant 0 : index
      %c0_57 = arith.constant 0 : index
      %64 = vector.load %arg11[%c0_55, %c0_56, %c0_57] : memref<1x24x128xbf16, #tpu.memory_space<vmem>>, vector<1x24x128xbf16>
      %65 = vector.shape_cast %64 : vector<1x24x128xbf16> to vector<24x128xbf16>
      %c0_58 = arith.constant 0 : index
      %c0_59 = arith.constant 0 : index
      %66 = vector.load %arg12[%c0_58, %c0_59] : memref<128x128xbf16, #tpu.memory_space<vmem>>, vector<128x128xbf16>
      %cst_60 = arith.constant dense<0.000000e+00> : vector<24x128xf32>
      %67 = tpu.matmul %61, %66, %cst_60 {dimension_numbers = #tpu.dot_dimension_numbers<[1], [0], [0], [1], [0, 0, 1, 1], [], []>} : vector<24x128xbf16>, vector<128x128xbf16>, vector<24x128xf32> -> vector<24x128xf32>
      %68 = arith.extf %63 : vector<24x128xbf16> to vector<24x128xf32>
      %69 = vector.broadcast %0 : f32 to vector<24x128xf32>
      %70 = arith.mulf %69, %68 : vector<24x128xf32>
      %71 = arith.addf %67, %70 : vector<24x128xf32>
      %72 = arith.extf %65 : vector<24x128xbf16> to vector<24x128xf32>
      %73 = vector.broadcast %1 : f32 to vector<24x128xf32>
      %74 = arith.mulf %73, %72 : vector<24x128xf32>
      %75 = arith.addf %71, %74 : vector<24x128xf32>
      %76 = arith.truncf %75 : vector<24x128xf32> to vector<24x128xbf16>
      %c408 = arith.constant 408 : index
      %c0_61 = arith.constant 0 : index
      %77 = vector.load %arg16[%c408, %c0_61] : memref<440x128xbf16, #tpu.memory_space<vmem>>, vector<24x128xbf16>
      tpu.vector_store %arg16[%c408, %c0_61], %76 {strides = array<i32>} : memref<440x128xbf16, #tpu.memory_space<vmem>>, vector<24x128xbf16>,
    } else {
    }
    %c0_i32_16 = arith.constant 0 : i32
    %29 = arith.cmpi eq, %arg1, %c0_i32_16 : i32
    %30 = arith.extui %29 : i1 to i32
    %c0_i32_17 = arith.constant 0 : i32
    %31 = arith.cmpi ne, %30, %c0_i32_17 : i32
    scf.if %31 {
      %cst_49 = arith.constant 0.000000e+00 : bf16
      %60 = vector.broadcast %cst_49 : bf16 to vector<24x128xbf16>
      %c408 = arith.constant 408 : index
      %c0_50 = arith.constant 0 : index
      %61 = vector.load %arg16[%c408, %c0_50] : memref<440x128xbf16, #tpu.memory_space<vmem>>, vector<24x128xbf16>
      tpu.vector_store %arg16[%c408, %c0_50], %60 {strides = array<i32>} : memref<440x128xbf16, #tpu.memory_space<vmem>>, vector<24x128xbf16>,
    } else {
    }
    %cst_18 = arith.constant 0.000000e+00 : bf16
    %32 = vector.broadcast %cst_18 : bf16 to vector<8x128xbf16>
    %c432 = arith.constant 432 : index
    %c0_19 = arith.constant 0 : index
    %33 = vector.load %arg16[%c432, %c0_19] : memref<440x128xbf16, #tpu.memory_space<vmem>>, vector<8x128xbf16>
    tpu.vector_store %arg16[%c432, %c0_19], %32 {strides = array<i32>} : memref<440x128xbf16, #tpu.memory_space<vmem>>, vector<8x128xbf16>,
    %c0_20 = arith.constant 0 : index
    %c0_21 = arith.constant 0 : index
    %34 = vector.load %arg16[%c0_20, %c0_21] : memref<440x128xbf16, #tpu.memory_space<vmem>>, vector<432x128xbf16>
    %c0_22 = arith.constant 0 : index
    %c0_23 = arith.constant 0 : index
    %35 = vector.load %arg17[%c0_22, %c0_23] : memref<432x384xbf16, #tpu.memory_space<vmem>>, vector<432x128xbf16>
    tpu.vector_store %arg17[%c0_22, %c0_23], %34 {strides = array<i32>} : memref<432x384xbf16, #tpu.memory_space<vmem>>, vector<432x128xbf16>,
    %c1_24 = arith.constant 1 : index
    %c0_25 = arith.constant 0 : index
    %36 = vector.load %arg16[%c1_24, %c0_25] : memref<440x128xbf16, #tpu.memory_space<vmem>>, vector<432x128xbf16>
    %c0_26 = arith.constant 0 : index
    %c128 = arith.constant 128 : index
    %37 = vector.load %arg17[%c0_26, %c128] : memref<432x384xbf16, #tpu.memory_space<vmem>>, vector<432x128xbf16>
    tpu.vector_store %arg17[%c0_26, %c128], %36 {strides = array<i32>} : memref<432x384xbf16, #tpu.memory_space<vmem>>, vector<432x128xbf16>,
    %c2_27 = arith.constant 2 : index
    %c0_28 = arith.constant 0 : index
    %38 = vector.load %arg16[%c2_27, %c0_28] : memref<440x128xbf16, #tpu.memory_space<vmem>>, vector<432x128xbf16>
    %c0_29 = arith.constant 0 : index
    %c256 = arith.constant 256 : index
    %39 = vector.load %arg17[%c0_29, %c256] : memref<432x384xbf16, #tpu.memory_space<vmem>>, vector<432x128xbf16>
    tpu.vector_store %arg17[%c0_29, %c256], %38 {strides = array<i32>} : memref<432x384xbf16, #tpu.memory_space<vmem>>, vector<432x128xbf16>,
    %c0_30 = arith.constant 0 : index
    %c0_31 = arith.constant 0 : index
    %40 = vector.load %arg17[%c0_30, %c0_31] : memref<432x384xbf16, #tpu.memory_space<vmem>>, vector<432x384xbf16>
    %c0_32 = arith.constant 0 : index
    %c0_33 = arith.constant 0 : index
    %41 = vector.load %arg13[%c0_32, %c0_33] : memref<384x384xbf16, #tpu.memory_space<vmem>>, vector<384x384xbf16>
    %cst_34 = arith.constant dense<0.000000e+00> : vector<432x384xf32>
    %42 = tpu.matmul %40, %41, %cst_34 {dimension_numbers = #tpu.dot_dimension_numbers<[1], [0], [0], [1], [0, 0, 1, 1], [], []>} : vector<432x384xbf16>, vector<384x384xbf16>, vector<432x384xf32> -> vector<432x384xf32>
    %c0_35 = arith.constant 0 : index
    %c0_36 = arith.constant 0 : index
    %43 = vector.load %arg18[%c0_35, %c0_36] : memref<432x384xf32, #tpu.memory_space<vmem>>, vector<432x384xf32>
    tpu.vector_store %arg18[%c0_35, %c0_36], %42 {strides = array<i32>} : memref<432x384xf32, #tpu.memory_space<vmem>>, vector<432x384xf32>,
    %c0_37 = arith.constant 0 : index
    %c0_38 = arith.constant 0 : index
    %44 = vector.load %arg18[%c0_37, %c0_38] : memref<432x384xf32, #tpu.memory_space<vmem>>, vector<384x128xf32>
    %c24_39 = arith.constant 24 : index
    %c128_40 = arith.constant 128 : index
    %45 = vector.load %arg18[%c24_39, %c128_40] : memref<432x384xf32, #tpu.memory_space<vmem>>, vector<384x128xf32>
    %46 = arith.addf %44, %45 : vector<384x128xf32>
    %c48 = arith.constant 48 : index
    %c256_41 = arith.constant 256 : index
    %47 = vector.load %arg18[%c48, %c256_41] : memref<432x384xf32, #tpu.memory_space<vmem>>, vector<384x128xf32>
    %48 = arith.addf %46, %47 : vector<384x128xf32>
    %c0_42 = arith.constant 0 : index
    %c0_43 = arith.constant 0 : index
    %49 = vector.load %arg14[%c0_42, %c0_43] : memref<1x128xf32, #tpu.memory_space<vmem>>, vector<1x128xf32>
    %50 = vector.broadcast %49 : vector<1x128xf32> to vector<384x128xf32>
    %51 = arith.addf %48, %50 : vector<384x128xf32>
    %cst_44 = arith.constant 0.000000e+00 : f32
    %cst_45 = arith.constant 6.000000e+00 : f32
    %52 = vector.broadcast %cst_44 : f32 to vector<384x128xf32>
    %53 = arith.maximumf %52, %51 : vector<384x128xf32>
    %54 = vector.broadcast %cst_45 : f32 to vector<384x128xf32>
    %55 = arith.minimumf %54, %53 : vector<384x128xf32>
    %56 = arith.truncf %55 : vector<384x128xf32> to vector<384x128xbf16>
    %c0_46 = arith.constant 0 : index
    %c0_47 = arith.constant 0 : index
    %c0_48 = arith.constant 0 : index
    %57 = vector.load %arg15[%c0_46, %c0_47, %c0_48] : memref<1x384x128xbf16, #tpu.memory_space<vmem>>, vector<1x384x128xbf16>
    %58 = vector.shape_cast %57 : vector<1x384x128xbf16> to vector<384x128xbf16>
    %59 = vector.shape_cast %56 : vector<384x128xbf16> to vector<1x384x128xbf16>
    tpu.vector_store %arg15[%c0_46, %c0_47, %c0_48], %59 {strides = array<i32>} : memref<1x384x128xbf16, #tpu.memory_space<vmem>>, vector<1x384x128xbf16>,
    return
  }
  func.func @transform_0(%arg0: i32, %arg1: i32, %arg2: memref<3xf32, #tpu.memory_space<smem>>) -> (i32, i32, i32) {
    %c0_i32 = arith.constant 0 : i32
    %c0_i32_0 = arith.constant 0 : i32
    return %arg0, %arg1, %c0_i32 : i32, i32, i32
  }
  func.func @transform_1(%arg0: i32, %arg1: i32, %arg2: memref<3xf32, #tpu.memory_space<smem>>) -> (i32, i32, i32) {
    %c0_i32 = arith.constant 0 : i32
    %c0_i32_0 = arith.constant 0 : i32
    return %arg0, %arg1, %c0_i32 : i32, i32, i32
  }
  func.func @transform_2(%arg0: i32, %arg1: i32, %arg2: memref<3xf32, #tpu.memory_space<smem>>) -> (i32, i32, i32) {
    %c0_i32 = arith.constant 0 : i32
    %c0_i32_0 = arith.constant 0 : i32
    return %arg0, %arg1, %c0_i32 : i32, i32, i32
  }
  func.func @transform_3(%arg0: i32, %arg1: i32, %arg2: memref<3xf32, #tpu.memory_space<smem>>) -> (i32, i32, i32) {
    %c16_i32 = arith.constant 16 : i32
    %0 = arith.muli %arg1, %c16_i32 : i32
    %c1_i32 = arith.constant 1 : i32
    %1 = arith.subi %0, %c1_i32 : i32
    %c0_i32 = arith.constant 0 : i32
    %2 = arith.maxsi %1, %c0_i32 : i32
    %c0_i32_0 = arith.constant 0 : i32
    %c0_i32_1 = arith.constant 0 : i32
    return %arg0, %2, %c0_i32_0 : i32, i32, i32
  }
  func.func @transform_4(%arg0: i32, %arg1: i32, %arg2: memref<3xf32, #tpu.memory_space<smem>>) -> (i32, i32, i32) {
    %c16_i32 = arith.constant 16 : i32
    %0 = arith.muli %arg1, %c16_i32 : i32
    %c1_i32 = arith.constant 1 : i32
    %1 = arith.subi %0, %c1_i32 : i32
    %c0_i32 = arith.constant 0 : i32
    %2 = arith.maxsi %1, %c0_i32 : i32
    %c0_i32_0 = arith.constant 0 : i32
    %c0_i32_1 = arith.constant 0 : i32
    return %arg0, %2, %c0_i32_0 : i32, i32, i32
  }
  func.func @transform_5(%arg0: i32, %arg1: i32, %arg2: memref<3xf32, #tpu.memory_space<smem>>) -> (i32, i32, i32) {
    %c16_i32 = arith.constant 16 : i32
    %0 = arith.muli %arg1, %c16_i32 : i32
    %c1_i32 = arith.constant 1 : i32
    %1 = arith.subi %0, %c1_i32 : i32
    %c0_i32 = arith.constant 0 : i32
    %2 = arith.maxsi %1, %c0_i32 : i32
    %c0_i32_0 = arith.constant 0 : i32
    %c0_i32_1 = arith.constant 0 : i32
    return %arg0, %2, %c0_i32_0 : i32, i32, i32
  }
  func.func @transform_6(%arg0: i32, %arg1: i32, %arg2: memref<3xf32, #tpu.memory_space<smem>>) -> (i32, i32, i32) {
    %c1_i32 = arith.constant 1 : i32
    %0 = arith.addi %arg1, %c1_i32 : i32
    %c16_i32 = arith.constant 16 : i32
    %1 = arith.muli %0, %c16_i32 : i32
    %c15_i32 = arith.constant 15 : i32
    %2 = arith.minsi %1, %c15_i32 : i32
    %c0_i32 = arith.constant 0 : i32
    %c0_i32_0 = arith.constant 0 : i32
    return %arg0, %2, %c0_i32 : i32, i32, i32
  }
  func.func @transform_7(%arg0: i32, %arg1: i32, %arg2: memref<3xf32, #tpu.memory_space<smem>>) -> (i32, i32, i32) {
    %c1_i32 = arith.constant 1 : i32
    %0 = arith.addi %arg1, %c1_i32 : i32
    %c16_i32 = arith.constant 16 : i32
    %1 = arith.muli %0, %c16_i32 : i32
    %c15_i32 = arith.constant 15 : i32
    %2 = arith.minsi %1, %c15_i32 : i32
    %c0_i32 = arith.constant 0 : i32
    %c0_i32_0 = arith.constant 0 : i32
    return %arg0, %2, %c0_i32 : i32, i32, i32
  }
  func.func @transform_8(%arg0: i32, %arg1: i32, %arg2: memref<3xf32, #tpu.memory_space<smem>>) -> (i32, i32, i32) {
    %c1_i32 = arith.constant 1 : i32
    %0 = arith.addi %arg1, %c1_i32 : i32
    %c16_i32 = arith.constant 16 : i32
    %1 = arith.muli %0, %c16_i32 : i32
    %c15_i32 = arith.constant 15 : i32
    %2 = arith.minsi %1, %c15_i32 : i32
    %c0_i32 = arith.constant 0 : i32
    %c0_i32_0 = arith.constant 0 : i32
    return %arg0, %2, %c0_i32 : i32, i32, i32
  }
  func.func @transform_9(%arg0: i32, %arg1: i32, %arg2: memref<3xf32, #tpu.memory_space<smem>>) -> (i32, i32) {
    %c0_i32 = arith.constant 0 : i32
    %c0_i32_0 = arith.constant 0 : i32
    %c0_i32_1 = arith.constant 0 : i32
    return %c0_i32, %c0_i32_0 : i32, i32
  }
  func.func @transform_10(%arg0: i32, %arg1: i32, %arg2: memref<3xf32, #tpu.memory_space<smem>>) -> (i32, i32) {
    %c0_i32 = arith.constant 0 : i32
    %c0_i32_0 = arith.constant 0 : i32
    %c0_i32_1 = arith.constant 0 : i32
    return %c0_i32, %c0_i32_0 : i32, i32
  }
  func.func @transform_11(%arg0: i32, %arg1: i32, %arg2: memref<3xf32, #tpu.memory_space<smem>>) -> (i32, i32) {
    %c0_i32 = arith.constant 0 : i32
    %c0_i32_0 = arith.constant 0 : i32
    %c0_i32_1 = arith.constant 0 : i32
    return %c0_i32, %c0_i32_0 : i32, i32
  }
  func.func @transform_12(%arg0: i32, %arg1: i32, %arg2: memref<3xf32, #tpu.memory_space<smem>>) -> (i32, i32, i32) {
    %c0_i32 = arith.constant 0 : i32
    %c0_i32_0 = arith.constant 0 : i32
    return %arg0, %arg1, %c0_i32 : i32, i32, i32
  }
}

</mosaic_0001>

<llo_original>
// kernel: ws_forward.1
$region0: #{ws_forward.1}
  #allocation0 [shape = 'u32[]', space=smem, size = 0x4, offset = 0x4, fixed_abs, tag = 'smem constant byte address 0x4 - core index']
  #allocation1 [shape = 'u32[144,128]{1,0:T(1,128)}', space=vmem, size = 0x12000, scoped, tag = 'internal scratch']
  #allocation2 [shape = 'bf16[440,128]{1,0:T(8,128)(2,1)}', space=vmem, size = 0x1b800, scoped, tag = 'scratch operand']
  #allocation3 [shape = 'bf16[432,384]{1,0:T(16,128)(2,1)}', space=vmem, size = 0x51000, scoped, tag = 'scratch operand']
  #allocation4 [shape = 'f32[432,384]{1,0:T(8,128)}', space=vmem, size = 0xa2000, scoped, tag = 'scratch operand']
  #allocation5 [shape = 's32[1]{0}', space=sflag, size = 0x4, scoped, tag = 'scoped memory for ws_forward.1']
  #allocation6 [shape = 'u8[512]{0}', space=smem, size = 0x200, scoped, tag = 'prefetched SMEM operand 0']
  %s0 = inlined_call_operand.vmem [shape: f32[3], index: 0, kind: input, shape index: {}]
  %s1 = inlined_call_operand.vmem [shape: bf16[2,384,128], index: 1, kind: input, shape index: {}, may-alias: {1,4,7}]
  %s2 = inlined_call_operand.vmem [shape: bf16[2,384,128], index: 2, kind: input, shape index: {}, may-alias: {2,5,8}]
  %s3 = inlined_call_operand.vmem [shape: bf16[2,384,128], index: 3, kind: input, shape index: {}, may-alias: {3,6,9}]
  %s4 = inlined_call_operand.vmem [shape: bf16[2,384,128], index: 4, kind: input, shape index: {}, may-alias: {1,4,7}]
  %s5 = inlined_call_operand.vmem [shape: bf16[2,384,128], index: 5, kind: input, shape index: {}, may-alias: {2,5,8}]
  %s6 = inlined_call_operand.vmem [shape: bf16[2,384,128], index: 6, kind: input, shape index: {}, may-alias: {3,6,9}]
  %s7 = inlined_call_operand.vmem [shape: bf16[2,384,128], index: 7, kind: input, shape index: {}, may-alias: {1,4,7}]
  %s8 = inlined_call_operand.vmem [shape: bf16[2,384,128], index: 8, kind: input, shape index: {}, may-alias: {2,5,8}]
  %s9 = inlined_call_operand.vmem [shape: bf16[2,384,128], index: 9, kind: input, shape index: {}, may-alias: {3,6,9}]
  %s10 = inlined_call_operand.vmem [shape: bf16[128,128], index: 10, kind: input, shape index: {}]
  %s11 = inlined_call_operand.vmem [shape: bf16[384,384], index: 11, kind: input, shape index: {}]
  %s12 = inlined_call_operand.vmem [shape: f32[1,128], index: 12, kind: input, shape index: {}]
  %s13 = inlined_call_operand.vmem [shape: bf16[2,384,128], index: 13, kind: output, shape index: {}]
  %s14 = sld [smem:[#allocation0]]
  $region97: #{ws_forward.1} parent=0
    _
  %s16 = ssub.s32 1, %s14
  %s17 = scalar_select 0, %s16, %s14
  %s18 = sshll.u32 %s0, 4
  %s19 = int_to_ptr.vmem [resolvable:$true] %s18
  %21 = dma.vmem_to_smem %s19, 16, [#allocation6], [#allocation5]
  %22 = dma.done [#allocation5], 16
  %23 = sfence
  loop: start=0, step=1, limit=4
  $region2: #{ws_forward.1} parent=0 // loop_pre_header
    _
  $region3: #{ws_forward.1} parent=0 // loop_header
    %s25 = sphi 0, %s29
    %p26 = scmp.ge.s32.totalorder %s25, 4
    %s32 = sphi 0, %s44
    %s33 = sphi 0, %s40
    %s34 = sphi 0, %s32
    %s35 = sphi 0, %s33
    %s36 = sphi 0, %s34
    %s37 = sphi 0, %s35
    %s49 = sphi 0, %s51
    %s52 = sphi 0, %s49
    %s53 = sphi 0, %s52
    %s69 = sphi 0, %s53
    %s77 = sphi 0, %s79
    %s80 = sphi 0, %s77
    %s81 = sphi 0, %s80
    %s97 = sphi 0, %s81
    %s105 = sphi 0, %s107
    %s108 = sphi 0, %s105
    %s109 = sphi 0, %s108
    %s125 = sphi 0, %s109
    %s141 = sphi 0, %s143
    %s144 = sphi 0, %s141
    %s145 = sphi 0, %s144
    %s161 = sphi 0, %s145
    %s177 = sphi 0, %s179
    %s180 = sphi 0, %s177
    %s181 = sphi 0, %s180
    %s197 = sphi 0, %s181
    %s213 = sphi 0, %s215
    %s216 = sphi 0, %s213
    %s217 = sphi 0, %s216
    %s233 = sphi 0, %s217
    %s249 = sphi 0, %s251
    %s252 = sphi 0, %s249
    %s253 = sphi 0, %s252
    %s269 = sphi 0, %s253
    %s285 = sphi 0, %s287
    %s288 = sphi 0, %s285
    %s289 = sphi 0, %s288
    %s305 = sphi 0, %s289
    %s321 = sphi 0, %s323
    %s324 = sphi 0, %s321
    %s325 = sphi 0, %s324
    %s341 = sphi 0, %s325
    %s345 = sphi 0, %s345
    %s347 = sphi 0, %s345
    %s348 = sphi 0, %s347
    %s362 = sphi 0, %s348
    %s366 = sphi 0, %s366
    %s368 = sphi 0, %s366
    %s369 = sphi 0, %s368
    %s383 = sphi 0, %s369
    %s387 = sphi 0, %s387
    %s389 = sphi 0, %s387
    %s390 = sphi 0, %s389
    %s404 = sphi 0, %s390
    %s412 = sphi 0, %s414
    %s415 = sphi 0, %s412
    %s416 = sphi 0, %s415
    %s432 = sphi 0, %s416
  $region4: #{ws_forward.1} parent=0 // loop_header_branch
    %28 = sbr.rel (%p26) target = $region8
  $region5: #{ws_forward.1} parent=0 // loop_body
    %s30 = ssub.s32 %s25, 1
    %s31 = ssub.s32 %s25, 2
    %s38 = sadd.s32 1, %s33
    %p39 = scmp.ge.s32.totalorder %s38, 1
    %s40 = scalar_select %p39, 0, %s38
    %s41 = sadd.s32 1, %s32
    %s42 = scalar_select %p39, %s41, %s32
    %p43 = scmp.ge.s32.totalorder %s42, 2
    %s44 = scalar_select %p43, 0, %s42
    %s45 = ssub.s32 %s32, %s44
    %s46 = ssub.s32 %s33, %s40
    %s47 = sor.u32 %s45, %s46
    %p48 = scmp.eq.s32.totalorder %s47, 0
    %s50 = sadd.s32 %s49, 1
    %s51 = scalar_select %p48, %s49, %s50
    %p54 = pneg %p48
    %p55 = scmp.eq.s32.totalorder %s25, 1
    %p56 = por %p54, %p55
    %p57 = scmp.ne.s32.totalorder %s49, %s52
    %p58 = scmp.eq.s32.totalorder %s25, 0
    %p59 = por %p57, %p58
    %p60 = scmp.ne.s32.totalorder %s49, %s52
    %p61 = scmp.eq.s32.totalorder %s30, 1
    %p62 = por %p60, %p61
    %p63 = scmp.ne.s32.totalorder %s52, %s53
    %p64 = scmp.eq.s32.totalorder %s30, 0
    %p65 = por %p63, %p64
    %p66 = scmp.ne.s32.totalorder %s52, %s53
    %p67 = scmp.eq.s32.totalorder %s31, 1
    %p68 = por %p66, %p67
    %p70 = scmp.ne.s32.totalorder %s53, %s69
    %p71 = scmp.eq.s32.totalorder %s31, 0
    %p72 = por %p70, %p71
    %s73 = ssub.s32 %s32, %s44
    %s74 = ssub.s32 %s33, %s40
    %s75 = sor.u32 %s73, %s74
    %p76 = scmp.eq.s32.totalorder %s75, 0
    %s78 = sadd.s32 %s77, 1
    %s79 = scalar_select %p76, %s77, %s78
    %p82 = pneg %p76
    %p83 = scmp.eq.s32.totalorder %s25, 1
    %p84 = por %p82, %p83
    %p85 = scmp.ne.s32.totalorder %s77, %s80
    %p86 = scmp.eq.s32.totalorder %s25, 0
    %p87 = por %p85, %p86
    %p88 = scmp.ne.s32.totalorder %s77, %s80
    %p89 = scmp.eq.s32.totalorder %s30, 1
    %p90 = por %p88, %p89
    %p91 = scmp.ne.s32.totalorder %s80, %s81
    %p92 = scmp.eq.s32.totalorder %s30, 0
    %p93 = por %p91, %p92
    %p94 = scmp.ne.s32.totalorder %s80, %s81
    %p95 = scmp.eq.s32.totalorder %s31, 1
    %p96 = por %p94, %p95
    %p98 = scmp.ne.s32.totalorder %s81, %s97
    %p99 = scmp.eq.s32.totalorder %s31, 0
    %p100 = por %p98, %p99
    %s101 = ssub.s32 %s32, %s44
    %s102 = ssub.s32 %s33, %s40
    %s103 = sor.u32 %s101, %s102
    %p104 = scmp.eq.s32.totalorder %s103, 0
    %s106 = sadd.s32 %s105, 1
    %s107 = scalar_select %p104, %s105, %s106
    %p110 = pneg %p104
    %p111 = scmp.eq.s32.totalorder %s25, 1
    %p112 = por %p110, %p111
    %p113 = scmp.ne.s32.totalorder %s105, %s108
    %p114 = scmp.eq.s32.totalorder %s25, 0
    %p115 = por %p113, %p114
    %p116 = scmp.ne.s32.totalorder %s105, %s108
    %p117 = scmp.eq.s32.totalorder %s30, 1
    %p118 = por %p116, %p117
    %p119 = scmp.ne.s32.totalorder %s108, %s109
    %p120 = scmp.eq.s32.totalorder %s30, 0
    %p121 = por %p119, %p120
    %p122 = scmp.ne.s32.totalorder %s108, %s109
    %p123 = scmp.eq.s32.totalorder %s31, 1
    %p124 = por %p122, %p123
    %p126 = scmp.ne.s32.totalorder %s109, %s125
    %p127 = scmp.eq.s32.totalorder %s31, 0
    %p128 = por %p126, %p127
    %s129 = smul.u32 %s33, 16
    %s130 = ssub.s32 %s129, 1
    %p131 = scmp.gt.s32.totalorder %s130, 0
    %s132 = scalar_select %p131, %s130, 0
    %s133 = smul.u32 %s40, 16
    %s134 = ssub.s32 %s133, 1
    %p135 = scmp.gt.s32.totalorder %s134, 0
    %s136 = scalar_select %p135, %s134, 0
    %s137 = ssub.s32 %s32, %s44
    %s138 = ssub.s32 %s132, %s136
    %s139 = sor.u32 %s137, %s138
    %p140 = scmp.eq.s32.totalorder %s139, 0
    %s142 = sadd.s32 %s141, 1
    %s143 = scalar_select %p140, %s141, %s142
    %p146 = pneg %p140
    %p147 = scmp.eq.s32.totalorder %s25, 1
    %p148 = por %p146, %p147
    %p149 = scmp.ne.s32.totalorder %s141, %s144
    %p150 = scmp.eq.s32.totalorder %s25, 0
    %p151 = por %p149, %p150
    %p152 = scmp.ne.s32.totalorder %s141, %s144
    %p153 = scmp.eq.s32.totalorder %s30, 1
    %p154 = por %p152, %p153
    %p155 = scmp.ne.s32.totalorder %s144, %s145
    %p156 = scmp.eq.s32.totalorder %s30, 0
    %p157 = por %p155, %p156
    %p158 = scmp.ne.s32.totalorder %s144, %s145
    %p159 = scmp.eq.s32.totalorder %s31, 1
    %p160 = por %p158, %p159
    %p162 = scmp.ne.s32.totalorder %s145, %s161
    %p163 = scmp.eq.s32.totalorder %s31, 0
    %p164 = por %p162, %p163
    %s165 = smul.u32 %s33, 16
    %s166 = ssub.s32 %s165, 1
    %p167 = scmp.gt.s32.totalorder %s166, 0
    %s168 = scalar_select %p167, %s166, 0
    %s169 = smul.u32 %s40, 16
    %s170 = ssub.s32 %s169, 1
    %p171 = scmp.gt.s32.totalorder %s170, 0
    %s172 = scalar_select %p171, %s170, 0
    %s173 = ssub.s32 %s32, %s44
    %s174 = ssub.s32 %s168, %s172
    %s175 = sor.u32 %s173, %s174
    %p176 = scmp.eq.s32.totalorder %s175, 0
    %s178 = sadd.s32 %s177, 1
    %s179 = scalar_select %p176, %s177, %s178
    %p182 = pneg %p176
    %p183 = scmp.eq.s32.totalorder %s25, 1
    %p184 = por %p182, %p183
    %p185 = scmp.ne.s32.totalorder %s177, %s180
    %p186 = scmp.eq.s32.totalorder %s25, 0
    %p187 = por %p185, %p186
    %p188 = scmp.ne.s32.totalorder %s177, %s180
    %p189 = scmp.eq.s32.totalorder %s30, 1
    %p190 = por %p188, %p189
    %p191 = scmp.ne.s32.totalorder %s180, %s181
    %p192 = scmp.eq.s32.totalorder %s30, 0
    %p193 = por %p191, %p192
    %p194 = scmp.ne.s32.totalorder %s180, %s181
    %p195 = scmp.eq.s32.totalorder %s31, 1
    %p196 = por %p194, %p195
    %p198 = scmp.ne.s32.totalorder %s181, %s197
    %p199 = scmp.eq.s32.totalorder %s31, 0
    %p200 = por %p198, %p199
    %s201 = smul.u32 %s33, 16
    %s202 = ssub.s32 %s201, 1
    %p203 = scmp.gt.s32.totalorder %s202, 0
    %s204 = scalar_select %p203, %s202, 0
    %s205 = smul.u32 %s40, 16
    %s206 = ssub.s32 %s205, 1
    %p207 = scmp.gt.s32.totalorder %s206, 0
    %s208 = scalar_select %p207, %s206, 0
    %s209 = ssub.s32 %s32, %s44
    %s210 = ssub.s32 %s204, %s208
    %s211 = sor.u32 %s209, %s210
    %p212 = scmp.eq.s32.totalorder %s211, 0
    %s214 = sadd.s32 %s213, 1
    %s215 = scalar_select %p212, %s213, %s214
    %p218 = pneg %p212
    %p219 = scmp.eq.s32.totalorder %s25, 1
    %p220 = por %p218, %p219
    %p221 = scmp.ne.s32.totalorder %s213, %s216
    %p222 = scmp.eq.s32.totalorder %s25, 0
    %p223 = por %p221, %p222
    %p224 = scmp.ne.s32.totalorder %s213, %s216
    %p225 = scmp.eq.s32.totalorder %s30, 1
    %p226 = por %p224, %p225
    %p227 = scmp.ne.s32.totalorder %s216, %s217
    %p228 = scmp.eq.s32.totalorder %s30, 0
    %p229 = por %p227, %p228
    %p230 = scmp.ne.s32.totalorder %s216, %s217
    %p231 = scmp.eq.s32.totalorder %s31, 1
    %p232 = por %p230, %p231
    %p234 = scmp.ne.s32.totalorder %s217, %s233
    %p235 = scmp.eq.s32.totalorder %s31, 0
    %p236 = por %p234, %p235
    %s237 = sadd.s32 %s33, 1
    %s238 = smul.u32 %s237, 16
    %p239 = scmp.lt.s32.totalorder %s238, 15
    %s240 = scalar_select %p239, %s238, 15
    %s241 = sadd.s32 %s40, 1
    %s242 = smul.u32 %s241, 16
    %p243 = scmp.lt.s32.totalorder %s242, 15
    %s244 = scalar_select %p243, %s242, 15
    %s245 = ssub.s32 %s32, %s44
    %s246 = ssub.s32 %s240, %s244
    %s247 = sor.u32 %s245, %s246
    %p248 = scmp.eq.s32.totalorder %s247, 0
    %s250 = sadd.s32 %s249, 1
    %s251 = scalar_select %p248, %s249, %s250
    %p254 = pneg %p248
    %p255 = scmp.eq.s32.totalorder %s25, 1
    %p256 = por %p254, %p255
    %p257 = scmp.ne.s32.totalorder %s249, %s252
    %p258 = scmp.eq.s32.totalorder %s25, 0
    %p259 = por %p257, %p258
    %p260 = scmp.ne.s32.totalorder %s249, %s252
    %p261 = scmp.eq.s32.totalorder %s30, 1
    %p262 = por %p260, %p261
    %p263 = scmp.ne.s32.totalorder %s252, %s253
    %p264 = scmp.eq.s32.totalorder %s30, 0
    %p265 = por %p263, %p264
    %p266 = scmp.ne.s32.totalorder %s252, %s253
    %p267 = scmp.eq.s32.totalorder %s31, 1
    %p268 = por %p266, %p267
    %p270 = scmp.ne.s32.totalorder %s253, %s269
    %p271 = scmp.eq.s32.totalorder %s31, 0
    %p272 = por %p270, %p271
    %s273 = sadd.s32 %s33, 1
    %s274 = smul.u32 %s273, 16
    %p275 = scmp.lt.s32.totalorder %s274, 15
    %s276 = scalar_select %p275, %s274, 15
    %s277 = sadd.s32 %s40, 1
    %s278 = smul.u32 %s277, 16
    %p279 = scmp.lt.s32.totalorder %s278, 15
    %s280 = scalar_select %p279, %s278, 15
    %s281 = ssub.s32 %s32, %s44
    %s282 = ssub.s32 %s276, %s280
    %s283 = sor.u32 %s281, %s282
    %p284 = scmp.eq.s32.totalorder %s283, 0
    %s286 = sadd.s32 %s285, 1
    %s287 = scalar_select %p284, %s285, %s286
    %p290 = pneg %p284
    %p291 = scmp.eq.s32.totalorder %s25, 1
    %p292 = por %p290, %p291
    %p293 = scmp.ne.s32.totalorder %s285, %s288
    %p294 = scmp.eq.s32.totalorder %s25, 0
    %p295 = por %p293, %p294
    %p296 = scmp.ne.s32.totalorder %s285, %s288
    %p297 = scmp.eq.s32.totalorder %s30, 1
    %p298 = por %p296, %p297
    %p299 = scmp.ne.s32.totalorder %s288, %s289
    %p300 = scmp.eq.s32.totalorder %s30, 0
    %p301 = por %p299, %p300
    %p302 = scmp.ne.s32.totalorder %s288, %s289
    %p303 = scmp.eq.s32.totalorder %s31, 1
    %p304 = por %p302, %p303
    %p306 = scmp.ne.s32.totalorder %s289, %s305
    %p307 = scmp.eq.s32.totalorder %s31, 0
    %p308 = por %p306, %p307
    %s309 = sadd.s32 %s33, 1
    %s310 = smul.u32 %s309, 16
    %p311 = scmp.lt.s32.totalorder %s310, 15
    %s312 = scalar_select %p311, %s310, 15
    %s313 = sadd.s32 %s40, 1
    %s314 = smul.u32 %s313, 16
    %p315 = scmp.lt.s32.totalorder %s314, 15
    %s316 = scalar_select %p315, %s314, 15
    %s317 = ssub.s32 %s32, %s44
    %s318 = ssub.s32 %s312, %s316
    %s319 = sor.u32 %s317, %s318
    %p320 = scmp.eq.s32.totalorder %s319, 0
    %s322 = sadd.s32 %s321, 1
    %s323 = scalar_select %p320, %s321, %s322
    %p326 = pneg %p320
    %p327 = scmp.eq.s32.totalorder %s25, 1
    %p328 = por %p326, %p327
    %p329 = scmp.ne.s32.totalorder %s321, %s324
    %p330 = scmp.eq.s32.totalorder %s25, 0
    %p331 = por %p329, %p330
    %p332 = scmp.ne.s32.totalorder %s321, %s324
    %p333 = scmp.eq.s32.totalorder %s30, 1
    %p334 = por %p332, %p333
    %p335 = scmp.ne.s32.totalorder %s324, %s325
    %p336 = scmp.eq.s32.totalorder %s30, 0
    %p337 = por %p335, %p336
    %p338 = scmp.ne.s32.totalorder %s324, %s325
    %p339 = scmp.eq.s32.totalorder %s31, 1
    %p340 = por %p338, %p339
    %p342 = scmp.ne.s32.totalorder %s325, %s341
    %p343 = scmp.eq.s32.totalorder %s31, 0
    %p344 = por %p342, %p343
    %s346 = sadd.s32 %s345, 1
    %p349 = scmp.eq.s32.totalorder %s25, 1
    %p350 = scmp.ne.s32.totalorder %s345, %s347
    %p351 = scmp.eq.s32.totalorder %s25, 0
    %p352 = por %p350, %p351
    %p353 = scmp.ne.s32.totalorder %s345, %s347
    %p354 = scmp.eq.s32.totalorder %s30, 1
    %p355 = por %p353, %p354
    %p356 = scmp.ne.s32.totalorder %s347, %s348
    %p357 = scmp.eq.s32.totalorder %s30, 0
    %p358 = por %p356, %p357
    %p359 = scmp.ne.s32.totalorder %s347, %s348
    %p360 = scmp.eq.s32.totalorder %s31, 1
    %p361 = por %p359, %p360
    %p363 = scmp.ne.s32.totalorder %s348, %s362
    %p364 = scmp.eq.s32.totalorder %s31, 0
    %p365 = por %p363, %p364
    %s367 = sadd.s32 %s366, 1
    %p370 = scmp.eq.s32.totalorder %s25, 1
    %p371 = scmp.ne.s32.totalorder %s366, %s368
    %p372 = scmp.eq.s32.totalorder %s25, 0
    %p373 = por %p371, %p372
    %p374 = scmp.ne.s32.totalorder %s366, %s368
    %p375 = scmp.eq.s32.totalorder %s30, 1
    %p376 = por %p374, %p375
    %p377 = scmp.ne.s32.totalorder %s368, %s369
    %p378 = scmp.eq.s32.totalorder %s30, 0
    %p379 = por %p377, %p378
    %p380 = scmp.ne.s32.totalorder %s368, %s369
    %p381 = scmp.eq.s32.totalorder %s31, 1
    %p382 = por %p380, %p381
    %p384 = scmp.ne.s32.totalorder %s369, %s383
    %p385 = scmp.eq.s32.totalorder %s31, 0
    %p386 = por %p384, %p385
    %s388 = sadd.s32 %s387, 1
    %p391 = scmp.eq.s32.totalorder %s25, 1
    %p392 = scmp.ne.s32.totalorder %s387, %s389
    %p393 = scmp.eq.s32.totalorder %s25, 0
    %p394 = por %p392, %p393
    %p395 = scmp.ne.s32.totalorder %s387, %s389
    %p396 = scmp.eq.s32.totalorder %s30, 1
    %p397 = por %p395, %p396
    %p398 = scmp.ne.s32.totalorder %s389, %s390
    %p399 = scmp.eq.s32.totalorder %s30, 0
    %p400 = por %p398, %p399
    %p401 = scmp.ne.s32.totalorder %s389, %s390
    %p402 = scmp.eq.s32.totalorder %s31, 1
    %p403 = por %p401, %p402
    %p405 = scmp.ne.s32.totalorder %s390, %s404
    %p406 = scmp.eq.s32.totalorder %s31, 0
    %p407 = por %p405, %p406
    %s408 = ssub.s32 %s32, %s44
    %s409 = ssub.s32 %s33, %s40
    %s410 = sor.u32 %s408, %s409
    %p411 = scmp.eq.s32.totalorder %s410, 0
    %s413 = sadd.s32 %s412, 1
    %s414 = scalar_select %p411, %s412, %s413
    %p417 = pneg %p411
    %p418 = scmp.eq.s32.totalorder %s25, 1
    %p419 = por %p417, %p418
    %p420 = scmp.ne.s32.totalorder %s412, %s415
    %p421 = scmp.eq.s32.totalorder %s25, 0
    %p422 = por %p420, %p421
    %p423 = scmp.ne.s32.totalorder %s412, %s415
    %p424 = scmp.eq.s32.totalorder %s30, 1
    %p425 = por %p423, %p424
    %p426 = scmp.ne.s32.totalorder %s415, %s416
    %p427 = scmp.eq.s32.totalorder %s30, 0
    %p428 = por %p426, %p427
    %p429 = scmp.ne.s32.totalorder %s415, %s416
    %p430 = scmp.eq.s32.totalorder %s31, 1
    %p431 = por %p429, %p430
    %p433 = scmp.ne.s32.totalorder %s416, %s432
    %p434 = scmp.eq.s32.totalorder %s31, 0
    %p435 = por %p433, %p434
    %p436 = scmp.le.s32.totalorder 1, %s25
    %p437 = scmp.lt.s32.totalorder %s25, 3
    %p438 = pnand %p436, %p437
    %p439 = pneg %p438
    // Predicated region
    $region9: #{ws_forward.1} parent=5 // pred_check
      _
    $region10: #{ws_forward.1} parent=5 // pred_check_branch
      %441 = sbr.rel (%p438) target = $region12
    $region11: #{ws_forward.1} parent=5 // pred_region
      %s442 = ssub.s32 %s25, 1
      // Predicated region
      $region13: #{ws_forward.1} parent=11 // pred_check
        %p443 = pneg %p358
      $region14: #{ws_forward.1} parent=11 // pred_check_branch
        %445 = sbr.rel (%p443) target = $region16
      $region15: #{ws_forward.1} parent=11 // pred_region
        _
      $region16: #{ws_forward.1} parent=11 // pred_fallthru
        _
      // Predicated region
      $region17: #{ws_forward.1} parent=11 // pred_check
        %p446 = pneg %p379
      $region18: #{ws_forward.1} parent=11 // pred_check_branch
        %448 = sbr.rel (%p446) target = $region20
      $region19: #{ws_forward.1} parent=11 // pred_region
        _
      $region20: #{ws_forward.1} parent=11 // pred_fallthru
        _
      // Predicated region
      $region21: #{ws_forward.1} parent=11 // pred_check
        %p449 = pneg %p400
      $region22: #{ws_forward.1} parent=11 // pred_check_branch
        %451 = sbr.rel (%p449) target = $region24
      $region23: #{ws_forward.1} parent=11 // pred_region
        _
      $region24: #{ws_forward.1} parent=11 // pred_fallthru
        _
    $region12: #{ws_forward.1} parent=5 // pred_fallthru
      _
    %p452 = scmp.lt.s32.totalorder %s25, 2
    // Predicated region
    $region25: #{ws_forward.1} parent=5 // pred_check
      %p453 = pneg %p452
    $region26: #{ws_forward.1} parent=5 // pred_check_branch
      %455 = sbr.rel (%p453) target = $region28
    $region27: #{ws_forward.1} parent=5 // pred_region
      // Predicated region
      $region29: #{ws_forward.1} parent=27 // pred_check
        %p456 = pneg %p59
      $region30: #{ws_forward.1} parent=27 // pred_check_branch
        %458 = sbr.rel (%p456) target = $region32
      $region31: #{ws_forward.1} parent=27 // pred_region
        %s459 = smul.u32 48, %s33
        %p460 = scmp.lt.s32.totalorder %s32, 1
        %s461 = scalar_select %p460, %s32, 1
        %p462 = scmp.lt.s32.totalorder %s459, 47
        %s463 = scalar_select %p462, %s459, 47
        %s464 = smul.addr %s461, 48
        %s465 = sadd.s32 %s463, %s464
        %s466 = smul.addr %s465, 4
        %s467 = scalar_lea.vmem %s1, %s466
        %s468 = smul.u32 48, %s33
      $region32: #{ws_forward.1} parent=27 // pred_fallthru
        _
      // Predicated region
      $region33: #{ws_forward.1} parent=27 // pred_check
        %p469 = pneg %p87
      $region34: #{ws_forward.1} parent=27 // pred_check_branch
        %471 = sbr.rel (%p469) target = $region36
      $region35: #{ws_forward.1} parent=27 // pred_region
        %s472 = smul.u32 48, %s33
        %p473 = scmp.lt.s32.totalorder %s32, 1
        %s474 = scalar_select %p473, %s32, 1
        %p475 = scmp.lt.s32.totalorder %s472, 47
        %s476 = scalar_select %p475, %s472, 47
        %s477 = smul.addr %s474, 48
        %s478 = sadd.s32 %s476, %s477
        %s479 = smul.addr %s478, 4
        %s480 = scalar_lea.vmem %s2, %s479
        %s481 = smul.u32 48, %s33
      $region36: #{ws_forward.1} parent=27 // pred_fallthru
        _
      // Predicated region
      $region37: #{ws_forward.1} parent=27 // pred_check
        %p482 = pneg %p115
      $region38: #{ws_forward.1} parent=27 // pred_check_branch
        %484 = sbr.rel (%p482) target = $region40
      $region39: #{ws_forward.1} parent=27 // pred_region
        %s485 = smul.u32 48, %s33
        %p486 = scmp.lt.s32.totalorder %s32, 1
        %s487 = scalar_select %p486, %s32, 1
        %p488 = scmp.lt.s32.totalorder %s485, 47
        %s489 = scalar_select %p488, %s485, 47
        %s490 = smul.addr %s487, 48
        %s491 = sadd.s32 %s489, %s490
        %s492 = smul.addr %s491, 4
        %s493 = scalar_lea.vmem %s3, %s492
        %s494 = smul.u32 48, %s33
      $region40: #{ws_forward.1} parent=27 // pred_fallthru
        _
      // Predicated region
      $region41: #{ws_forward.1} parent=27 // pred_check
        %p495 = pneg %p151
      $region42: #{ws_forward.1} parent=27 // pred_check_branch
        %497 = sbr.rel (%p495) target = $region44
      $region43: #{ws_forward.1} parent=27 // pred_region
        %s498 = smul.u32 %s33, 16
        %s499 = ssub.s32 %s498, 1
        %p500 = scmp.gt.s32.totalorder %s499, 0
        %s501 = scalar_select %p500, %s499, 0
        %s502 = smul.u32 3, %s501
        %p503 = scmp.lt.s32.totalorder %s32, 1
        %s504 = scalar_select %p503, %s32, 1
        %p505 = scmp.lt.s32.totalorder %s502, 47
        %s506 = scalar_select %p505, %s502, 47
        %s507 = smul.addr %s504, 48
        %s508 = sadd.s32 %s506, %s507
        %s509 = smul.addr %s508, 4
        %s510 = scalar_lea.vmem %s4, %s509
        %s511 = smul.u32 %s33, 16
        %s512 = ssub.s32 %s511, 1
        %p513 = scmp.gt.s32.totalorder %s512, 0
        %s514 = scalar_select %p513, %s512, 0
        %s515 = smul.u32 3, %s514
      $region44: #{ws_forward.1} parent=27 // pred_fallthru
        _
      // Predicated region
      $region45: #{ws_forward.1} parent=27 // pred_check
        %p516 = pneg %p187
      $region46: #{ws_forward.1} parent=27 // pred_check_branch
        %518 = sbr.rel (%p516) target = $region48
      $region47: #{ws_forward.1} parent=27 // pred_region
        %s519 = smul.u32 %s33, 16
        %s520 = ssub.s32 %s519, 1
        %p521 = scmp.gt.s32.totalorder %s520, 0
        %s522 = scalar_select %p521, %s520, 0
        %s523 = smul.u32 3, %s522
        %p524 = scmp.lt.s32.totalorder %s32, 1
        %s525 = scalar_select %p524, %s32, 1
        %p526 = scmp.lt.s32.totalorder %s523, 47
        %s527 = scalar_select %p526, %s523, 47
        %s528 = smul.addr %s525, 48
        %s529 = sadd.s32 %s527, %s528
        %s530 = smul.addr %s529, 4
        %s531 = scalar_lea.vmem %s5, %s530
        %s532 = smul.u32 %s33, 16
        %s533 = ssub.s32 %s532, 1
        %p534 = scmp.gt.s32.totalorder %s533, 0
        %s535 = scalar_select %p534, %s533, 0
        %s536 = smul.u32 3, %s535
      $region48: #{ws_forward.1} parent=27 // pred_fallthru
        _
      // Predicated region
      $region49: #{ws_forward.1} parent=27 // pred_check
        %p537 = pneg %p223
      $region50: #{ws_forward.1} parent=27 // pred_check_branch
        %539 = sbr.rel (%p537) target = $region52
      $region51: #{ws_forward.1} parent=27 // pred_region
        %s540 = smul.u32 %s33, 16
        %s541 = ssub.s32 %s540, 1
        %p542 = scmp.gt.s32.totalorder %s541, 0
        %s543 = scalar_select %p542, %s541, 0
        %s544 = smul.u32 3, %s543
        %p545 = scmp.lt.s32.totalorder %s32, 1
        %s546 = scalar_select %p545, %s32, 1
        %p547 = scmp.lt.s32.totalorder %s544, 47
        %s548 = scalar_select %p547, %s544, 47
        %s549 = smul.addr %s546, 48
        %s550 = sadd.s32 %s548, %s549
        %s551 = smul.addr %s550, 4
        %s552 = scalar_lea.vmem %s6, %s551
        %s553 = smul.u32 %s33, 16
        %s554 = ssub.s32 %s553, 1
        %p555 = scmp.gt.s32.totalorder %s554, 0
        %s556 = scalar_select %p555, %s554, 0
        %s557 = smul.u32 3, %s556
      $region52: #{ws_forward.1} parent=27 // pred_fallthru
        _
      // Predicated region
      $region53: #{ws_forward.1} parent=27 // pred_check
        %p558 = pneg %p259
      $region54: #{ws_forward.1} parent=27 // pred_check_branch
        %560 = sbr.rel (%p558) target = $region56
      $region55: #{ws_forward.1} parent=27 // pred_region
        %s561 = sadd.s32 %s33, 1
        %s562 = smul.u32 %s561, 16
        %p563 = scmp.lt.s32.totalorder %s562, 15
        %s564 = scalar_select %p563, %s562, 15
        %s565 = smul.u32 3, %s564
        %p566 = scmp.lt.s32.totalorder %s32, 1
        %s567 = scalar_select %p566, %s32, 1
        %p568 = scmp.lt.s32.totalorder %s565, 47
        %s569 = scalar_select %p568, %s565, 47
        %s570 = smul.addr %s567, 48
        %s571 = sadd.s32 %s569, %s570
        %s572 = smul.addr %s571, 4
        %s573 = scalar_lea.vmem %s7, %s572
        %s574 = sadd.s32 %s33, 1
        %s575 = smul.u32 %s574, 16
        %p576 = scmp.lt.s32.totalorder %s575, 15
        %s577 = scalar_select %p576, %s575, 15
        %s578 = smul.u32 3, %s577
      $region56: #{ws_forward.1} parent=27 // pred_fallthru
        _
      // Predicated region
      $region57: #{ws_forward.1} parent=27 // pred_check
        %p579 = pneg %p295
      $region58: #{ws_forward.1} parent=27 // pred_check_branch
        %581 = sbr.rel (%p579) target = $region60
      $region59: #{ws_forward.1} parent=27 // pred_region
        %s582 = sadd.s32 %s33, 1
        %s583 = smul.u32 %s582, 16
        %p584 = scmp.lt.s32.totalorder %s583, 15
        %s585 = scalar_select %p584, %s583, 15
        %s586 = smul.u32 3, %s585
        %p587 = scmp.lt.s32.totalorder %s32, 1
        %s588 = scalar_select %p587, %s32, 1
        %p589 = scmp.lt.s32.totalorder %s586, 47
        %s590 = scalar_select %p589, %s586, 47
        %s591 = smul.addr %s588, 48
        %s592 = sadd.s32 %s590, %s591
        %s593 = smul.addr %s592, 4
        %s594 = scalar_lea.vmem %s8, %s593
        %s595 = sadd.s32 %s33, 1
        %s596 = smul.u32 %s595, 16
        %p597 = scmp.lt.s32.totalorder %s596, 15
        %s598 = scalar_select %p597, %s596, 15
        %s599 = smul.u32 3, %s598
      $region60: #{ws_forward.1} parent=27 // pred_fallthru
        _
      // Predicated region
      $region61: #{ws_forward.1} parent=27 // pred_check
        %p600 = pneg %p331
      $region62: #{ws_forward.1} parent=27 // pred_check_branch
        %602 = sbr.rel (%p600) target = $region64
      $region63: #{ws_forward.1} parent=27 // pred_region
        %s603 = sadd.s32 %s33, 1
        %s604 = smul.u32 %s603, 16
        %p605 = scmp.lt.s32.totalorder %s604, 15
        %s606 = scalar_select %p605, %s604, 15
        %s607 = smul.u32 3, %s606
        %p608 = scmp.lt.s32.totalorder %s32, 1
        %s609 = scalar_select %p608, %s32, 1
        %p610 = scmp.lt.s32.totalorder %s607, 47
        %s611 = scalar_select %p610, %s607, 47
        %s612 = smul.addr %s609, 48
        %s613 = sadd.s32 %s611, %s612
        %s614 = smul.addr %s613, 4
        %s615 = scalar_lea.vmem %s9, %s614
        %s616 = sadd.s32 %s33, 1
        %s617 = smul.u32 %s616, 16
        %p618 = scmp.lt.s32.totalorder %s617, 15
        %s619 = scalar_select %p618, %s617, 15
        %s620 = smul.u32 3, %s619
      $region64: #{ws_forward.1} parent=27 // pred_fallthru
        _
    $region28: #{ws_forward.1} parent=5 // pred_fallthru
      _
    %p621 = scmp.le.s32.totalorder 1, %s25
    %p622 = scmp.lt.s32.totalorder %s25, 3
    %p623 = pnand %p621, %p622
    %p624 = pneg %p623
    // Predicated region
    $region65: #{ws_forward.1} parent=5 // pred_check
      _
    $region66: #{ws_forward.1} parent=5 // pred_check_branch
      %626 = sbr.rel (%p623) target = $region68
    $region67: #{ws_forward.1} parent=5 // pred_region
      %s627 = ssub.s32 %s25, 1
      %s628 = smul.u32 48, %s35
      %p629 = scmp.lt.s32.totalorder %s34, 1
      %s630 = scalar_select %p629, %s34, 1
      %p631 = scmp.lt.s32.totalorder %s628, 47
      %s632 = scalar_select %p631, %s628, 47
      %s633 = smul.addr %s630, 48
      %s634 = sadd.s32 %s632, %s633
      %s635 = smul.addr %s634, 4
      %s636 = scalar_lea.vmem %s1, %s635
      %p637 = pneg %p65
      %p638 = pneg %p62
      %s639 = smul.u32 48, %s35
      %p640 = scmp.lt.s32.totalorder %s34, 1
      %s641 = scalar_select %p640, %s34, 1
      %p642 = scmp.lt.s32.totalorder %s639, 47
      %s643 = scalar_select %p642, %s639, 47
      %s644 = smul.addr %s641, 48
      %s645 = sadd.s32 %s643, %s644
      %s646 = smul.addr %s645, 4
      %s647 = scalar_lea.vmem %s2, %s646
      %p648 = pneg %p93
      %p649 = pneg %p90
      %s650 = smul.u32 48, %s35
      %p651 = scmp.lt.s32.totalorder %s34, 1
      %s652 = scalar_select %p651, %s34, 1
      %p653 = scmp.lt.s32.totalorder %s650, 47
      %s654 = scalar_select %p653, %s650, 47
      %s655 = smul.addr %s652, 48
      %s656 = sadd.s32 %s654, %s655
      %s657 = smul.addr %s656, 4
      %s658 = scalar_lea.vmem %s3, %s657
      %p659 = pneg %p121
      %p660 = pneg %p118
      %s661 = smul.u32 %s35, 16
      %s662 = ssub.s32 %s661, 1
      %p663 = scmp.gt.s32.totalorder %s662, 0
      %s664 = scalar_select %p663, %s662, 0
      %s665 = smul.u32 3, %s664
      %p666 = scmp.lt.s32.totalorder %s34, 1
      %s667 = scalar_select %p666, %s34, 1
      %p668 = scmp.lt.s32.totalorder %s665, 47
      %s669 = scalar_select %p668, %s665, 47
      %s670 = smul.addr %s667, 48
      %s671 = sadd.s32 %s669, %s670
      %s672 = smul.addr %s671, 4
      %s673 = scalar_lea.vmem %s4, %s672
      %p674 = pneg %p157
      %p675 = pneg %p154
      %s676 = smul.u32 %s35, 16
      %s677 = ssub.s32 %s676, 1
      %p678 = scmp.gt.s32.totalorder %s677, 0
      %s679 = scalar_select %p678, %s677, 0
      %s680 = smul.u32 3, %s679
      %p681 = scmp.lt.s32.totalorder %s34, 1
      %s682 = scalar_select %p681, %s34, 1
      %p683 = scmp.lt.s32.totalorder %s680, 47
      %s684 = scalar_select %p683, %s680, 47
      %s685 = smul.addr %s682, 48
      %s686 = sadd.s32 %s684, %s685
      %s687 = smul.addr %s686, 4
      %s688 = scalar_lea.vmem %s5, %s687
      %p689 = pneg %p193
      %p690 = pneg %p190
      %s691 = smul.u32 %s35, 16
      %s692 = ssub.s32 %s691, 1
      %p693 = scmp.gt.s32.totalorder %s692, 0
      %s694 = scalar_select %p693, %s692, 0
      %s695 = smul.u32 3, %s694
      %p696 = scmp.lt.s32.totalorder %s34, 1
      %s697 = scalar_select %p696, %s34, 1
      %p698 = scmp.lt.s32.totalorder %s695, 47
      %s699 = scalar_select %p698, %s695, 47
      %s700 = smul.addr %s697, 48
      %s701 = sadd.s32 %s699, %s700
      %s702 = smul.addr %s701, 4
      %s703 = scalar_lea.vmem %s6, %s702
      %p704 = pneg %p229
      %p705 = pneg %p226
      %s706 = sadd.s32 %s35, 1
      %s707 = smul.u32 %s706, 16
      %p708 = scmp.lt.s32.totalorder %s707, 15
      %s709 = scalar_select %p708, %s707, 15
      %s710 = smul.u32 3, %s709
      %p711 = scmp.lt.s32.totalorder %s34, 1
      %s712 = scalar_select %p711, %s34, 1
      %p713 = scmp.lt.s32.totalorder %s710, 47
      %s714 = scalar_select %p713, %s710, 47
      %s715 = smul.addr %s712, 48
      %s716 = sadd.s32 %s714, %s715
      %s717 = smul.addr %s716, 4
      %s718 = scalar_lea.vmem %s7, %s717
      %p719 = pneg %p265
      %p720 = pneg %p262
      %s721 = sadd.s32 %s35, 1
      %s722 = smul.u32 %s721, 16
      %p723 = scmp.lt.s32.totalorder %s722, 15
      %s724 = scalar_select %p723, %s722, 15
      %s725 = smul.u32 3, %s724
      %p726 = scmp.lt.s32.totalorder %s34, 1
      %s727 = scalar_select %p726, %s34, 1
      %p728 = scmp.lt.s32.totalorder %s725, 47
      %s729 = scalar_select %p728, %s725, 47
      %s730 = smul.addr %s727, 48
      %s731 = sadd.s32 %s729, %s730
      %s732 = smul.addr %s731, 4
      %s733 = scalar_lea.vmem %s8, %s732
      %p734 = pneg %p301
      %p735 = pneg %p298
      %s736 = sadd.s32 %s35, 1
      %s737 = smul.u32 %s736, 16
      %p738 = scmp.lt.s32.totalorder %s737, 15
      %s739 = scalar_select %p738, %s737, 15
      %s740 = smul.u32 3, %s739
      %p741 = scmp.lt.s32.totalorder %s34, 1
      %s742 = scalar_select %p741, %s34, 1
      %p743 = scmp.lt.s32.totalorder %s740, 47
      %s744 = scalar_select %p743, %s740, 47
      %s745 = smul.addr %s742, 48
      %s746 = sadd.s32 %s744, %s745
      %s747 = smul.addr %s746, 4
      %s748 = scalar_lea.vmem %s9, %s747
      %p749 = pneg %p337
      %p750 = pneg %p334
      %p751 = pneg %p358
      %p752 = pneg %p355
      %p753 = pneg %p379
      %p754 = pneg %p376
      %p755 = pneg %p400
      %p756 = pneg %p397
      %p757 = pneg %p428
      %p758 = pneg %p425
      %s759 = smul.u32 48, %s35
      %p760 = scmp.lt.s32.totalorder %s34, 1
      %s761 = scalar_select %p760, %s34, 1
      %p762 = scmp.lt.s32.totalorder %s759, 47
      %s763 = scalar_select %p762, %s759, 47
      %s764 = smul.addr %s761, 48
      %s765 = sadd.s32 %s763, %s764
      %s766 = smul.addr %s765, 4
      %s767 = scalar_lea.vmem %s13, %s766
      %s768 = smul.u32 48, %s35
      %p769 = scmp.lt.s32.totalorder %s34, 1
      %s770 = scalar_select %p769, %s34, 1
      %p771 = scmp.lt.s32.totalorder %s768, 47
      %s772 = scalar_select %p771, %s768, 47
      %s773 = smul.addr %s770, 48
      %s774 = sadd.s32 %s772, %s773
      %s775 = smul.addr %s774, 4
      %s776 = scalar_lea.vmem %s1, %s775
      %s777 = smul.u32 48, %s35
      %s778 = smul.u32 48, %s35
      %p779 = scmp.lt.s32.totalorder %s34, 1
      %s780 = scalar_select %p779, %s34, 1
      %p781 = scmp.lt.s32.totalorder %s778, 47
      %s782 = scalar_select %p781, %s778, 47
      %s783 = smul.addr %s780, 48
      %s784 = sadd.s32 %s782, %s783
      %s785 = smul.addr %s784, 4
      %s786 = scalar_lea.vmem %s2, %s785
      %s787 = smul.u32 48, %s35
      %s788 = smul.u32 48, %s35
      %p789 = scmp.lt.s32.totalorder %s34, 1
      %s790 = scalar_select %p789, %s34, 1
      %p791 = scmp.lt.s32.totalorder %s788, 47
      %s792 = scalar_select %p791, %s788, 47
      %s793 = smul.addr %s790, 48
      %s794 = sadd.s32 %s792, %s793
      %s795 = smul.addr %s794, 4
      %s796 = scalar_lea.vmem %s3, %s795
      %s797 = smul.u32 48, %s35
      %s798 = smul.u32 %s35, 16
      %s799 = ssub.s32 %s798, 1
      %p800 = scmp.gt.s32.totalorder %s799, 0
      %s801 = scalar_select %p800, %s799, 0
      %s802 = smul.u32 3, %s801
      %p803 = scmp.lt.s32.totalorder %s34, 1
      %s804 = scalar_select %p803, %s34, 1
      %p805 = scmp.lt.s32.totalorder %s802, 47
      %s806 = scalar_select %p805, %s802, 47
      %s807 = smul.addr %s804, 48
      %s808 = sadd.s32 %s806, %s807
      %s809 = smul.addr %s808, 4
      %s810 = scalar_lea.vmem %s4, %s809
      %s811 = smul.u32 %s35, 16
      %s812 = ssub.s32 %s811, 1
      %p813 = scmp.gt.s32.totalorder %s812, 0
      %s814 = scalar_select %p813, %s812, 0
      %s815 = smul.u32 3, %s814
      %s816 = smul.u32 %s35, 16
      %s817 = ssub.s32 %s816, 1
      %p818 = scmp.gt.s32.totalorder %s817, 0
      %s819 = scalar_select %p818, %s817, 0
      %s820 = smul.u32 3, %s819
      %p821 = scmp.lt.s32.totalorder %s34, 1
      %s822 = scalar_select %p821, %s34, 1
      %p823 = scmp.lt.s32.totalorder %s820, 47
      %s824 = scalar_select %p823, %s820, 47
      %s825 = smul.addr %s822, 48
      %s826 = sadd.s32 %s824, %s825
      %s827 = smul.addr %s826, 4
      %s828 = scalar_lea.vmem %s5, %s827
      %s829 = smul.u32 %s35, 16
      %s830 = ssub.s32 %s829, 1
      %p831 = scmp.gt.s32.totalorder %s830, 0
      %s832 = scalar_select %p831, %s830, 0
      %s833 = smul.u32 3, %s832
      %s834 = smul.u32 %s35, 16
      %s835 = ssub.s32 %s834, 1
      %p836 = scmp.gt.s32.totalorder %s835, 0
      %s837 = scalar_select %p836, %s835, 0
      %s838 = smul.u32 3, %s837
      %p839 = scmp.lt.s32.totalorder %s34, 1
      %s840 = scalar_select %p839, %s34, 1
      %p841 = scmp.lt.s32.totalorder %s838, 47
      %s842 = scalar_select %p841, %s838, 47
      %s843 = smul.addr %s840, 48
      %s844 = sadd.s32 %s842, %s843
      %s845 = smul.addr %s844, 4
      %s846 = scalar_lea.vmem %s6, %s845
      %s847 = smul.u32 %s35, 16
      %s848 = ssub.s32 %s847, 1
      %p849 = scmp.gt.s32.totalorder %s848, 0
      %s850 = scalar_select %p849, %s848, 0
      %s851 = smul.u32 3, %s850
      %s852 = sadd.s32 %s35, 1
      %s853 = smul.u32 %s852, 16
      %p854 = scmp.lt.s32.totalorder %s853, 15
      %s855 = scalar_select %p854, %s853, 15
      %s856 = smul.u32 3, %s855
      %p857 = scmp.lt.s32.totalorder %s34, 1
      %s858 = scalar_select %p857, %s34, 1
      %p859 = scmp.lt.s32.totalorder %s856, 47
      %s860 = scalar_select %p859, %s856, 47
      %s861 = smul.addr %s858, 48
      %s862 = sadd.s32 %s860, %s861
      %s863 = smul.addr %s862, 4
      %s864 = scalar_lea.vmem %s7, %s863
      %s865 = sadd.s32 %s35, 1
      %s866 = smul.u32 %s865, 16
      %p867 = scmp.lt.s32.totalorder %s866, 15
      %s868 = scalar_select %p867, %s866, 15
      %s869 = smul.u32 3, %s868
      %s870 = sadd.s32 %s35, 1
      %s871 = smul.u32 %s870, 16
      %p872 = scmp.lt.s32.totalorder %s871, 15
      %s873 = scalar_select %p872, %s871, 15
      %s874 = smul.u32 3, %s873
      %p875 = scmp.lt.s32.totalorder %s34, 1
      %s876 = scalar_select %p875, %s34, 1
      %p877 = scmp.lt.s32.totalorder %s874, 47
      %s878 = scalar_select %p877, %s874, 47
      %s879 = smul.addr %s876, 48
      %s880 = sadd.s32 %s878, %s879
      %s881 = smul.addr %s880, 4
      %s882 = scalar_lea.vmem %s8, %s881
      %s883 = sadd.s32 %s35, 1
      %s884 = smul.u32 %s883, 16
      %p885 = scmp.lt.s32.totalorder %s884, 15
      %s886 = scalar_select %p885, %s884, 15
      %s887 = smul.u32 3, %s886
      %s888 = sadd.s32 %s35, 1
      %s889 = smul.u32 %s888, 16
      %p890 = scmp.lt.s32.totalorder %s889, 15
      %s891 = scalar_select %p890, %s889, 15
      %s892 = smul.u32 3, %s891
      %p893 = scmp.lt.s32.totalorder %s34, 1
      %s894 = scalar_select %p893, %s34, 1
      %p895 = scmp.lt.s32.totalorder %s892, 47
      %s896 = scalar_select %p895, %s892, 47
      %s897 = smul.addr %s894, 48
      %s898 = sadd.s32 %s896, %s897
      %s899 = smul.addr %s898, 4
      %s900 = scalar_lea.vmem %s9, %s899
      %s901 = sadd.s32 %s35, 1
      %s902 = smul.u32 %s901, 16
      %p903 = scmp.lt.s32.totalorder %s902, 15
      %s904 = scalar_select %p903, %s902, 15
      %s905 = smul.u32 3, %s904
      %s906 = smul.u32 48, %s35
      %p907 = scmp.lt.s32.totalorder %s34, 1
      %s908 = scalar_select %p907, %s34, 1
      %p909 = scmp.lt.s32.totalorder %s906, 47
      %s910 = scalar_select %p909, %s906, 47
      %s911 = smul.addr %s908, 48
      %s912 = sadd.s32 %s910, %s911
      %s913 = smul.addr %s912, 4
      %s914 = scalar_lea.vmem %s13, %s913
      %s915 = smul.u32 48, %s35
      %s917 = sld [smem:[#allocation6 + $0x1]]
      %s918 = sld [smem:[#allocation6 + $0x2]]
      %v919 = vld [vmem:[%s786] sm:$0xf]
      %v920 = vld [vmem:[%s786 + $0x4] sm:$0xf]
      %v921 = vld [vmem:[%s786 + $0x8] sm:$0xf]
      %v922 = vld [vmem:[%s786 + $0xc] sm:$0xf]
      %v923 = vld [vmem:[%s786 + $0x10] sm:$0xf]
      %v924 = vld [vmem:[%s786 + $0x14] sm:$0xf]
      %v925 = vld [vmem:[%s786 + $0x18] sm:$0xf]
      %v926 = vld [vmem:[%s786 + $0x1c] sm:$0xf]
      %v927 = vld [vmem:[%s786 + $0x20] sm:$0xf]
      %v928 = vld [vmem:[%s786 + $0x24] sm:$0xf]
      %v929 = vld [vmem:[%s786 + $0x28] sm:$0xf]
      %v930 = vld [vmem:[%s786 + $0x2c] sm:$0xf]
      %v931 = vld [vmem:[%s786 + $0x30] sm:$0xf]
      %v932 = vld [vmem:[%s786 + $0x34] sm:$0xf]
      %v933 = vld [vmem:[%s786 + $0x38] sm:$0xf]
      %v934 = vld [vmem:[%s786 + $0x3c] sm:$0xf]
      %v935 = vld [vmem:[%s786 + $0x40] sm:$0xf]
      %v936 = vld [vmem:[%s786 + $0x44] sm:$0xf]
      %v937 = vld [vmem:[%s786 + $0x48] sm:$0xf]
      %v938 = vld [vmem:[%s786 + $0x4c] sm:$0xf]
      %v939 = vld [vmem:[%s786 + $0x50] sm:$0xf]
      %v940 = vld [vmem:[%s786 + $0x54] sm:$0xf]
      %v941 = vld [vmem:[%s786 + $0x58] sm:$0xf]
      %v942 = vld [vmem:[%s786 + $0x5c] sm:$0xf]
      %v943 = vld [vmem:[%s786 + $0x60] sm:$0xf]
      %v944 = vld [vmem:[%s786 + $0x64] sm:$0xf]
      %v945 = vld [vmem:[%s786 + $0x68] sm:$0xf]
      %v946 = vld [vmem:[%s786 + $0x6c] sm:$0xf]
      %v947 = vld [vmem:[%s786 + $0x70] sm:$0xf]
      %v948 = vld [vmem:[%s786 + $0x74] sm:$0xf]
      %v949 = vld [vmem:[%s786 + $0x78] sm:$0xf]
      %v950 = vld [vmem:[%s786 + $0x7c] sm:$0xf]
      %v951 = vld [vmem:[%s786 + $0x80] sm:$0xf]
      %v952 = vld [vmem:[%s786 + $0x84] sm:$0xf]
      %v953 = vld [vmem:[%s786 + $0x88] sm:$0xf]
      %v954 = vld [vmem:[%s786 + $0x8c] sm:$0xf]
      %v955 = vld [vmem:[%s786 + $0x90] sm:$0xf]
      %v956 = vld [vmem:[%s786 + $0x94] sm:$0xf]
      %v957 = vld [vmem:[%s786 + $0x98] sm:$0xf]
      %v958 = vld [vmem:[%s786 + $0x9c] sm:$0xf]
      %v959 = vld [vmem:[%s786 + $0xa0] sm:$0xf]
      %v960 = vld [vmem:[%s786 + $0xa4] sm:$0xf]
      %v961 = vld [vmem:[%s786 + $0xa8] sm:$0xf]
      %v962 = vld [vmem:[%s786 + $0xac] sm:$0xf]
      %v963 = vld [vmem:[%s786 + $0xb0] sm:$0xf]
      %v964 = vld [vmem:[%s786 + $0xb4] sm:$0xf]
      %v965 = vld [vmem:[%s786 + $0xb8] sm:$0xf]
      %v966 = vld [vmem:[%s786 + $0xbc] sm:$0xf]
      %v967 = vld [vmem:[%s776] sm:$0xf]
      %v968 = vld [vmem:[%s776 + $0x4] sm:$0xf]
      %v969 = vld [vmem:[%s776 + $0x8] sm:$0xf]
      %v970 = vld [vmem:[%s776 + $0xc] sm:$0xf]
      %v971 = vld [vmem:[%s776 + $0x10] sm:$0xf]
      %v972 = vld [vmem:[%s776 + $0x14] sm:$0xf]
      %v973 = vld [vmem:[%s776 + $0x18] sm:$0xf]
      %v974 = vld [vmem:[%s776 + $0x1c] sm:$0xf]
      %v975 = vld [vmem:[%s776 + $0x20] sm:$0xf]
      %v976 = vld [vmem:[%s776 + $0x24] sm:$0xf]
      %v977 = vld [vmem:[%s776 + $0x28] sm:$0xf]
      %v978 = vld [vmem:[%s776 + $0x2c] sm:$0xf]
      %v979 = vld [vmem:[%s776 + $0x30] sm:$0xf]
      %v980 = vld [vmem:[%s776 + $0x34] sm:$0xf]
      %v981 = vld [vmem:[%s776 + $0x38] sm:$0xf]
      %v982 = vld [vmem:[%s776 + $0x3c] sm:$0xf]
      %v983 = vld [vmem:[%s776 + $0x40] sm:$0xf]
      %v984 = vld [vmem:[%s776 + $0x44] sm:$0xf]
      %v985 = vld [vmem:[%s776 + $0x48] sm:$0xf]
      %v986 = vld [vmem:[%s776 + $0x4c] sm:$0xf]
      %v987 = vld [vmem:[%s776 + $0x50] sm:$0xf]
      %v988 = vld [vmem:[%s776 + $0x54] sm:$0xf]
      %v989 = vld [vmem:[%s776 + $0x58] sm:$0xf]
      %v990 = vld [vmem:[%s776 + $0x5c] sm:$0xf]
      %v991 = vld [vmem:[%s776 + $0x60] sm:$0xf]
      %v992 = vld [vmem:[%s776 + $0x64] sm:$0xf]
      %v993 = vld [vmem:[%s776 + $0x68] sm:$0xf]
      %v994 = vld [vmem:[%s776 + $0x6c] sm:$0xf]
      %v995 = vld [vmem:[%s776 + $0x70] sm:$0xf]
      %v996 = vld [vmem:[%s776 + $0x74] sm:$0xf]
      %v997 = vld [vmem:[%s776 + $0x78] sm:$0xf]
      %v998 = vld [vmem:[%s776 + $0x7c] sm:$0xf]
      %v999 = vld [vmem:[%s776 + $0x80] sm:$0xf]
      %v1000 = vld [vmem:[%s776 + $0x84] sm:$0xf]
      %v1001 = vld [vmem:[%s776 + $0x88] sm:$0xf]
      %v1002 = vld [vmem:[%s776 + $0x8c] sm:$0xf]
      %v1003 = vld [vmem:[%s776 + $0x90] sm:$0xf]
      %v1004 = vld [vmem:[%s776 + $0x94] sm:$0xf]
      %v1005 = vld [vmem:[%s776 + $0x98] sm:$0xf]
      %v1006 = vld [vmem:[%s776 + $0x9c] sm:$0xf]
      %v1007 = vld [vmem:[%s776 + $0xa0] sm:$0xf]
      %v1008 = vld [vmem:[%s776 + $0xa4] sm:$0xf]
      %v1009 = vld [vmem:[%s776 + $0xa8] sm:$0xf]
      %v1010 = vld [vmem:[%s776 + $0xac] sm:$0xf]
      %v1011 = vld [vmem:[%s776 + $0xb0] sm:$0xf]
      %v1012 = vld [vmem:[%s776 + $0xb4] sm:$0xf]
      %v1013 = vld [vmem:[%s776 + $0xb8] sm:$0xf]
      %v1014 = vld [vmem:[%s776 + $0xbc] sm:$0xf]
      %v1015 = vld [vmem:[%s796] sm:$0xf]
      %v1016 = vld [vmem:[%s796 + $0x4] sm:$0xf]
      %v1017 = vld [vmem:[%s796 + $0x8] sm:$0xf]
      %v1018 = vld [vmem:[%s796 + $0xc] sm:$0xf]
      %v1019 = vld [vmem:[%s796 + $0x10] sm:$0xf]
      %v1020 = vld [vmem:[%s796 + $0x14] sm:$0xf]
      %v1021 = vld [vmem:[%s796 + $0x18] sm:$0xf]
      %v1022 = vld [vmem:[%s796 + $0x1c] sm:$0xf]
      %v1023 = vld [vmem:[%s796 + $0x20] sm:$0xf]
      %v1024 = vld [vmem:[%s796 + $0x24] sm:$0xf]
      %v1025 = vld [vmem:[%s796 + $0x28] sm:$0xf]
      %v1026 = vld [vmem:[%s796 + $0x2c] sm:$0xf]
      %v1027 = vld [vmem:[%s796 + $0x30] sm:$0xf]
      %v1028 = vld [vmem:[%s796 + $0x34] sm:$0xf]
      %v1029 = vld [vmem:[%s796 + $0x38] sm:$0xf]
      %v1030 = vld [vmem:[%s796 + $0x3c] sm:$0xf]
      %v1031 = vld [vmem:[%s796 + $0x40] sm:$0xf]
      %v1032 = vld [vmem:[%s796 + $0x44] sm:$0xf]
      %v1033 = vld [vmem:[%s796 + $0x48] sm:$0xf]
      %v1034 = vld [vmem:[%s796 + $0x4c] sm:$0xf]
      %v1035 = vld [vmem:[%s796 + $0x50] sm:$0xf]
      %v1036 = vld [vmem:[%s796 + $0x54] sm:$0xf]
      %v1037 = vld [vmem:[%s796 + $0x58] sm:$0xf]
      %v1038 = vld [vmem:[%s796 + $0x5c] sm:$0xf]
      %v1039 = vld [vmem:[%s796 + $0x60] sm:$0xf]
      %v1040 = vld [vmem:[%s796 + $0x64] sm:$0xf]
      %v1041 = vld [vmem:[%s796 + $0x68] sm:$0xf]
      %v1042 = vld [vmem:[%s796 + $0x6c] sm:$0xf]
      %v1043 = vld [vmem:[%s796 + $0x70] sm:$0xf]
      %v1044 = vld [vmem:[%s796 + $0x74] sm:$0xf]
      %v1045 = vld [vmem:[%s796 + $0x78] sm:$0xf]
      %v1046 = vld [vmem:[%s796 + $0x7c] sm:$0xf]
      %v1047 = vld [vmem:[%s796 + $0x80] sm:$0xf]
      %v1048 = vld [vmem:[%s796 + $0x84] sm:$0xf]
      %v1049 = vld [vmem:[%s796 + $0x88] sm:$0xf]
      %v1050 = vld [vmem:[%s796 + $0x8c] sm:$0xf]
      %v1051 = vld [vmem:[%s796 + $0x90] sm:$0xf]
      %v1052 = vld [vmem:[%s796 + $0x94] sm:$0xf]
      %v1053 = vld [vmem:[%s796 + $0x98] sm:$0xf]
      %v1054 = vld [vmem:[%s796 + $0x9c] sm:$0xf]
      %v1055 = vld [vmem:[%s796 + $0xa0] sm:$0xf]
      %v1056 = vld [vmem:[%s796 + $0xa4] sm:$0xf]
      %v1057 = vld [vmem:[%s796 + $0xa8] sm:$0xf]
      %v1058 = vld [vmem:[%s796 + $0xac] sm:$0xf]
      %v1059 = vld [vmem:[%s796 + $0xb0] sm:$0xf]
      %v1060 = vld [vmem:[%s796 + $0xb4] sm:$0xf]
      %v1061 = vld [vmem:[%s796 + $0xb8] sm:$0xf]
      %v1062 = vld [vmem:[%s796 + $0xbc] sm:$0xf]
      %v1063 = vld [vmem:[%s10] sm:$0xf]
      %v1064 = vld [vmem:[%s10 + $0x4] sm:$0xf]
      %v1065 = vld [vmem:[%s10 + $0x8] sm:$0xf]
      %v1066 = vld [vmem:[%s10 + $0xc] sm:$0xf]
      %v1067 = vld [vmem:[%s10 + $0x10] sm:$0xf]
      %v1068 = vld [vmem:[%s10 + $0x14] sm:$0xf]
      %v1069 = vld [vmem:[%s10 + $0x18] sm:$0xf]
      %v1070 = vld [vmem:[%s10 + $0x1c] sm:$0xf]
      %v1071 = vld [vmem:[%s10 + $0x20] sm:$0xf]
      %v1072 = vld [vmem:[%s10 + $0x24] sm:$0xf]
      %v1073 = vld [vmem:[%s10 + $0x28] sm:$0xf]
      %v1074 = vld [vmem:[%s10 + $0x2c] sm:$0xf]
      %v1075 = vld [vmem:[%s10 + $0x30] sm:$0xf]
      %v1076 = vld [vmem:[%s10 + $0x34] sm:$0xf]
      %v1077 = vld [vmem:[%s10 + $0x38] sm:$0xf]
      %v1078 = vld [vmem:[%s10 + $0x3c] sm:$0xf]
      %v1079 = vunpack.c.l.bf16 %v967
      %v1080 = vunpack.c.l.bf16 %v968
      %v1081 = vunpack.c.l.bf16 %v969
      %v1082 = vunpack.c.l.bf16 %v970
      %v1083 = vunpack.c.l.bf16 %v971
      %v1084 = vunpack.c.l.bf16 %v972
      %v1085 = vunpack.c.l.bf16 %v973
      %v1086 = vunpack.c.l.bf16 %v974
      %v1087 = vunpack.c.l.bf16 %v975
      %v1088 = vunpack.c.l.bf16 %v976
      %v1089 = vunpack.c.l.bf16 %v977
      %v1090 = vunpack.c.l.bf16 %v978
      %v1091 = vunpack.c.l.bf16 %v979
      %v1092 = vunpack.c.l.bf16 %v980
      %v1093 = vunpack.c.l.bf16 %v981
      %v1094 = vunpack.c.l.bf16 %v982
      %v1095 = vunpack.c.l.bf16 %v983
      %v1096 = vunpack.c.l.bf16 %v984
      %v1097 = vunpack.c.l.bf16 %v985
      %v1098 = vunpack.c.l.bf16 %v986
      %v1099 = vunpack.c.l.bf16 %v987
      %v1100 = vunpack.c.l.bf16 %v988
      %v1101 = vunpack.c.l.bf16 %v989
      %v1102 = vunpack.c.l.bf16 %v990
      %v1103 = vunpack.c.l.bf16 %v991
      %v1104 = vunpack.c.l.bf16 %v992
      %v1105 = vunpack.c.l.bf16 %v993
      %v1106 = vunpack.c.l.bf16 %v994
      %v1107 = vunpack.c.l.bf16 %v995
      %v1108 = vunpack.c.l.bf16 %v996
      %v1109 = vunpack.c.l.bf16 %v997
      %v1110 = vunpack.c.l.bf16 %v998
      %v1111 = vunpack.c.l.bf16 %v999
      %v1112 = vunpack.c.l.bf16 %v1000
      %v1113 = vunpack.c.l.bf16 %v1001
      %v1114 = vunpack.c.l.bf16 %v1002
      %v1115 = vunpack.c.l.bf16 %v1003
      %v1116 = vunpack.c.l.bf16 %v1004
      %v1117 = vunpack.c.l.bf16 %v1005
      %v1118 = vunpack.c.l.bf16 %v1006
      %v1119 = vunpack.c.l.bf16 %v1007
      %v1120 = vunpack.c.l.bf16 %v1008
      %v1121 = vunpack.c.l.bf16 %v1009
      %v1122 = vunpack.c.l.bf16 %v1010
      %v1123 = vunpack.c.l.bf16 %v1011
      %v1124 = vunpack.c.l.bf16 %v1012
      %v1125 = vunpack.c.l.bf16 %v1013
      %v1126 = vunpack.c.l.bf16 %v1014
      %v1127 = vstv %s917
      %v1128 = vmul.f32 %v1127, %v1079
      %v1129 = vmul.f32 %v1127, %v1080
      %v1130 = vmul.f32 %v1127, %v1081
      %v1131 = vmul.f32 %v1127, %v1082
      %v1132 = vmul.f32 %v1127, %v1083
      %v1133 = vmul.f32 %v1127, %v1084
      %v1134 = vmul.f32 %v1127, %v1085
      %v1135 = vmul.f32 %v1127, %v1086
      %v1136 = vmul.f32 %v1127, %v1087
      %v1137 = vmul.f32 %v1127, %v1088
      %v1138 = vmul.f32 %v1127, %v1089
      %v1139 = vmul.f32 %v1127, %v1090
      %v1140 = vmul.f32 %v1127, %v1091
      %v1141 = vmul.f32 %v1127, %v1092
      %v1142 = vmul.f32 %v1127, %v1093
      %v1143 = vmul.f32 %v1127, %v1094
      %v1144 = vmul.f32 %v1127, %v1095
      %v1145 = vmul.f32 %v1127, %v1096
      %v1146 = vmul.f32 %v1127, %v1097
      %v1147 = vmul.f32 %v1127, %v1098
      %v1148 = vmul.f32 %v1127, %v1099
      %v1149 = vmul.f32 %v1127, %v1100
      %v1150 = vmul.f32 %v1127, %v1101
      %v1151 = vmul.f32 %v1127, %v1102
      %v1152 = vmul.f32 %v1127, %v1103
      %v1153 = vmul.f32 %v1127, %v1104
      %v1154 = vmul.f32 %v1127, %v1105
      %v1155 = vmul.f32 %v1127, %v1106
      %v1156 = vmul.f32 %v1127, %v1107
      %v1157 = vmul.f32 %v1127, %v1108
      %v1158 = vmul.f32 %v1127, %v1109
      %v1159 = vmul.f32 %v1127, %v1110
      %v1160 = vmul.f32 %v1127, %v1111
      %v1161 = vmul.f32 %v1127, %v1112
      %v1162 = vmul.f32 %v1127, %v1113
      %v1163 = vmul.f32 %v1127, %v1114
      %v1164 = vmul.f32 %v1127, %v1115
      %v1165 = vmul.f32 %v1127, %v1116
      %v1166 = vmul.f32 %v1127, %v1117
      %v1167 = vmul.f32 %v1127, %v1118
      %v1168 = vmul.f32 %v1127, %v1119
      %v1169 = vmul.f32 %v1127, %v1120
      %v1170 = vmul.f32 %v1127, %v1121
      %v1171 = vmul.f32 %v1127, %v1122
      %v1172 = vmul.f32 %v1127, %v1123
      %v1173 = vmul.f32 %v1127, %v1124
      %v1174 = vmul.f32 %v1127, %v1125
      %v1175 = vmul.f32 %v1127, %v1126
      %v1224 = vunpack.c.l.b16 %v919
      %v1225 = vunpack.c.l.b16 %v920
      %v1226 = vunpack.c.l.b16 %v921
      %v1227 = vunpack.c.l.b16 %v922
      %v1228 = vunpack.c.l.b16 %v923
      %v1229 = vunpack.c.l.b16 %v924
      %v1230 = vunpack.c.l.b16 %v925
      %v1231 = vunpack.c.l.b16 %v926
      %v1232 = vunpack.c.l.b16 %v927
      %v1233 = vunpack.c.l.b16 %v928
      %v1234 = vunpack.c.l.b16 %v929
      %v1235 = vunpack.c.l.b16 %v930
      %v1236 = vunpack.c.l.b16 %v931
      %v1237 = vunpack.c.l.b16 %v932
      %v1238 = vunpack.c.l.b16 %v933
      %v1239 = vunpack.c.l.b16 %v934
      %v1240 = vunpack.c.l.b16 %v935
      %v1241 = vunpack.c.l.b16 %v936
      %v1242 = vunpack.c.l.b16 %v937
      %v1243 = vunpack.c.l.b16 %v938
      %v1244 = vunpack.c.l.b16 %v939
      %v1245 = vunpack.c.l.b16 %v940
      %v1246 = vunpack.c.l.b16 %v941
      %v1247 = vunpack.c.l.b16 %v942
      %v1248 = vunpack.c.l.b16 %v943
      %v1249 = vunpack.c.l.b16 %v944
      %v1250 = vunpack.c.l.b16 %v945
      %v1251 = vunpack.c.l.b16 %v946
      %v1252 = vunpack.c.l.b16 %v947
      %v1253 = vunpack.c.l.b16 %v948
      %v1254 = vunpack.c.l.b16 %v949
      %v1255 = vunpack.c.l.b16 %v950
      %v1256 = vunpack.c.l.b16 %v951
      %v1257 = vunpack.c.l.b16 %v952
      %v1258 = vunpack.c.l.b16 %v953
      %v1259 = vunpack.c.l.b16 %v954
      %v1260 = vunpack.c.l.b16 %v955
      %v1261 = vunpack.c.l.b16 %v956
      %v1262 = vunpack.c.l.b16 %v957
      %v1263 = vunpack.c.l.b16 %v958
      %v1264 = vunpack.c.l.b16 %v959
      %v1265 = vunpack.c.l.b16 %v960
      %v1266 = vunpack.c.l.b16 %v961
      %v1267 = vunpack.c.l.b16 %v962
      %v1268 = vunpack.c.l.b16 %v963
      %v1269 = vunpack.c.l.b16 %v964
      %v1270 = vunpack.c.l.b16 %v965
      %v1271 = vunpack.c.l.b16 %v966
      %v1272 = vpack.c.b16 %v1225, %v1224
      %v1273 = vpack.c.b16 %v1227, %v1226
      %v1274 = vpack.c.b16 %v1229, %v1228
      %v1275 = vpack.c.b16 %v1231, %v1230
      %v1276 = vpack.c.b16 %v1233, %v1232
      %v1277 = vpack.c.b16 %v1235, %v1234
      %v1278 = vpack.c.b16 %v1237, %v1236
      %v1279 = vpack.c.b16 %v1239, %v1238
      %v1280 = vpack.c.b16 %v1241, %v1240
      %v1281 = vpack.c.b16 %v1243, %v1242
      %v1282 = vpack.c.b16 %v1245, %v1244
      %v1283 = vpack.c.b16 %v1247, %v1246
      %v1284 = vpack.c.b16 %v1249, %v1248
      %v1285 = vpack.c.b16 %v1251, %v1250
      %v1286 = vpack.c.b16 %v1253, %v1252
      %v1287 = vpack.c.b16 %v1255, %v1254
      %v1288 = vpack.c.b16 %v1257, %v1256
      %v1289 = vpack.c.b16 %v1259, %v1258
      %v1290 = vpack.c.b16 %v1261, %v1260
      %v1291 = vpack.c.b16 %v1263, %v1262
      %v1292 = vpack.c.b16 %v1265, %v1264
      %v1293 = vpack.c.b16 %v1267, %v1266
      %v1294 = vpack.c.b16 %v1269, %v1268
      %v1295 = vpack.c.b16 %v1271, %v1270
      %v1336 = vunpack.c.l.b16 %v1063
      %v1337 = vunpack.c.l.b16 %v1064
      %v1338 = vunpack.c.l.b16 %v1065
      %v1339 = vunpack.c.l.b16 %v1066
      %v1340 = vunpack.c.l.b16 %v1067
      %v1341 = vunpack.c.l.b16 %v1068
      %v1342 = vunpack.c.l.b16 %v1069
      %v1343 = vunpack.c.l.b16 %v1070
      %v1344 = vunpack.c.l.b16 %v1071
      %v1345 = vunpack.c.l.b16 %v1072
      %v1346 = vunpack.c.l.b16 %v1073
      %v1347 = vunpack.c.l.b16 %v1074
      %v1348 = vunpack.c.l.b16 %v1075
      %v1349 = vunpack.c.l.b16 %v1076
      %v1350 = vunpack.c.l.b16 %v1077
      %v1351 = vunpack.c.l.b16 %v1078
      %v1352 = vpack.c.b16 %v1337, %v1336
      %v1353 = vpack.c.b16 %v1339, %v1338
      %v1354 = vpack.c.b16 %v1341, %v1340
      %v1355 = vpack.c.b16 %v1343, %v1342
      %v1356 = vpack.c.b16 %v1345, %v1344
      %v1357 = vpack.c.b16 %v1347, %v1346
      %v1358 = vpack.c.b16 %v1349, %v1348
      %v1359 = vpack.c.b16 %v1351, %v1350
      %1368 = vmatprep.subr.bf16.mxu0 0
      %1369 = vmatpush1.bf16.msra.mxu0 %v1352
      %1370 = vmatprep.subr.bf16.mxu0 0
      %1371 = vmatpush1.bf16.msra.mxu0 %v1353
      %1372 = vmatprep.subr.bf16.mxu0 0
      %1373 = vmatpush1.bf16.msra.mxu0 %v1354
      %1374 = vmatprep.subr.bf16.mxu0 0
      %1375 = vmatpush1.bf16.msra.mxu0 %v1355
      %1376 = vmatprep.subr.bf16.mxu0 0
      %1377 = vmatpush1.bf16.msra.mxu0 %v1356
      %1378 = vmatprep.subr.bf16.mxu0 0
      %1379 = vmatpush1.bf16.msra.mxu0 %v1357
      %1380 = vmatprep.subr.bf16.mxu0 0
      %1381 = vmatpush1.bf16.msra.mxu0 %v1358
      %1382 = vmatprep.subr.bf16.mxu0 0
      %1383 = vmatpush1.bf16.msra.mxu0 %v1359
      %1384 = vmatprep.subr.bf16.mxu0 0
      %1385 = vmatpush1.bf16.msra.mxu0 0
      %1386 = vmatprep.subr.bf16.mxu0 0
      %1387 = vmatpush1.bf16.msra.mxu0 0
      %1388 = vmatprep.subr.bf16.mxu0 0
      %1389 = vmatpush1.bf16.msra.mxu0 0
      %1390 = vmatprep.subr.bf16.mxu0 0
      %1391 = vmatpush1.bf16.msra.mxu0 0
      %1392 = vmatprep.subr.bf16.mxu0 0
      %1393 = vmatpush1.bf16.msra.mxu0 0
      %1394 = vmatprep.subr.bf16.mxu0 0
      %1395 = vmatpush1.bf16.msra.mxu0 0
      %1396 = vmatprep.subr.bf16.mxu0 0
      %1397 = vmatpush1.bf16.msra.mxu0 0
      %1398 = vmatprep.subr.bf16.mxu0 0
      %1399 = vmatpush1.bf16.msra.mxu0 0
      %1400 = vmatprep.mubr.bf16.mxu0 0
      %1401 = vmatmul.mubr.bf16.gmra.mrb[0].mxu0 %v1272
      %v1402 = vpop.f32.mrb[0].mxu0
      %v1403 = vadd.f32 %v1128, %v1402
      %v1404 = vpop.f32.mrb[0].mxu0
      %v1405 = vpop.f32.mrb[0].mxu0
      %v1406 = vadd.f32 %v1129, %v1405
      %v1407 = vpop.f32.mrb[0].mxu0
      %1408 = vmatprep.mubr.bf16.mxu0 0
      %1409 = vmatmul.mubr.bf16.gmra.mrb[0].mxu0 %v1273
      %v1410 = vpop.f32.mrb[0].mxu0
      %v1411 = vadd.f32 %v1130, %v1410
      %v1412 = vpop.f32.mrb[0].mxu0
      %v1413 = vpop.f32.mrb[0].mxu0
      %v1414 = vadd.f32 %v1131, %v1413
      %v1415 = vpop.f32.mrb[0].mxu0
      %1416 = vmatprep.mubr.bf16.mxu0 0
      %1417 = vmatmul.mubr.bf16.gmra.mrb[0].mxu0 %v1274
      %v1418 = vpop.f32.mrb[0].mxu0
      %v1419 = vadd.f32 %v1132, %v1418
      %v1420 = vpop.f32.mrb[0].mxu0
      %v1421 = vpop.f32.mrb[0].mxu0
      %v1422 = vadd.f32 %v1133, %v1421
      %v1423 = vpop.f32.mrb[0].mxu0
      %1424 = vmatprep.mubr.bf16.mxu0 0
      %1425 = vmatmul.mubr.bf16.gmra.mrb[0].mxu0 %v1275
      %v1426 = vpop.f32.mrb[0].mxu0
      %v1427 = vadd.f32 %v1134, %v1426
      %v1428 = vpop.f32.mrb[0].mxu0
      %v1429 = vpop.f32.mrb[0].mxu0
      %v1430 = vadd.f32 %v1135, %v1429
      %v1431 = vpop.f32.mrb[0].mxu0
      %1432 = vmatprep.mubr.bf16.mxu0 0
      %1433 = vmatmul.mubr.bf16.gmra.mrb[0].mxu0 %v1276
      %v1434 = vpop.f32.mrb[0].mxu0
      %v1435 = vadd.f32 %v1136, %v1434
      %v1436 = vpop.f32.mrb[0].mxu0
      %v1437 = vpop.f32.mrb[0].mxu0
      %v1438 = vadd.f32 %v1137, %v1437
      %v1439 = vpop.f32.mrb[0].mxu0
      %1440 = vmatprep.mubr.bf16.mxu0 0
      %1441 = vmatmul.mubr.bf16.gmra.mrb[0].mxu0 %v1277
      %v1442 = vpop.f32.mrb[0].mxu0
      %v1443 = vadd.f32 %v1138, %v1442
      %v1444 = vpop.f32.mrb[0].mxu0
      %v1445 = vpop.f32.mrb[0].mxu0
      %v1446 = vadd.f32 %v1139, %v1445
      %v1447 = vpop.f32.mrb[0].mxu0
      %1448 = vmatprep.mubr.bf16.mxu0 0
      %1449 = vmatmul.mubr.bf16.gmra.mrb[0].mxu0 %v1278
      %v1450 = vpop.f32.mrb[0].mxu0
      %v1451 = vadd.f32 %v1140, %v1450
      %v1452 = vpop.f32.mrb[0].mxu0
      %v1453 = vpop.f32.mrb[0].mxu0
      %v1454 = vadd.f32 %v1141, %v1453
      %v1455 = vpop.f32.mrb[0].mxu0
      %1456 = vmatprep.mubr.bf16.mxu0 0
      %1457 = vmatmul.mubr.bf16.gmra.mrb[0].mxu0 %v1279
      %v1458 = vpop.f32.mrb[0].mxu0
      %v1459 = vadd.f32 %v1142, %v1458
      %v1460 = vpop.f32.mrb[0].mxu0
      %v1461 = vpop.f32.mrb[0].mxu0
      %v1462 = vadd.f32 %v1143, %v1461
      %v1463 = vpop.f32.mrb[0].mxu0
      %1464 = vmatprep.mubr.bf16.mxu0 0
      %1465 = vmatmul.mubr.bf16.gmra.mrb[0].mxu0 %v1280
      %v1466 = vpop.f32.mrb[0].mxu0
      %v1467 = vadd.f32 %v1144, %v1466
      %v1468 = vpop.f32.mrb[0].mxu0
      %v1469 = vpop.f32.mrb[0].mxu0
      %v1470 = vadd.f32 %v1145, %v1469
      %v1471 = vpop.f32.mrb[0].mxu0
      %1472 = vmatprep.mubr.bf16.mxu0 0
      %1473 = vmatmul.mubr.bf16.gmra.mrb[0].mxu0 %v1281
      %v1474 = vpop.f32.mrb[0].mxu0
      %v1475 = vadd.f32 %v1146, %v1474
      %v1476 = vpop.f32.mrb[0].mxu0
      %v1477 = vpop.f32.mrb[0].mxu0
      %v1478 = vadd.f32 %v1147, %v1477
      %v1479 = vpop.f32.mrb[0].mxu0
      %1480 = vmatprep.mubr.bf16.mxu0 0
      %1481 = vmatmul.mubr.bf16.gmra.mrb[0].mxu0 %v1282
      %v1482 = vpop.f32.mrb[0].mxu0
      %v1483 = vadd.f32 %v1148, %v1482
      %v1484 = vpop.f32.mrb[0].mxu0
      %v1485 = vpop.f32.mrb[0].mxu0
      %v1486 = vadd.f32 %v1149, %v1485
      %v1487 = vpop.f32.mrb[0].mxu0
      %1488 = vmatprep.mubr.bf16.mxu0 0
      %1489 = vmatmul.mubr.bf16.gmra.mrb[0].mxu0 %v1283
      %v1490 = vpop.f32.mrb[0].mxu0
      %v1491 = vadd.f32 %v1150, %v1490
      %v1492 = vpop.f32.mrb[0].mxu0
      %v1493 = vpop.f32.mrb[0].mxu0
      %v1494 = vadd.f32 %v1151, %v1493
      %v1495 = vpop.f32.mrb[0].mxu0
      %1496 = vmatprep.mubr.bf16.mxu0 0
      %1497 = vmatmul.mubr.bf16.gmra.mrb[0].mxu0 %v1284
      %v1498 = vpop.f32.mrb[0].mxu0
      %v1499 = vadd.f32 %v1152, %v1498
      %v1500 = vpop.f32.mrb[0].mxu0
      %v1501 = vpop.f32.mrb[0].mxu0
      %v1502 = vadd.f32 %v1153, %v1501
      %v1503 = vpop.f32.mrb[0].mxu0
      %1504 = vmatprep.mubr.bf16.mxu0 0
      %1505 = vmatmul.mubr.bf16.gmra.mrb[0].mxu0 %v1285
      %v1506 = vpop.f32.mrb[0].mxu0
      %v1507 = vadd.f32 %v1154, %v1506
      %v1508 = vpop.f32.mrb[0].mxu0
      %v1509 = vpop.f32.mrb[0].mxu0
      %v1510 = vadd.f32 %v1155, %v1509
      %v1511 = vpop.f32.mrb[0].mxu0
      %1512 = vmatprep.mubr.bf16.mxu0 0
      %1513 = vmatmul.mubr.bf16.gmra.mrb[0].mxu0 %v1286
      %v1514 = vpop.f32.mrb[0].mxu0
      %v1515 = vadd.f32 %v1156, %v1514
      %v1516 = vpop.f32.mrb[0].mxu0
      %v1517 = vpop.f32.mrb[0].mxu0
      %v1518 = vadd.f32 %v1157, %v1517
      %v1519 = vpop.f32.mrb[0].mxu0
      %1520 = vmatprep.mubr.bf16.mxu0 0
      %1521 = vmatmul.mubr.bf16.gmra.mrb[0].mxu0 %v1287
      %v1522 = vpop.f32.mrb[0].mxu0
      %v1523 = vadd.f32 %v1158, %v1522
      %v1524 = vpop.f32.mrb[0].mxu0
      %v1525 = vpop.f32.mrb[0].mxu0
      %v1526 = vadd.f32 %v1159, %v1525
      %v1527 = vpop.f32.mrb[0].mxu0
      %1528 = vmatprep.mubr.bf16.mxu0 0
      %1529 = vmatmul.mubr.bf16.gmra.mrb[0].mxu0 %v1288
      %v1530 = vpop.f32.mrb[0].mxu0
      %v1531 = vadd.f32 %v1160, %v1530
      %v1532 = vpop.f32.mrb[0].mxu0
      %v1533 = vpop.f32.mrb[0].mxu0
      %v1534 = vadd.f32 %v1161, %v1533
      %v1535 = vpop.f32.mrb[0].mxu0
      %1536 = vmatprep.mubr.bf16.mxu0 0
      %1537 = vmatmul.mubr.bf16.gmra.mrb[0].mxu0 %v1289
      %v1538 = vpop.f32.mrb[0].mxu0
      %v1539 = vadd.f32 %v1162, %v1538
      %v1540 = vpop.f32.mrb[0].mxu0
      %v1541 = vpop.f32.mrb[0].mxu0
      %v1542 = vadd.f32 %v1163, %v1541
      %v1543 = vpop.f32.mrb[0].mxu0
      %1544 = vmatprep.mubr.bf16.mxu0 0
      %1545 = vmatmul.mubr.bf16.gmra.mrb[0].mxu0 %v1290
      %v1546 = vpop.f32.mrb[0].mxu0
      %v1547 = vadd.f32 %v1164, %v1546
      %v1548 = vpop.f32.mrb[0].mxu0
      %v1549 = vpop.f32.mrb[0].mxu0
      %v1550 = vadd.f32 %v1165, %v1549
      %v1551 = vpop.f32.mrb[0].mxu0
      %1552 = vmatprep.mubr.bf16.mxu0 0
      %1553 = vmatmul.mubr.bf16.gmra.mrb[0].mxu0 %v1291
      %v1554 = vpop.f32.mrb[0].mxu0
      %v1555 = vadd.f32 %v1166, %v1554
      %v1556 = vpop.f32.mrb[0].mxu0
      %v1557 = vpop.f32.mrb[0].mxu0
      %v1558 = vadd.f32 %v1167, %v1557
      %v1559 = vpop.f32.mrb[0].mxu0
      %1560 = vmatprep.mubr.bf16.mxu0 0
      %1561 = vmatmul.mubr.bf16.gmra.mrb[0].mxu0 %v1292
      %v1562 = vpop.f32.mrb[0].mxu0
      %v1563 = vadd.f32 %v1168, %v1562
      %v1564 = vpop.f32.mrb[0].mxu0
      %v1565 = vpop.f32.mrb[0].mxu0
      %v1566 = vadd.f32 %v1169, %v1565
      %v1567 = vpop.f32.mrb[0].mxu0
      %1568 = vmatprep.mubr.bf16.mxu0 0
      %1569 = vmatmul.mubr.bf16.gmra.mrb[0].mxu0 %v1293
      %v1570 = vpop.f32.mrb[0].mxu0
      %v1571 = vadd.f32 %v1170, %v1570
      %v1572 = vpop.f32.mrb[0].mxu0
      %v1573 = vpop.f32.mrb[0].mxu0
      %v1574 = vadd.f32 %v1171, %v1573
      %v1575 = vpop.f32.mrb[0].mxu0
      %1576 = vmatprep.mubr.bf16.mxu0 0
      %1577 = vmatmul.mubr.bf16.gmra.mrb[0].mxu0 %v1294
      %v1578 = vpop.f32.mrb[0].mxu0
      %v1579 = vadd.f32 %v1172, %v1578
      %v1580 = vpop.f32.mrb[0].mxu0
      %v1581 = vpop.f32.mrb[0].mxu0
      %v1582 = vadd.f32 %v1173, %v1581
      %v1583 = vpop.f32.mrb[0].mxu0
      %1584 = vmatprep.mubr.bf16.mxu0 0
      %1585 = vmatmul.mubr.bf16.gmra.mrb[0].mxu0 %v1295
      %v1586 = vpop.f32.mrb[0].mxu0
      %v1587 = vadd.f32 %v1174, %v1586
      %v1588 = vpop.f32.mrb[0].mxu0
      %v1589 = vpop.f32.mrb[0].mxu0
      %v1590 = vadd.f32 %v1175, %v1589
      %v1591 = vpop.f32.mrb[0].mxu0
      %1592 = vdwg.mxu0
      %v1593 = vunpack.c.l.bf16 %v1015
      %v1594 = vunpack.c.l.bf16 %v1016
      %v1595 = vunpack.c.l.bf16 %v1017
      %v1596 = vunpack.c.l.bf16 %v1018
      %v1597 = vunpack.c.l.bf16 %v1019
      %v1598 = vunpack.c.l.bf16 %v1020
      %v1599 = vunpack.c.l.bf16 %v1021
      %v1600 = vunpack.c.l.bf16 %v1022
      %v1601 = vunpack.c.l.bf16 %v1023
      %v1602 = vunpack.c.l.bf16 %v1024
      %v1603 = vunpack.c.l.bf16 %v1025
      %v1604 = vunpack.c.l.bf16 %v1026
      %v1605 = vunpack.c.l.bf16 %v1027
      %v1606 = vunpack.c.l.bf16 %v1028
      %v1607 = vunpack.c.l.bf16 %v1029
      %v1608 = vunpack.c.l.bf16 %v1030
      %v1609 = vunpack.c.l.bf16 %v1031
      %v1610 = vunpack.c.l.bf16 %v1032
      %v1611 = vunpack.c.l.bf16 %v1033
      %v1612 = vunpack.c.l.bf16 %v1034
      %v1613 = vunpack.c.l.bf16 %v1035
      %v1614 = vunpack.c.l.bf16 %v1036
      %v1615 = vunpack.c.l.bf16 %v1037
      %v1616 = vunpack.c.l.bf16 %v1038
      %v1617 = vunpack.c.l.bf16 %v1039
      %v1618 = vunpack.c.l.bf16 %v1040
      %v1619 = vunpack.c.l.bf16 %v1041
      %v1620 = vunpack.c.l.bf16 %v1042
      %v1621 = vunpack.c.l.bf16 %v1043
      %v1622 = vunpack.c.l.bf16 %v1044
      %v1623 = vunpack.c.l.bf16 %v1045
      %v1624 = vunpack.c.l.bf16 %v1046
      %v1625 = vunpack.c.l.bf16 %v1047
      %v1626 = vunpack.c.l.bf16 %v1048
      %v1627 = vunpack.c.l.bf16 %v1049
      %v1628 = vunpack.c.l.bf16 %v1050
      %v1629 = vunpack.c.l.bf16 %v1051
      %v1630 = vunpack.c.l.bf16 %v1052
      %v1631 = vunpack.c.l.bf16 %v1053
      %v1632 = vunpack.c.l.bf16 %v1054
      %v1633 = vunpack.c.l.bf16 %v1055
      %v1634 = vunpack.c.l.bf16 %v1056
      %v1635 = vunpack.c.l.bf16 %v1057
      %v1636 = vunpack.c.l.bf16 %v1058
      %v1637 = vunpack.c.l.bf16 %v1059
      %v1638 = vunpack.c.l.bf16 %v1060
      %v1639 = vunpack.c.l.bf16 %v1061
      %v1640 = vunpack.c.l.bf16 %v1062
      %v1641 = vstv %s918
      %v1642 = vmul.f32 %v1641, %v1593
      %v1643 = vmul.f32 %v1641, %v1594
      %v1644 = vmul.f32 %v1641, %v1595
      %v1645 = vmul.f32 %v1641, %v1596
      %v1646 = vmul.f32 %v1641, %v1597
      %v1647 = vmul.f32 %v1641, %v1598
      %v1648 = vmul.f32 %v1641, %v1599
      %v1649 = vmul.f32 %v1641, %v1600
      %v1650 = vmul.f32 %v1641, %v1601
      %v1651 = vmul.f32 %v1641, %v1602
      %v1652 = vmul.f32 %v1641, %v1603
      %v1653 = vmul.f32 %v1641, %v1604
      %v1654 = vmul.f32 %v1641, %v1605
      %v1655 = vmul.f32 %v1641, %v1606
      %v1656 = vmul.f32 %v1641, %v1607
      %v1657 = vmul.f32 %v1641, %v1608
      %v1658 = vmul.f32 %v1641, %v1609
      %v1659 = vmul.f32 %v1641, %v1610
      %v1660 = vmul.f32 %v1641, %v1611
      %v1661 = vmul.f32 %v1641, %v1612
      %v1662 = vmul.f32 %v1641, %v1613
      %v1663 = vmul.f32 %v1641, %v1614
      %v1664 = vmul.f32 %v1641, %v1615
      %v1665 = vmul.f32 %v1641, %v1616
      %v1666 = vmul.f32 %v1641, %v1617
      %v1667 = vmul.f32 %v1641, %v1618
      %v1668 = vmul.f32 %v1641, %v1619
      %v1669 = vmul.f32 %v1641, %v1620
      %v1670 = vmul.f32 %v1641, %v1621
      %v1671 = vmul.f32 %v1641, %v1622
      %v1672 = vmul.f32 %v1641, %v1623
      %v1673 = vmul.f32 %v1641, %v1624
      %v1674 = vmul.f32 %v1641, %v1625
      %v1675 = vmul.f32 %v1641, %v1626
      %v1676 = vmul.f32 %v1641, %v1627
      %v1677 = vmul.f32 %v1641, %v1628
      %v1678 = vmul.f32 %v1641, %v1629
      %v1679 = vmul.f32 %v1641, %v1630
      %v1680 = vmul.f32 %v1641, %v1631
      %v1681 = vmul.f32 %v1641, %v1632
      %v1682 = vmul.f32 %v1641, %v1633
      %v1683 = vmul.f32 %v1641, %v1634
      %v1684 = vmul.f32 %v1641, %v1635
      %v1685 = vmul.f32 %v1641, %v1636
      %v1686 = vmul.f32 %v1641, %v1637
      %v1687 = vmul.f32 %v1641, %v1638
      %v1688 = vmul.f32 %v1641, %v1639
      %v1689 = vmul.f32 %v1641, %v1640
      %v1690 = vadd.f32 %v1403, %v1642
      %v1691 = vadd.f32 %v1406, %v1643
      %v1692 = vadd.f32 %v1411, %v1644
      %v1693 = vadd.f32 %v1414, %v1645
      %v1694 = vadd.f32 %v1419, %v1646
      %v1695 = vadd.f32 %v1422, %v1647
      %v1696 = vadd.f32 %v1427, %v1648
      %v1697 = vadd.f32 %v1430, %v1649
      %v1698 = vadd.f32 %v1435, %v1650
      %v1699 = vadd.f32 %v1438, %v1651
      %v1700 = vadd.f32 %v1443, %v1652
      %v1701 = vadd.f32 %v1446, %v1653
      %v1702 = vadd.f32 %v1451, %v1654
      %v1703 = vadd.f32 %v1454, %v1655
      %v1704 = vadd.f32 %v1459, %v1656
      %v1705 = vadd.f32 %v1462, %v1657
      %v1706 = vadd.f32 %v1467, %v1658
      %v1707 = vadd.f32 %v1470, %v1659
      %v1708 = vadd.f32 %v1475, %v1660
      %v1709 = vadd.f32 %v1478, %v1661
      %v1710 = vadd.f32 %v1483, %v1662
      %v1711 = vadd.f32 %v1486, %v1663
      %v1712 = vadd.f32 %v1491, %v1664
      %v1713 = vadd.f32 %v1494, %v1665
      %v1714 = vadd.f32 %v1499, %v1666
      %v1715 = vadd.f32 %v1502, %v1667
      %v1716 = vadd.f32 %v1507, %v1668
      %v1717 = vadd.f32 %v1510, %v1669
      %v1718 = vadd.f32 %v1515, %v1670
      %v1719 = vadd.f32 %v1518, %v1671
      %v1720 = vadd.f32 %v1523, %v1672
      %v1721 = vadd.f32 %v1526, %v1673
      %v1722 = vadd.f32 %v1531, %v1674
      %v1723 = vadd.f32 %v1534, %v1675
      %v1724 = vadd.f32 %v1539, %v1676
      %v1725 = vadd.f32 %v1542, %v1677
      %v1726 = vadd.f32 %v1547, %v1678
      %v1727 = vadd.f32 %v1550, %v1679
      %v1728 = vadd.f32 %v1555, %v1680
      %v1729 = vadd.f32 %v1558, %v1681
      %v1730 = vadd.f32 %v1563, %v1682
      %v1731 = vadd.f32 %v1566, %v1683
      %v1732 = vadd.f32 %v1571, %v1684
      %v1733 = vadd.f32 %v1574, %v1685
      %v1734 = vadd.f32 %v1579, %v1686
      %v1735 = vadd.f32 %v1582, %v1687
      %v1736 = vadd.f32 %v1587, %v1688
      %v1737 = vadd.f32 %v1590, %v1689
      %v1738 = vpack.c.bf16 %v1691, %v1690
      %v1739 = vpack.c.bf16 %v1693, %v1692
      %v1740 = vpack.c.bf16 %v1695, %v1694
      %v1741 = vpack.c.bf16 %v1697, %v1696
      %v1742 = vpack.c.bf16 %v1699, %v1698
      %v1743 = vpack.c.bf16 %v1701, %v1700
      %v1744 = vpack.c.bf16 %v1703, %v1702
      %v1745 = vpack.c.bf16 %v1705, %v1704
      %v1746 = vpack.c.bf16 %v1707, %v1706
      %v1747 = vpack.c.bf16 %v1709, %v1708
      %v1748 = vpack.c.bf16 %v1711, %v1710
      %v1749 = vpack.c.bf16 %v1713, %v1712
      %v1750 = vpack.c.bf16 %v1715, %v1714
      %v1751 = vpack.c.bf16 %v1717, %v1716
      %v1752 = vpack.c.bf16 %v1719, %v1718
      %v1753 = vpack.c.bf16 %v1721, %v1720
      %v1754 = vpack.c.bf16 %v1723, %v1722
      %v1755 = vpack.c.bf16 %v1725, %v1724
      %v1756 = vpack.c.bf16 %v1727, %v1726
      %v1757 = vpack.c.bf16 %v1729, %v1728
      %v1758 = vpack.c.bf16 %v1731, %v1730
      %v1759 = vpack.c.bf16 %v1733, %v1732
      %v1760 = vpack.c.bf16 %v1735, %v1734
      %v1761 = vpack.c.bf16 %v1737, %v1736
      %v1786 = vunpack.c.l.b16 %v1738
      %v1787 = vunpack.c.h.b16 %v1738
      %v1788 = vunpack.c.l.b16 %v1739
      %v1789 = vunpack.c.h.b16 %v1739
      %v1790 = vunpack.c.l.b16 %v1740
      %v1791 = vunpack.c.h.b16 %v1740
      %v1792 = vunpack.c.l.b16 %v1741
      %v1793 = vunpack.c.h.b16 %v1741
      %v1794 = vunpack.c.l.b16 %v1742
      %v1795 = vunpack.c.h.b16 %v1742
      %v1796 = vunpack.c.l.b16 %v1743
      %v1797 = vunpack.c.h.b16 %v1743
      %v1798 = vunpack.c.l.b16 %v1744
      %v1799 = vunpack.c.h.b16 %v1744
      %v1800 = vunpack.c.l.b16 %v1745
      %v1801 = vunpack.c.h.b16 %v1745
      %v1802 = vunpack.c.l.b16 %v1746
      %v1803 = vunpack.c.h.b16 %v1746
      %v1804 = vunpack.c.l.b16 %v1747
      %v1805 = vunpack.c.h.b16 %v1747
      %v1806 = vunpack.c.l.b16 %v1748
      %v1807 = vunpack.c.h.b16 %v1748
      %v1808 = vunpack.c.l.b16 %v1749
      %v1809 = vunpack.c.h.b16 %v1749
      %v1810 = vunpack.c.l.b16 %v1750
      %v1811 = vunpack.c.h.b16 %v1750
      %v1812 = vunpack.c.l.b16 %v1751
      %v1813 = vunpack.c.h.b16 %v1751
      %v1814 = vunpack.c.l.b16 %v1752
      %v1815 = vunpack.c.h.b16 %v1752
      %v1816 = vunpack.c.l.b16 %v1753
      %v1817 = vunpack.c.h.b16 %v1753
      %v1818 = vunpack.c.l.b16 %v1754
      %v1819 = vunpack.c.h.b16 %v1754
      %v1820 = vunpack.c.l.b16 %v1755
      %v1821 = vunpack.c.h.b16 %v1755
      %v1822 = vunpack.c.l.b16 %v1756
      %v1823 = vunpack.c.h.b16 %v1756
      %v1824 = vunpack.c.l.b16 %v1757
      %v1825 = vunpack.c.h.b16 %v1757
      %v1826 = vunpack.c.l.b16 %v1758
      %v1827 = vunpack.c.h.b16 %v1758
      %v1828 = vunpack.c.l.b16 %v1759
      %v1829 = vunpack.c.h.b16 %v1759
      %v1830 = vunpack.c.l.b16 %v1760
      %v1831 = vunpack.c.h.b16 %v1760
      %v1832 = vunpack.c.l.b16 %v1761
      %v1833 = vunpack.c.h.b16 %v1761
      %v1834 = vpack.c.b16 %v1786, %v1786
      %v1835 = vpack.c.b16 %v1787, %v1787
      %v1836 = vpack.c.b16 %v1788, %v1788
      %v1837 = vpack.c.b16 %v1789, %v1789
      %v1838 = vpack.c.b16 %v1790, %v1790
      %v1839 = vpack.c.b16 %v1791, %v1791
      %v1840 = vpack.c.b16 %v1792, %v1792
      %v1841 = vpack.c.b16 %v1793, %v1793
      %v1842 = vpack.c.b16 %v1794, %v1794
      %v1843 = vpack.c.b16 %v1795, %v1795
      %v1844 = vpack.c.b16 %v1796, %v1796
      %v1845 = vpack.c.b16 %v1797, %v1797
      %v1846 = vpack.c.b16 %v1798, %v1798
      %v1847 = vpack.c.b16 %v1799, %v1799
      %v1848 = vpack.c.b16 %v1800, %v1800
      %v1849 = vpack.c.b16 %v1801, %v1801
      %v1850 = vpack.c.b16 %v1802, %v1802
      %v1851 = vpack.c.b16 %v1803, %v1803
      %v1852 = vpack.c.b16 %v1804, %v1804
      %v1853 = vpack.c.b16 %v1805, %v1805
      %v1854 = vpack.c.b16 %v1806, %v1806
      %v1855 = vpack.c.b16 %v1807, %v1807
      %v1856 = vpack.c.b16 %v1808, %v1808
      %v1857 = vpack.c.b16 %v1809, %v1809
      %v1858 = vpack.c.b16 %v1810, %v1810
      %v1859 = vpack.c.b16 %v1811, %v1811
      %v1860 = vpack.c.b16 %v1812, %v1812
      %v1861 = vpack.c.b16 %v1813, %v1813
      %v1862 = vpack.c.b16 %v1814, %v1814
      %v1863 = vpack.c.b16 %v1815, %v1815
      %v1864 = vpack.c.b16 %v1816, %v1816
      %v1865 = vpack.c.b16 %v1817, %v1817
      %v1866 = vpack.c.b16 %v1818, %v1818
      %v1867 = vpack.c.b16 %v1819, %v1819
      %v1868 = vpack.c.b16 %v1820, %v1820
      %v1869 = vpack.c.b16 %v1821, %v1821
      %v1870 = vpack.c.b16 %v1822, %v1822
      %v1871 = vpack.c.b16 %v1823, %v1823
      %v1872 = vpack.c.b16 %v1824, %v1824
      %v1873 = vpack.c.b16 %v1825, %v1825
      %v1874 = vpack.c.b16 %v1826, %v1826
      %v1875 = vpack.c.b16 %v1827, %v1827
      %v1876 = vpack.c.b16 %v1828, %v1828
      %v1877 = vpack.c.b16 %v1829, %v1829
      %v1878 = vpack.c.b16 %v1830, %v1830
      %v1879 = vpack.c.b16 %v1831, %v1831
      %v1880 = vpack.c.b16 %v1832, %v1832
      %v1881 = vpack.c.b16 %v1833, %v1833
      %1930 = vst [vmem:[#allocation2 + $0xc] sm:$0xf] %v1834
      %1931 = vst [vmem:[#allocation2 + $0x10] sm:$0xf] %v1835
      %1932 = vst [vmem:[#allocation2 + $0x14] sm:$0xf] %v1836
      %1933 = vst [vmem:[#allocation2 + $0x18] sm:$0xf] %v1837
      %1934 = vst [vmem:[#allocation2 + $0x1c] sm:$0xf] %v1838
      %1935 = vst [vmem:[#allocation2 + $0x20] sm:$0xf] %v1839
      %1936 = vst [vmem:[#allocation2 + $0x24] sm:$0xf] %v1840
      %1937 = vst [vmem:[#allocation2 + $0x28] sm:$0xf] %v1841
      %1938 = vst [vmem:[#allocation2 + $0x2c] sm:$0xf] %v1842
      %1939 = vst [vmem:[#allocation2 + $0x30] sm:$0xf] %v1843
      %1940 = vst [vmem:[#allocation2 + $0x34] sm:$0xf] %v1844
      %1941 = vst [vmem:[#allocation2 + $0x38] sm:$0xf] %v1845
      %1942 = vst [vmem:[#allocation2 + $0x3c] sm:$0xf] %v1846
      %1943 = vst [vmem:[#allocation2 + $0x40] sm:$0xf] %v1847
      %1944 = vst [vmem:[#allocation2 + $0x44] sm:$0xf] %v1848
      %1945 = vst [vmem:[#allocation2 + $0x48] sm:$0xf] %v1849
      %1946 = vst [vmem:[#allocation2 + $0x4c] sm:$0xf] %v1850
      %1947 = vst [vmem:[#allocation2 + $0x50] sm:$0xf] %v1851
      %1948 = vst [vmem:[#allocation2 + $0x54] sm:$0xf] %v1852
      %1949 = vst [vmem:[#allocation2 + $0x58] sm:$0xf] %v1853
      %1950 = vst [vmem:[#allocation2 + $0x5c] sm:$0xf] %v1854
      %1951 = vst [vmem:[#allocation2 + $0x60] sm:$0xf] %v1855
      %1952 = vst [vmem:[#allocation2 + $0x64] sm:$0xf] %v1856
      %1953 = vst [vmem:[#allocation2 + $0x68] sm:$0xf] %v1857
      %1954 = vst [vmem:[#allocation2 + $0x6c] sm:$0xf] %v1858
      %1955 = vst [vmem:[#allocation2 + $0x70] sm:$0xf] %v1859
      %1956 = vst [vmem:[#allocation2 + $0x74] sm:$0xf] %v1860
      %1957 = vst [vmem:[#allocation2 + $0x78] sm:$0xf] %v1861
      %1958 = vst [vmem:[#allocation2 + $0x7c] sm:$0xf] %v1862
      %1959 = vst [vmem:[#allocation2 + $0x80] sm:$0xf] %v1863
      %1960 = vst [vmem:[#allocation2 + $0x84] sm:$0xf] %v1864
      %1961 = vst [vmem:[#allocation2 + $0x88] sm:$0xf] %v1865
      %1962 = vst [vmem:[#allocation2 + $0x8c] sm:$0xf] %v1866
      %1963 = vst [vmem:[#allocation2 + $0x90] sm:$0xf] %v1867
      %1964 = vst [vmem:[#allocation2 + $0x94] sm:$0xf] %v1868
      %1965 = vst [vmem:[#allocation2 + $0x98] sm:$0xf] %v1869
      %1966 = vst [vmem:[#allocation2 + $0x9c] sm:$0xf] %v1870
      %1967 = vst [vmem:[#allocation2 + $0xa0] sm:$0xf] %v1871
      %1968 = vst [vmem:[#allocation2 + $0xa4] sm:$0xf] %v1872
      %1969 = vst [vmem:[#allocation2 + $0xa8] sm:$0xf] %v1873
      %1970 = vst [vmem:[#allocation2 + $0xac] sm:$0xf] %v1874
      %1971 = vst [vmem:[#allocation2 + $0xb0] sm:$0xf] %v1875
      %1972 = vst [vmem:[#allocation2 + $0xb4] sm:$0xf] %v1876
      %1973 = vst [vmem:[#allocation2 + $0xb8] sm:$0xf] %v1877
      %1974 = vst [vmem:[#allocation2 + $0xbc] sm:$0xf] %v1878
      %1975 = vst [vmem:[#allocation2 + $0xc0] sm:$0xf] %v1879
      %1976 = vst [vmem:[#allocation2 + $0xc4] sm:$0xf] %v1880
      %1977 = vst [vmem:[#allocation2 + $0xc8] sm:$0xf] %v1881
      %p1978 = scmp.gt.s32.totalorder %s35, 0
      // Predicated region
      $region69: #{ws_forward.1} parent=67 // pred_check
        %p1979 = pneg %p1978
      $region70: #{ws_forward.1} parent=67 // pred_check_branch
        %1981 = sbr.rel (%p1979) target = $region72
      $region71: #{ws_forward.1} parent=67 // pred_region
        %v1982 = vld [vmem:[%s828] sm:$0xf]
        %v1983 = vld [vmem:[%s828 + $0x4] sm:$0xf]
        %v1984 = vld [vmem:[%s828 + $0x8] sm:$0xf]
        %v1985 = vld [vmem:[%s810] sm:$0xf]
        %v1986 = vld [vmem:[%s810 + $0x4] sm:$0xf]
        %v1987 = vld [vmem:[%s810 + $0x8] sm:$0xf]
        %v1988 = vld [vmem:[%s846] sm:$0xf]
        %v1989 = vld [vmem:[%s846 + $0x4] sm:$0xf]
        %v1990 = vld [vmem:[%s846 + $0x8] sm:$0xf]
        %v1991 = vld [vmem:[%s10] sm:$0xf]
        %v1992 = vld [vmem:[%s10 + $0x4] sm:$0xf]
        %v1993 = vld [vmem:[%s10 + $0x8] sm:$0xf]
        %v1994 = vld [vmem:[%s10 + $0xc] sm:$0xf]
        %v1995 = vld [vmem:[%s10 + $0x10] sm:$0xf]
        %v1996 = vld [vmem:[%s10 + $0x14] sm:$0xf]
        %v1997 = vld [vmem:[%s10 + $0x18] sm:$0xf]
        %v1998 = vld [vmem:[%s10 + $0x1c] sm:$0xf]
        %v1999 = vld [vmem:[%s10 + $0x20] sm:$0xf]
        %v2000 = vld [vmem:[%s10 + $0x24] sm:$0xf]
        %v2001 = vld [vmem:[%s10 + $0x28] sm:$0xf]
        %v2002 = vld [vmem:[%s10 + $0x2c] sm:$0xf]
        %v2003 = vld [vmem:[%s10 + $0x30] sm:$0xf]
        %v2004 = vld [vmem:[%s10 + $0x34] sm:$0xf]
        %v2005 = vld [vmem:[%s10 + $0x38] sm:$0xf]
        %v2006 = vld [vmem:[%s10 + $0x3c] sm:$0xf]
        %v2007 = vunpack.c.l.bf16 %v1985
        %v2008 = vunpack.c.l.bf16 %v1986
        %v2009 = vunpack.c.l.bf16 %v1987
        %v2010 = vmul.f32 %v1127, %v2007
        %v2011 = vmul.f32 %v1127, %v2008
        %v2012 = vmul.f32 %v1127, %v2009
        %v2016 = vunpack.c.l.b16 %v1982
        %v2017 = vunpack.c.l.b16 %v1983
        %v2018 = vunpack.c.l.b16 %v1984
        %v2019 = vpack.c.b16 %v2017, %v2016
        %v2020 = vpack.c.b16 %v2018, %v2018
        %v2039 = vunpack.c.l.b16 %v1991
        %v2040 = vunpack.c.l.b16 %v1992
        %v2041 = vunpack.c.l.b16 %v1993
        %v2042 = vunpack.c.l.b16 %v1994
        %v2043 = vunpack.c.l.b16 %v1995
        %v2044 = vunpack.c.l.b16 %v1996
        %v2045 = vunpack.c.l.b16 %v1997
        %v2046 = vunpack.c.l.b16 %v1998
        %v2047 = vunpack.c.l.b16 %v1999
        %v2048 = vunpack.c.l.b16 %v2000
        %v2049 = vunpack.c.l.b16 %v2001
        %v2050 = vunpack.c.l.b16 %v2002
        %v2051 = vunpack.c.l.b16 %v2003
        %v2052 = vunpack.c.l.b16 %v2004
        %v2053 = vunpack.c.l.b16 %v2005
        %v2054 = vunpack.c.l.b16 %v2006
        %v2055 = vpack.c.b16 %v2040, %v2039
        %v2056 = vpack.c.b16 %v2042, %v2041
        %v2057 = vpack.c.b16 %v2044, %v2043
        %v2058 = vpack.c.b16 %v2046, %v2045
        %v2059 = vpack.c.b16 %v2048, %v2047
        %v2060 = vpack.c.b16 %v2050, %v2049
        %v2061 = vpack.c.b16 %v2052, %v2051
        %v2062 = vpack.c.b16 %v2054, %v2053
        %2071 = vmatprep.subr.bf16.mxu0 0
        %2072 = vmatpush1.bf16.msra.mxu0 %v2055
        %2073 = vmatprep.subr.bf16.mxu0 0
        %2074 = vmatpush1.bf16.msra.mxu0 %v2056
        %2075 = vmatprep.subr.bf16.mxu0 0
        %2076 = vmatpush1.bf16.msra.mxu0 %v2057
        %2077 = vmatprep.subr.bf16.mxu0 0
        %2078 = vmatpush1.bf16.msra.mxu0 %v2058
        %2079 = vmatprep.subr.bf16.mxu0 0
        %2080 = vmatpush1.bf16.msra.mxu0 %v2059
        %2081 = vmatprep.subr.bf16.mxu0 0
        %2082 = vmatpush1.bf16.msra.mxu0 %v2060
        %2083 = vmatprep.subr.bf16.mxu0 0
        %2084 = vmatpush1.bf16.msra.mxu0 %v2061
        %2085 = vmatprep.subr.bf16.mxu0 0
        %2086 = vmatpush1.bf16.msra.mxu0 %v2062
        %2087 = vmatprep.subr.bf16.mxu0 0
        %2088 = vmatpush1.bf16.msra.mxu0 0
        %2089 = vmatprep.subr.bf16.mxu0 0
        %2090 = vmatpush1.bf16.msra.mxu0 0
        %2091 = vmatprep.subr.bf16.mxu0 0
        %2092 = vmatpush1.bf16.msra.mxu0 0
        %2093 = vmatprep.subr.bf16.mxu0 0
        %2094 = vmatpush1.bf16.msra.mxu0 0
        %2095 = vmatprep.subr.bf16.mxu0 0
        %2096 = vmatpush1.bf16.msra.mxu0 0
        %2097 = vmatprep.subr.bf16.mxu0 0
        %2098 = vmatpush1.bf16.msra.mxu0 0
        %2099 = vmatprep.subr.bf16.mxu0 0
        %2100 = vmatpush1.bf16.msra.mxu0 0
        %2101 = vmatprep.subr.bf16.mxu0 0
        %2102 = vmatpush1.bf16.msra.mxu0 0
        %2103 = vmatprep.mubr.bf16.mxu0 0
        %2104 = vmatmul.mubr.bf16.gmra.mrb[0].mxu0 %v2019
        %v2105 = vpop.f32.mrb[0].mxu0
        %v2106 = vadd.f32 %v2010, %v2105
        %v2107 = vpop.f32.mrb[0].mxu0
        %v2108 = vpop.f32.mrb[0].mxu0
        %v2109 = vadd.f32 %v2011, %v2108
        %v2110 = vpop.f32.mrb[0].mxu0
        %2111 = vmatprep.mubr.bf16.mxu0 0
        %2112 = vmatmul.mubr.bf16.gmra.mrb[0].mxu0 %v2020
        %v2113 = vpop.f32.mrb[0].mxu0
        %v2114 = vadd.f32 %v2012, %v2113
        %v2115 = vpop.f32.mrb[0].mxu0
        %v2116 = vpop.f32.mrb[0].mxu0
        %v2117 = vpop.f32.mrb[0].mxu0
        %2118 = vdwg.mxu0
        %v2119 = vunpack.c.l.bf16 %v1988
        %v2120 = vunpack.c.l.bf16 %v1989
        %v2121 = vunpack.c.l.bf16 %v1990
        %v2122 = vmul.f32 %v1641, %v2119
        %v2123 = vmul.f32 %v1641, %v2120
        %v2124 = vmul.f32 %v1641, %v2121
        %v2125 = vadd.f32 %v2106, %v2122
        %v2126 = vadd.f32 %v2109, %v2123
        %v2127 = vadd.f32 %v2114, %v2124
        %v2128 = vpack.c.bf16 %v2126, %v2125
        %v2129 = vpack.c.bf16 %v2127, %v2127
        %v2132 = vunpack.c.l.b16 %v2128
        %v2133 = vunpack.c.h.b16 %v2128
        %v2134 = vunpack.c.l.b16 %v2129
        %v2135 = vpack.c.b16 %v2132, %v2132
        %v2136 = vpack.c.b16 %v2133, %v2133
        %v2137 = vpack.c.b16 %v2134, %v2134
        %2141 = vst [vmem:[#allocation2] sm:$0xf] %v2135
        %2142 = vst [vmem:[#allocation2 + $0x4] sm:$0xf] %v2136
        %2143 = vst [vmem:[#allocation2 + $0x8] sm:$0xf] %v2137
      $region72: #{ws_forward.1} parent=67 // pred_fallthru
        _
      %p2144 = scmp.eq.s32.totalorder %s35, 0
      // Predicated region
      $region73: #{ws_forward.1} parent=67 // pred_check
        %p2145 = pneg %p2144
      $region74: #{ws_forward.1} parent=67 // pred_check_branch
        %2147 = sbr.rel (%p2145) target = $region76
      $region75: #{ws_forward.1} parent=67 // pred_region
        %2148 = vst [vmem:[#allocation2] sm:$0xf] 0
        %2149 = vst [vmem:[#allocation2 + $0x4] sm:$0xf] 0
        %2150 = vst [vmem:[#allocation2 + $0x8] sm:$0xf] 0
      $region76: #{ws_forward.1} parent=67 // pred_fallthru
        _
      %p2151 = scmp.lt.s32.totalorder %s35, 0
      // Predicated region
      $region77: #{ws_forward.1} parent=67 // pred_check
        %p2152 = pneg %p2151
      $region78: #{ws_forward.1} parent=67 // pred_check_branch
        %2154 = sbr.rel (%p2152) target = $region80
      $region79: #{ws_forward.1} parent=67 // pred_region
        %v2155 = vld [vmem:[%s882] sm:$0xf]
        %v2156 = vld [vmem:[%s882 + $0x4] sm:$0xf]
        %v2157 = vld [vmem:[%s882 + $0x8] sm:$0xf]
        %v2158 = vld [vmem:[%s864] sm:$0xf]
        %v2159 = vld [vmem:[%s864 + $0x4] sm:$0xf]
        %v2160 = vld [vmem:[%s864 + $0x8] sm:$0xf]
        %v2161 = vld [vmem:[%s900] sm:$0xf]
        %v2162 = vld [vmem:[%s900 + $0x4] sm:$0xf]
        %v2163 = vld [vmem:[%s900 + $0x8] sm:$0xf]
        %v2164 = vld [vmem:[%s10] sm:$0xf]
        %v2165 = vld [vmem:[%s10 + $0x4] sm:$0xf]
        %v2166 = vld [vmem:[%s10 + $0x8] sm:$0xf]
        %v2167 = vld [vmem:[%s10 + $0xc] sm:$0xf]
        %v2168 = vld [vmem:[%s10 + $0x10] sm:$0xf]
        %v2169 = vld [vmem:[%s10 + $0x14] sm:$0xf]
        %v2170 = vld [vmem:[%s10 + $0x18] sm:$0xf]
        %v2171 = vld [vmem:[%s10 + $0x1c] sm:$0xf]
        %v2172 = vld [vmem:[%s10 + $0x20] sm:$0xf]
        %v2173 = vld [vmem:[%s10 + $0x24] sm:$0xf]
        %v2174 = vld [vmem:[%s10 + $0x28] sm:$0xf]
        %v2175 = vld [vmem:[%s10 + $0x2c] sm:$0xf]
        %v2176 = vld [vmem:[%s10 + $0x30] sm:$0xf]
        %v2177 = vld [vmem:[%s10 + $0x34] sm:$0xf]
        %v2178 = vld [vmem:[%s10 + $0x38] sm:$0xf]
        %v2179 = vld [vmem:[%s10 + $0x3c] sm:$0xf]
        %v2180 = vunpack.c.l.bf16 %v2158
        %v2181 = vunpack.c.l.bf16 %v2159
        %v2182 = vunpack.c.l.bf16 %v2160
        %v2183 = vmul.f32 %v1127, %v2180
        %v2184 = vmul.f32 %v1127, %v2181
        %v2185 = vmul.f32 %v1127, %v2182
        %v2189 = vunpack.c.l.b16 %v2155
        %v2190 = vunpack.c.l.b16 %v2156
        %v2191 = vunpack.c.l.b16 %v2157
        %v2192 = vpack.c.b16 %v2190, %v2189
        %v2193 = vpack.c.b16 %v2191, %v2191
        %v2212 = vunpack.c.l.b16 %v2164
        %v2213 = vunpack.c.l.b16 %v2165
        %v2214 = vunpack.c.l.b16 %v2166
        %v2215 = vunpack.c.l.b16 %v2167
        %v2216 = vunpack.c.l.b16 %v2168
        %v2217 = vunpack.c.l.b16 %v2169
        %v2218 = vunpack.c.l.b16 %v2170
        %v2219 = vunpack.c.l.b16 %v2171
        %v2220 = vunpack.c.l.b16 %v2172
        %v2221 = vunpack.c.l.b16 %v2173
        %v2222 = vunpack.c.l.b16 %v2174
        %v2223 = vunpack.c.l.b16 %v2175
        %v2224 = vunpack.c.l.b16 %v2176
        %v2225 = vunpack.c.l.b16 %v2177
        %v2226 = vunpack.c.l.b16 %v2178
        %v2227 = vunpack.c.l.b16 %v2179
        %v2228 = vpack.c.b16 %v2213, %v2212
        %v2229 = vpack.c.b16 %v2215, %v2214
        %v2230 = vpack.c.b16 %v2217, %v2216
        %v2231 = vpack.c.b16 %v2219, %v2218
        %v2232 = vpack.c.b16 %v2221, %v2220
        %v2233 = vpack.c.b16 %v2223, %v2222
        %v2234 = vpack.c.b16 %v2225, %v2224
        %v2235 = vpack.c.b16 %v2227, %v2226
        %2244 = vmatprep.subr.bf16.mxu0 0
        %2245 = vmatpush1.bf16.msra.mxu0 %v2228
        %2246 = vmatprep.subr.bf16.mxu0 0
        %2247 = vmatpush1.bf16.msra.mxu0 %v2229
        %2248 = vmatprep.subr.bf16.mxu0 0
        %2249 = vmatpush1.bf16.msra.mxu0 %v2230
        %2250 = vmatprep.subr.bf16.mxu0 0
        %2251 = vmatpush1.bf16.msra.mxu0 %v2231
        %2252 = vmatprep.subr.bf16.mxu0 0
        %2253 = vmatpush1.bf16.msra.mxu0 %v2232
        %2254 = vmatprep.subr.bf16.mxu0 0
        %2255 = vmatpush1.bf16.msra.mxu0 %v2233
        %2256 = vmatprep.subr.bf16.mxu0 0
        %2257 = vmatpush1.bf16.msra.mxu0 %v2234
        %2258 = vmatprep.subr.bf16.mxu0 0
        %2259 = vmatpush1.bf16.msra.mxu0 %v2235
        %2260 = vmatprep.subr.bf16.mxu0 0
        %2261 = vmatpush1.bf16.msra.mxu0 0
        %2262 = vmatprep.subr.bf16.mxu0 0
        %2263 = vmatpush1.bf16.msra.mxu0 0
        %2264 = vmatprep.subr.bf16.mxu0 0
        %2265 = vmatpush1.bf16.msra.mxu0 0
        %2266 = vmatprep.subr.bf16.mxu0 0
        %2267 = vmatpush1.bf16.msra.mxu0 0
        %2268 = vmatprep.subr.bf16.mxu0 0
        %2269 = vmatpush1.bf16.msra.mxu0 0
        %2270 = vmatprep.subr.bf16.mxu0 0
        %2271 = vmatpush1.bf16.msra.mxu0 0
        %2272 = vmatprep.subr.bf16.mxu0 0
        %2273 = vmatpush1.bf16.msra.mxu0 0
        %2274 = vmatprep.subr.bf16.mxu0 0
        %2275 = vmatpush1.bf16.msra.mxu0 0
        %2276 = vmatprep.mubr.bf16.mxu0 0
        %2277 = vmatmul.mubr.bf16.gmra.mrb[0].mxu0 %v2192
        %v2278 = vpop.f32.mrb[0].mxu0
        %v2279 = vadd.f32 %v2183, %v2278
        %v2280 = vpop.f32.mrb[0].mxu0
        %v2281 = vpop.f32.mrb[0].mxu0
        %v2282 = vadd.f32 %v2184, %v2281
        %v2283 = vpop.f32.mrb[0].mxu0
        %2284 = vmatprep.mubr.bf16.mxu0 0
        %2285 = vmatmul.mubr.bf16.gmra.mrb[0].mxu0 %v2193
        %v2286 = vpop.f32.mrb[0].mxu0
        %v2287 = vadd.f32 %v2185, %v2286
        %v2288 = vpop.f32.mrb[0].mxu0
        %v2289 = vpop.f32.mrb[0].mxu0
        %v2290 = vpop.f32.mrb[0].mxu0
        %2291 = vdwg.mxu0
        %v2292 = vunpack.c.l.bf16 %v2161
        %v2293 = vunpack.c.l.bf16 %v2162
        %v2294 = vunpack.c.l.bf16 %v2163
        %v2295 = vmul.f32 %v1641, %v2292
        %v2296 = vmul.f32 %v1641, %v2293
        %v2297 = vmul.f32 %v1641, %v2294
        %v2298 = vadd.f32 %v2279, %v2295
        %v2299 = vadd.f32 %v2282, %v2296
        %v2300 = vadd.f32 %v2287, %v2297
        %v2301 = vpack.c.bf16 %v2299, %v2298
        %v2302 = vpack.c.bf16 %v2300, %v2300
        %v2305 = vunpack.c.l.b16 %v2301
        %v2306 = vunpack.c.h.b16 %v2301
        %v2307 = vunpack.c.l.b16 %v2302
        %v2308 = vpack.c.b16 %v2305, %v2305
        %v2309 = vpack.c.b16 %v2306, %v2306
        %v2310 = vpack.c.b16 %v2307, %v2307
        %2314 = vst [vmem:[#allocation2 + $0xcc] sm:$0xf] %v2308
        %2315 = vst [vmem:[#allocation2 + $0xd0] sm:$0xf] %v2309
        %2316 = vst [vmem:[#allocation2 + $0xd4] sm:$0xf] %v2310
      $region80: #{ws_forward.1} parent=67 // pred_fallthru
        _
      // Predicated region
      $region81: #{ws_forward.1} parent=67 // pred_check
        %p2317 = pneg %p2144
      $region82: #{ws_forward.1} parent=67 // pred_check_branch
        %2319 = sbr.rel (%p2317) target = $region84
      $region83: #{ws_forward.1} parent=67 // pred_region
        %2320 = vst [vmem:[#allocation2 + $0xcc] sm:$0xf] 0
        %2321 = vst [vmem:[#allocation2 + $0xd0] sm:$0xf] 0
        %2322 = vst [vmem:[#allocation2 + $0xd4] sm:$0xf] 0
      $region84: #{ws_forward.1} parent=67 // pred_fallthru
        _
      %2323 = vst [vmem:[#allocation2 + $0xd8] sm:$0xf] 0
      %v2324 = vld [vmem:[#allocation2] sm:$0xf]
      %v2325 = vld [vmem:[#allocation2 + $0x4] sm:$0xf]
      %v2326 = vld [vmem:[#allocation2 + $0x8] sm:$0xf]
      %v2327 = vld [vmem:[#allocation2 + $0xc] sm:$0xf]
      %v2328 = vld [vmem:[#allocation2 + $0x10] sm:$0xf]
      %v2329 = vld [vmem:[#allocation2 + $0x14] sm:$0xf]
      %v2330 = vld [vmem:[#allocation2 + $0x18] sm:$0xf]
      %v2331 = vld [vmem:[#allocation2 + $0x1c] sm:$0xf]
      %v2332 = vld [vmem:[#allocation2 + $0x20] sm:$0xf]
      %v2333 = vld [vmem:[#allocation2 + $0x24] sm:$0xf]
      %v2334 = vld [vmem:[#allocation2 + $0x28] sm:$0xf]
      %v2335 = vld [vmem:[#allocation2 + $0x2c] sm:$0xf]
      %v2336 = vld [vmem:[#allocation2 + $0x30] sm:$0xf]
      %v2337 = vld [vmem:[#allocation2 + $0x34] sm:$0xf]
      %v2338 = vld [vmem:[#allocation2 + $0x38] sm:$0xf]
      %v2339 = vld [vmem:[#allocation2 + $0x3c] sm:$0xf]
      %v2340 = vld [vmem:[#allocation2 + $0x40] sm:$0xf]
      %v2341 = vld [vmem:[#allocation2 + $0x44] sm:$0xf]
      %v2342 = vld [vmem:[#allocation2 + $0x48] sm:$0xf]
      %v2343 = vld [vmem:[#allocation2 + $0x4c] sm:$0xf]
      %v2344 = vld [vmem:[#allocation2 + $0x50] sm:$0xf]
      %v2345 = vld [vmem:[#allocation2 + $0x54] sm:$0xf]
      %v2346 = vld [vmem:[#allocation2 + $0x58] sm:$0xf]
      %v2347 = vld [vmem:[#allocation2 + $0x5c] sm:$0xf]
      %v2348 = vld [vmem:[#allocation2 + $0x60] sm:$0xf]
      %v2349 = vld [vmem:[#allocation2 + $0x64] sm:$0xf]
      %v2350 = vld [vmem:[#allocation2 + $0x68] sm:$0xf]
      %v2351 = vld [vmem:[#allocation2 + $0x6c] sm:$0xf]
      %v2352 = vld [vmem:[#allocation2 + $0x70] sm:$0xf]
      %v2353 = vld [vmem:[#allocation2 + $0x74] sm:$0xf]
      %v2354 = vld [vmem:[#allocation2 + $0x78] sm:$0xf]
      %v2355 = vld [vmem:[#allocation2 + $0x7c] sm:$0xf]
      %v2356 = vld [vmem:[#allocation2 + $0x80] sm:$0xf]
      %v2357 = vld [vmem:[#allocation2 + $0x84] sm:$0xf]
      %v2358 = vld [vmem:[#allocation2 + $0x88] sm:$0xf]
      %v2359 = vld [vmem:[#allocation2 + $0x8c] sm:$0xf]
      %v2360 = vld [vmem:[#allocation2 + $0x90] sm:$0xf]
      %v2361 = vld [vmem:[#allocation2 + $0x94] sm:$0xf]
      %v2362 = vld [vmem:[#allocation2 + $0x98] sm:$0xf]
      %v2363 = vld [vmem:[#allocation2 + $0x9c] sm:$0xf]
      %v2364 = vld [vmem:[#allocation2 + $0xa0] sm:$0xf]
      %v2365 = vld [vmem:[#allocation2 + $0xa4] sm:$0xf]
      %v2366 = vld [vmem:[#allocation2 + $0xa8] sm:$0xf]
      %v2367 = vld [vmem:[#allocation2 + $0xac] sm:$0xf]
      %v2368 = vld [vmem:[#allocation2 + $0xb0] sm:$0xf]
      %v2369 = vld [vmem:[#allocation2 + $0xb4] sm:$0xf]
      %v2370 = vld [vmem:[#allocation2 + $0xb8] sm:$0xf]
      %v2371 = vld [vmem:[#allocation2 + $0xbc] sm:$0xf]
      %v2372 = vld [vmem:[#allocation2 + $0xc0] sm:$0xf]
      %v2373 = vld [vmem:[#allocation2 + $0xc4] sm:$0xf]
      %v2374 = vld [vmem:[#allocation2 + $0xc8] sm:$0xf]
      %v2375 = vld [vmem:[#allocation2 + $0xcc] sm:$0xf]
      %v2376 = vld [vmem:[#allocation2 + $0xd0] sm:$0xf]
      %v2377 = vld [vmem:[#allocation2 + $0xd4] sm:$0xf]
      %v2432 = vunpack.c.l.b16 %v2324
      %v2433 = vunpack.c.l.b16 %v2325
      %v2434 = vunpack.c.l.b16 %v2326
      %v2435 = vunpack.c.l.b16 %v2327
      %v2436 = vunpack.c.l.b16 %v2328
      %v2437 = vunpack.c.l.b16 %v2329
      %v2438 = vunpack.c.l.b16 %v2330
      %v2439 = vunpack.c.l.b16 %v2331
      %v2440 = vunpack.c.l.b16 %v2332
      %v2441 = vunpack.c.l.b16 %v2333
      %v2442 = vunpack.c.l.b16 %v2334
      %v2443 = vunpack.c.l.b16 %v2335
      %v2444 = vunpack.c.l.b16 %v2336
      %v2445 = vunpack.c.l.b16 %v2337
      %v2446 = vunpack.c.l.b16 %v2338
      %v2447 = vunpack.c.l.b16 %v2339
      %v2448 = vunpack.c.l.b16 %v2340
      %v2449 = vunpack.c.l.b16 %v2341
      %v2450 = vunpack.c.l.b16 %v2342
      %v2451 = vunpack.c.l.b16 %v2343
      %v2452 = vunpack.c.l.b16 %v2344
      %v2453 = vunpack.c.l.b16 %v2345
      %v2454 = vunpack.c.l.b16 %v2346
      %v2455 = vunpack.c.l.b16 %v2347
      %v2456 = vunpack.c.l.b16 %v2348
      %v2457 = vunpack.c.l.b16 %v2349
      %v2458 = vunpack.c.l.b16 %v2350
      %v2459 = vunpack.c.l.b16 %v2351
      %v2460 = vunpack.c.l.b16 %v2352
      %v2461 = vunpack.c.l.b16 %v2353
      %v2462 = vunpack.c.l.b16 %v2354
      %v2463 = vunpack.c.l.b16 %v2355
      %v2464 = vunpack.c.l.b16 %v2356
      %v2465 = vunpack.c.l.b16 %v2357
      %v2466 = vunpack.c.l.b16 %v2358
      %v2467 = vunpack.c.l.b16 %v2359
      %v2468 = vunpack.c.l.b16 %v2360
      %v2469 = vunpack.c.l.b16 %v2361
      %v2470 = vunpack.c.l.b16 %v2362
      %v2471 = vunpack.c.l.b16 %v2363
      %v2472 = vunpack.c.l.b16 %v2364
      %v2473 = vunpack.c.l.b16 %v2365
      %v2474 = vunpack.c.l.b16 %v2366
      %v2475 = vunpack.c.l.b16 %v2367
      %v2476 = vunpack.c.l.b16 %v2368
      %v2477 = vunpack.c.l.b16 %v2369
      %v2478 = vunpack.c.l.b16 %v2370
      %v2479 = vunpack.c.l.b16 %v2371
      %v2480 = vunpack.c.l.b16 %v2372
      %v2481 = vunpack.c.l.b16 %v2373
      %v2482 = vunpack.c.l.b16 %v2374
      %v2483 = vunpack.c.l.b16 %v2375
      %v2484 = vunpack.c.l.b16 %v2376
      %v2485 = vunpack.c.l.b16 %v2377
      %v2486 = vpack.c.b16 %v2433, %v2432
      %v2487 = vpack.c.b16 %v2435, %v2434
      %v2488 = vpack.c.b16 %v2437, %v2436
      %v2489 = vpack.c.b16 %v2439, %v2438
      %v2490 = vpack.c.b16 %v2441, %v2440
      %v2491 = vpack.c.b16 %v2443, %v2442
      %v2492 = vpack.c.b16 %v2445, %v2444
      %v2493 = vpack.c.b16 %v2447, %v2446
      %v2494 = vpack.c.b16 %v2449, %v2448
      %v2495 = vpack.c.b16 %v2451, %v2450
      %v2496 = vpack.c.b16 %v2453, %v2452
      %v2497 = vpack.c.b16 %v2455, %v2454
      %v2498 = vpack.c.b16 %v2457, %v2456
      %v2499 = vpack.c.b16 %v2459, %v2458
      %v2500 = vpack.c.b16 %v2461, %v2460
      %v2501 = vpack.c.b16 %v2463, %v2462
      %v2502 = vpack.c.b16 %v2465, %v2464
      %v2503 = vpack.c.b16 %v2467, %v2466
      %v2504 = vpack.c.b16 %v2469, %v2468
      %v2505 = vpack.c.b16 %v2471, %v2470
      %v2506 = vpack.c.b16 %v2473, %v2472
      %v2507 = vpack.c.b16 %v2475, %v2474
      %v2508 = vpack.c.b16 %v2477, %v2476
      %v2509 = vpack.c.b16 %v2479, %v2478
      %v2510 = vpack.c.b16 %v2481, %v2480
      %v2511 = vpack.c.b16 %v2483, %v2482
      %v2512 = vpack.c.b16 %v2485, %v2484
      %2540 = vst [vmem:[#allocation3] sm:$0xff] %v2486
      %2541 = vst [vmem:[#allocation3 + $0x18] sm:$0xff] %v2487
      %2542 = vst [vmem:[#allocation3 + $0x30] sm:$0xff] %v2488
      %2543 = vst [vmem:[#allocation3 + $0x48] sm:$0xff] %v2489
      %2544 = vst [vmem:[#allocation3 + $0x60] sm:$0xff] %v2490
      %2545 = vst [vmem:[#allocation3 + $0x78] sm:$0xff] %v2491
      %2546 = vst [vmem:[#allocation3 + $0x90] sm:$0xff] %v2492
      %2547 = vst [vmem:[#allocation3 + $0xa8] sm:$0xff] %v2493
      %2548 = vst [vmem:[#allocation3 + $0xc0] sm:$0xff] %v2494
      %2549 = vst [vmem:[#allocation3 + $0xd8] sm:$0xff] %v2495
      %2550 = vst [vmem:[#allocation3 + $0xf0] sm:$0xff] %v2496
      %2551 = vst [vmem:[#allocation3 + $0x108] sm:$0xff] %v2497
      %2552 = vst [vmem:[#allocation3 + $0x120] sm:$0xff] %v2498
      %2553 = vst [vmem:[#allocation3 + $0x138] sm:$0xff] %v2499
      %2554 = vst [vmem:[#allocation3 + $0x150] sm:$0xff] %v2500
      %2555 = vst [vmem:[#allocation3 + $0x168] sm:$0xff] %v2501
      %2556 = vst [vmem:[#allocation3 + $0x180] sm:$0xff] %v2502
      %2557 = vst [vmem:[#allocation3 + $0x198] sm:$0xff] %v2503
      %2558 = vst [vmem:[#allocation3 + $0x1b0] sm:$0xff] %v2504
      %2559 = vst [vmem:[#allocation3 + $0x1c8] sm:$0xff] %v2505
      %2560 = vst [vmem:[#allocation3 + $0x1e0] sm:$0xff] %v2506
      %2561 = vst [vmem:[#allocation3 + $0x1f8] sm:$0xff] %v2507
      %2562 = vst [vmem:[#allocation3 + $0x210] sm:$0xff] %v2508
      %2563 = vst [vmem:[#allocation3 + $0x228] sm:$0xff] %v2509
      %2564 = vst [vmem:[#allocation3 + $0x240] sm:$0xff] %v2510
      %2565 = vst [vmem:[#allocation3 + $0x258] sm:$0xff] %v2511
      %2566 = vst [vmem:[#allocation3 + $0x270] sm:$0xff] %v2512
      %v2567 = vld [vmem:[#allocation2] sm:$0xf]
      %v2568 = vld [vmem:[#allocation2 + $0x4] sm:$0xf]
      %v2569 = vld [vmem:[#allocation2 + $0x8] sm:$0xf]
      %v2570 = vld [vmem:[#allocation2 + $0xc] sm:$0xf]
      %v2571 = vld [vmem:[#allocation2 + $0x10] sm:$0xf]
      %v2572 = vld [vmem:[#allocation2 + $0x14] sm:$0xf]
      %v2573 = vld [vmem:[#allocation2 + $0x18] sm:$0xf]
      %v2574 = vld [vmem:[#allocation2 + $0x1c] sm:$0xf]
      %v2575 = vld [vmem:[#allocation2 + $0x20] sm:$0xf]
      %v2576 = vld [vmem:[#allocation2 + $0x24] sm:$0xf]
      %v2577 = vld [vmem:[#allocation2 + $0x28] sm:$0xf]
      %v2578 = vld [vmem:[#allocation2 + $0x2c] sm:$0xf]
      %v2579 = vld [vmem:[#allocation2 + $0x30] sm:$0xf]
      %v2580 = vld [vmem:[#allocation2 + $0x34] sm:$0xf]
      %v2581 = vld [vmem:[#allocation2 + $0x38] sm:$0xf]
      %v2582 = vld [vmem:[#allocation2 + $0x3c] sm:$0xf]
      %v2583 = vld [vmem:[#allocation2 + $0x40] sm:$0xf]
      %v2584 = vld [vmem:[#allocation2 + $0x44] sm:$0xf]
      %v2585 = vld [vmem:[#allocation2 + $0x48] sm:$0xf]
      %v2586 = vld [vmem:[#allocation2 + $0x4c] sm:$0xf]
      %v2587 = vld [vmem:[#allocation2 + $0x50] sm:$0xf]
      %v2588 = vld [vmem:[#allocation2 + $0x54] sm:$0xf]
      %v2589 = vld [vmem:[#allocation2 + $0x58] sm:$0xf]
      %v2590 = vld [vmem:[#allocation2 + $0x5c] sm:$0xf]
      %v2591 = vld [vmem:[#allocation2 + $0x60] sm:$0xf]
      %v2592 = vld [vmem:[#allocation2 + $0x64] sm:$0xf]
      %v2593 = vld [vmem:[#allocation2 + $0x68] sm:$0xf]
      %v2594 = vld [vmem:[#allocation2 + $0x6c] sm:$0xf]
      %v2595 = vld [vmem:[#allocation2 + $0x70] sm:$0xf]
      %v2596 = vld [vmem:[#allocation2 + $0x74] sm:$0xf]
      %v2597 = vld [vmem:[#allocation2 + $0x78] sm:$0xf]
      %v2598 = vld [vmem:[#allocation2 + $0x7c] sm:$0xf]
      %v2599 = vld [vmem:[#allocation2 + $0x80] sm:$0xf]
      %v2600 = vld [vmem:[#allocation2 + $0x84] sm:$0xf]
      %v2601 = vld [vmem:[#allocation2 + $0x88] sm:$0xf]
      %v2602 = vld [vmem:[#allocation2 + $0x8c] sm:$0xf]
      %v2603 = vld [vmem:[#allocation2 + $0x90] sm:$0xf]
      %v2604 = vld [vmem:[#allocation2 + $0x94] sm:$0xf]
      %v2605 = vld [vmem:[#allocation2 + $0x98] sm:$0xf]
      %v2606 = vld [vmem:[#allocation2 + $0x9c] sm:$0xf]
      %v2607 = vld [vmem:[#allocation2 + $0xa0] sm:$0xf]
      %v2608 = vld [vmem:[#allocation2 + $0xa4] sm:$0xf]
      %v2609 = vld [vmem:[#allocation2 + $0xa8] sm:$0xf]
      %v2610 = vld [vmem:[#allocation2 + $0xac] sm:$0xf]
      %v2611 = vld [vmem:[#allocation2 + $0xb0] sm:$0xf]
      %v2612 = vld [vmem:[#allocation2 + $0xb4] sm:$0xf]
      %v2613 = vld [vmem:[#allocation2 + $0xb8] sm:$0xf]
      %v2614 = vld [vmem:[#allocation2 + $0xbc] sm:$0xf]
      %v2615 = vld [vmem:[#allocation2 + $0xc0] sm:$0xf]
      %v2616 = vld [vmem:[#allocation2 + $0xc4] sm:$0xf]
      %v2617 = vld [vmem:[#allocation2 + $0xc8] sm:$0xf]
      %v2618 = vld [vmem:[#allocation2 + $0xcc] sm:$0xf]
      %v2619 = vld [vmem:[#allocation2 + $0xd0] sm:$0xf]
      %v2620 = vld [vmem:[#allocation2 + $0xd4] sm:$0xf]
      %v2621 = vld [vmem:[#allocation2 + $0xd8] sm:$0x1]
      %v2677 = vunpack.c.l.b16 %v2567
      %v2678 = vunpack.c.l.b16 %v2568
      %v2679 = vunpack.c.l.b16 %v2569
      %v2680 = vunpack.c.l.b16 %v2570
      %v2681 = vunpack.c.l.b16 %v2571
      %v2682 = vunpack.c.l.b16 %v2572
      %v2683 = vunpack.c.l.b16 %v2573
      %v2684 = vunpack.c.l.b16 %v2574
      %v2685 = vunpack.c.l.b16 %v2575
      %v2686 = vunpack.c.l.b16 %v2576
      %v2687 = vunpack.c.l.b16 %v2577
      %v2688 = vunpack.c.l.b16 %v2578
      %v2689 = vunpack.c.l.b16 %v2579
      %v2690 = vunpack.c.l.b16 %v2580
      %v2691 = vunpack.c.l.b16 %v2581
      %v2692 = vunpack.c.l.b16 %v2582
      %v2693 = vunpack.c.l.b16 %v2583
      %v2694 = vunpack.c.l.b16 %v2584
      %v2695 = vunpack.c.l.b16 %v2585
      %v2696 = vunpack.c.l.b16 %v2586
      %v2697 = vunpack.c.l.b16 %v2587
      %v2698 = vunpack.c.l.b16 %v2588
      %v2699 = vunpack.c.l.b16 %v2589
      %v2700 = vunpack.c.l.b16 %v2590
      %v2701 = vunpack.c.l.b16 %v2591
      %v2702 = vunpack.c.l.b16 %v2592
      %v2703 = vunpack.c.l.b16 %v2593
      %v2704 = vunpack.c.l.b16 %v2594
      %v2705 = vunpack.c.l.b16 %v2595
      %v2706 = vunpack.c.l.b16 %v2596
      %v2707 = vunpack.c.l.b16 %v2597
      %v2708 = vunpack.c.l.b16 %v2598
      %v2709 = vunpack.c.l.b16 %v2599
      %v2710 = vunpack.c.l.b16 %v2600
      %v2711 = vunpack.c.l.b16 %v2601
      %v2712 = vunpack.c.l.b16 %v2602
      %v2713 = vunpack.c.l.b16 %v2603
      %v2714 = vunpack.c.l.b16 %v2604
      %v2715 = vunpack.c.l.b16 %v2605
      %v2716 = vunpack.c.l.b16 %v2606
      %v2717 = vunpack.c.l.b16 %v2607
      %v2718 = vunpack.c.l.b16 %v2608
      %v2719 = vunpack.c.l.b16 %v2609
      %v2720 = vunpack.c.l.b16 %v2610
      %v2721 = vunpack.c.l.b16 %v2611
      %v2722 = vunpack.c.l.b16 %v2612
      %v2723 = vunpack.c.l.b16 %v2613
      %v2724 = vunpack.c.l.b16 %v2614
      %v2725 = vunpack.c.l.b16 %v2615
      %v2726 = vunpack.c.l.b16 %v2616
      %v2727 = vunpack.c.l.b16 %v2617
      %v2728 = vunpack.c.l.b16 %v2618
      %v2729 = vunpack.c.l.b16 %v2619
      %v2730 = vunpack.c.l.b16 %v2620
      %v2731 = vunpack.c.l.b16 %v2621
      %v2732 = vpack.c.b16 %v2678, %v2677
      %v2733 = vpack.c.b16 %v2680, %v2679
      %v2734 = vpack.c.b16 %v2682, %v2681
      %v2735 = vpack.c.b16 %v2684, %v2683
      %v2736 = vpack.c.b16 %v2686, %v2685
      %v2737 = vpack.c.b16 %v2688, %v2687
      %v2738 = vpack.c.b16 %v2690, %v2689
      %v2739 = vpack.c.b16 %v2692, %v2691
      %v2740 = vpack.c.b16 %v2694, %v2693
      %v2741 = vpack.c.b16 %v2696, %v2695
      %v2742 = vpack.c.b16 %v2698, %v2697
      %v2743 = vpack.c.b16 %v2700, %v2699
      %v2744 = vpack.c.b16 %v2702, %v2701
      %v2745 = vpack.c.b16 %v2704, %v2703
      %v2746 = vpack.c.b16 %v2706, %v2705
      %v2747 = vpack.c.b16 %v2708, %v2707
      %v2748 = vpack.c.b16 %v2710, %v2709
      %v2749 = vpack.c.b16 %v2712, %v2711
      %v2750 = vpack.c.b16 %v2714, %v2713
      %v2751 = vpack.c.b16 %v2716, %v2715
      %v2752 = vpack.c.b16 %v2718, %v2717
      %v2753 = vpack.c.b16 %v2720, %v2719
      %v2754 = vpack.c.b16 %v2722, %v2721
      %v2755 = vpack.c.b16 %v2724, %v2723
      %v2756 = vpack.c.b16 %v2726, %v2725
      %v2757 = vpack.c.b16 %v2728, %v2727
      %v2758 = vpack.c.b16 %v2730, %v2729
      %v2759 = vpack.c.b16 %v2731, %v2731
      %vm2760 = vsmask.f32 7424
      %v2762 = vshrl.u32 %v2732, 16
      %v2764 = vshll.u32 %v2732, 16
      %v2766 = vrot.slane %v2764, 1
      %v2767 = vor.u32 %v2762, %v2766
      %v2769 = vshll.u32 %v2733, 16
      %v2771 = vrot.slane %v2769, 1
      %v2772 = vsel %vm2760, %v2767, %v2771
      %v2773 = vshrl.u32 %v2733, 16
      %v2775 = vor.u32 %v2773, %v2771
      %v2777 = vshll.u32 %v2734, 16
      %v2779 = vrot.slane %v2777, 1
      %v2780 = vsel %vm2760, %v2775, %v2779
      %v2781 = vshrl.u32 %v2734, 16
      %v2783 = vor.u32 %v2781, %v2779
      %v2785 = vshll.u32 %v2735, 16
      %v2787 = vrot.slane %v2785, 1
      %v2788 = vsel %vm2760, %v2783, %v2787
      %v2789 = vshrl.u32 %v2735, 16
      %v2791 = vor.u32 %v2789, %v2787
      %v2793 = vshll.u32 %v2736, 16
      %v2795 = vrot.slane %v2793, 1
      %v2796 = vsel %vm2760, %v2791, %v2795
      %v2797 = vshrl.u32 %v2736, 16
      %v2799 = vor.u32 %v2797, %v2795
      %v2801 = vshll.u32 %v2737, 16
      %v2803 = vrot.slane %v2801, 1
      %v2804 = vsel %vm2760, %v2799, %v2803
      %v2805 = vshrl.u32 %v2737, 16
      %v2807 = vor.u32 %v2805, %v2803
      %v2809 = vshll.u32 %v2738, 16
      %v2811 = vrot.slane %v2809, 1
      %v2812 = vsel %vm2760, %v2807, %v2811
      %v2813 = vshrl.u32 %v2738, 16
      %v2815 = vor.u32 %v2813, %v2811
      %v2817 = vshll.u32 %v2739, 16
      %v2819 = vrot.slane %v2817, 1
      %v2820 = vsel %vm2760, %v2815, %v2819
      %v2821 = vshrl.u32 %v2739, 16
      %v2823 = vor.u32 %v2821, %v2819
      %v2825 = vshll.u32 %v2740, 16
      %v2827 = vrot.slane %v2825, 1
      %v2828 = vsel %vm2760, %v2823, %v2827
      %v2829 = vshrl.u32 %v2740, 16
      %v2831 = vor.u32 %v2829, %v2827
      %v2833 = vshll.u32 %v2741, 16
      %v2835 = vrot.slane %v2833, 1
      %v2836 = vsel %vm2760, %v2831, %v2835
      %v2837 = vshrl.u32 %v2741, 16
      %v2839 = vor.u32 %v2837, %v2835
      %v2841 = vshll.u32 %v2742, 16
      %v2843 = vrot.slane %v2841, 1
      %v2844 = vsel %vm2760, %v2839, %v2843
      %v2845 = vshrl.u32 %v2742, 16
      %v2847 = vor.u32 %v2845, %v2843
      %v2849 = vshll.u32 %v2743, 16
      %v2851 = vrot.slane %v2849, 1
      %v2852 = vsel %vm2760, %v2847, %v2851
      %v2853 = vshrl.u32 %v2743, 16
      %v2855 = vor.u32 %v2853, %v2851
      %v2857 = vshll.u32 %v2744, 16
      %v2859 = vrot.slane %v2857, 1
      %v2860 = vsel %vm2760, %v2855, %v2859
      %v2861 = vshrl.u32 %v2744, 16
      %v2863 = vor.u32 %v2861, %v2859
      %v2865 = vshll.u32 %v2745, 16
      %v2867 = vrot.slane %v2865, 1
      %v2868 = vsel %vm2760, %v2863, %v2867
      %v2869 = vshrl.u32 %v2745, 16
      %v2871 = vor.u32 %v2869, %v2867
      %v2873 = vshll.u32 %v2746, 16
      %v2875 = vrot.slane %v2873, 1
      %v2876 = vsel %vm2760, %v2871, %v2875
      %v2877 = vshrl.u32 %v2746, 16
      %v2879 = vor.u32 %v2877, %v2875
      %v2881 = vshll.u32 %v2747, 16
      %v2883 = vrot.slane %v2881, 1
      %v2884 = vsel %vm2760, %v2879, %v2883
      %v2885 = vshrl.u32 %v2747, 16
      %v2887 = vor.u32 %v2885, %v2883
      %v2889 = vshll.u32 %v2748, 16
      %v2891 = vrot.slane %v2889, 1
      %v2892 = vsel %vm2760, %v2887, %v2891
      %v2893 = vshrl.u32 %v2748, 16
      %v2895 = vor.u32 %v2893, %v2891
      %v2897 = vshll.u32 %v2749, 16
      %v2899 = vrot.slane %v2897, 1
      %v2900 = vsel %vm2760, %v2895, %v2899
      %v2901 = vshrl.u32 %v2749, 16
      %v2903 = vor.u32 %v2901, %v2899
      %v2905 = vshll.u32 %v2750, 16
      %v2907 = vrot.slane %v2905, 1
      %v2908 = vsel %vm2760, %v2903, %v2907
      %v2909 = vshrl.u32 %v2750, 16
      %v2911 = vor.u32 %v2909, %v2907
      %v2913 = vshll.u32 %v2751, 16
      %v2915 = vrot.slane %v2913, 1
      %v2916 = vsel %vm2760, %v2911, %v2915
      %v2917 = vshrl.u32 %v2751, 16
      %v2919 = vor.u32 %v2917, %v2915
      %v2921 = vshll.u32 %v2752, 16
      %v2923 = vrot.slane %v2921, 1
      %v2924 = vsel %vm2760, %v2919, %v2923
      %v2925 = vshrl.u32 %v2752, 16
      %v2927 = vor.u32 %v2925, %v2923
      %v2929 = vshll.u32 %v2753, 16
      %v2931 = vrot.slane %v2929, 1
      %v2932 = vsel %vm2760, %v2927, %v2931
      %v2933 = vshrl.u32 %v2753, 16
      %v2935 = vor.u32 %v2933, %v2931
      %v2937 = vshll.u32 %v2754, 16
      %v2939 = vrot.slane %v2937, 1
      %v2940 = vsel %vm2760, %v2935, %v2939
      %v2941 = vshrl.u32 %v2754, 16
      %v2943 = vor.u32 %v2941, %v2939
      %v2945 = vshll.u32 %v2755, 16
      %v2947 = vrot.slane %v2945, 1
      %v2948 = vsel %vm2760, %v2943, %v2947
      %v2949 = vshrl.u32 %v2755, 16
      %v2951 = vor.u32 %v2949, %v2947
      %v2953 = vshll.u32 %v2756, 16
      %v2955 = vrot.slane %v2953, 1
      %v2956 = vsel %vm2760, %v2951, %v2955
      %v2957 = vshrl.u32 %v2756, 16
      %v2959 = vor.u32 %v2957, %v2955
      %v2961 = vshll.u32 %v2757, 16
      %v2963 = vrot.slane %v2961, 1
      %v2964 = vsel %vm2760, %v2959, %v2963
      %v2965 = vshrl.u32 %v2757, 16
      %v2967 = vor.u32 %v2965, %v2963
      %v2969 = vshll.u32 %v2758, 16
      %v2971 = vrot.slane %v2969, 1
      %v2972 = vsel %vm2760, %v2967, %v2971
      %v2973 = vshrl.u32 %v2758, 16
      %v2975 = vor.u32 %v2973, %v2971
      %v2977 = vshll.u32 %v2759, 16
      %v2979 = vrot.slane %v2977, 1
      %v2980 = vsel %vm2760, %v2975, %v2979
      %3008 = vst [vmem:[#allocation3 + $0x8] sm:$0xff] %v2772
      %3009 = vst [vmem:[#allocation3 + $0x20] sm:$0xff] %v2780
      %3010 = vst [vmem:[#allocation3 + $0x38] sm:$0xff] %v2788
      %3011 = vst [vmem:[#allocation3 + $0x50] sm:$0xff] %v2796
      %3012 = vst [vmem:[#allocation3 + $0x68] sm:$0xff] %v2804
      %3013 = vst [vmem:[#allocation3 + $0x80] sm:$0xff] %v2812
      %3014 = vst [vmem:[#allocation3 + $0x98] sm:$0xff] %v2820
      %3015 = vst [vmem:[#allocation3 + $0xb0] sm:$0xff] %v2828
      %3016 = vst [vmem:[#allocation3 + $0xc8] sm:$0xff] %v2836
      %3017 = vst [vmem:[#allocation3 + $0xe0] sm:$0xff] %v2844
      %3018 = vst [vmem:[#allocation3 + $0xf8] sm:$0xff] %v2852
      %3019 = vst [vmem:[#allocation3 + $0x110] sm:$0xff] %v2860
      %3020 = vst [vmem:[#allocation3 + $0x128] sm:$0xff] %v2868
      %3021 = vst [vmem:[#allocation3 + $0x140] sm:$0xff] %v2876
      %3022 = vst [vmem:[#allocation3 + $0x158] sm:$0xff] %v2884
      %3023 = vst [vmem:[#allocation3 + $0x170] sm:$0xff] %v2892
      %3024 = vst [vmem:[#allocation3 + $0x188] sm:$0xff] %v2900
      %3025 = vst [vmem:[#allocation3 + $0x1a0] sm:$0xff] %v2908
      %3026 = vst [vmem:[#allocation3 + $0x1b8] sm:$0xff] %v2916
      %3027 = vst [vmem:[#allocation3 + $0x1d0] sm:$0xff] %v2924
      %3028 = vst [vmem:[#allocation3 + $0x1e8] sm:$0xff] %v2932
      %3029 = vst [vmem:[#allocation3 + $0x200] sm:$0xff] %v2940
      %3030 = vst [vmem:[#allocation3 + $0x218] sm:$0xff] %v2948
      %3031 = vst [vmem:[#allocation3 + $0x230] sm:$0xff] %v2956
      %3032 = vst [vmem:[#allocation3 + $0x248] sm:$0xff] %v2964
      %3033 = vst [vmem:[#allocation3 + $0x260] sm:$0xff] %v2972
      %3034 = vst [vmem:[#allocation3 + $0x278] sm:$0xff] %v2980
      %v3035 = vld [vmem:[#allocation2] sm:$0xe]
      %v3036 = vld [vmem:[#allocation2 + $0x4] sm:$0xf]
      %v3037 = vld [vmem:[#allocation2 + $0x8] sm:$0xf]
      %v3038 = vld [vmem:[#allocation2 + $0xc] sm:$0xf]
      %v3039 = vld [vmem:[#allocation2 + $0x10] sm:$0xf]
      %v3040 = vld [vmem:[#allocation2 + $0x14] sm:$0xf]
      %v3041 = vld [vmem:[#allocation2 + $0x18] sm:$0xf]
      %v3042 = vld [vmem:[#allocation2 + $0x1c] sm:$0xf]
      %v3043 = vld [vmem:[#allocation2 + $0x20] sm:$0xf]
      %v3044 = vld [vmem:[#allocation2 + $0x24] sm:$0xf]
      %v3045 = vld [vmem:[#allocation2 + $0x28] sm:$0xf]
      %v3046 = vld [vmem:[#allocation2 + $0x2c] sm:$0xf]
      %v3047 = vld [vmem:[#allocation2 + $0x30] sm:$0xf]
      %v3048 = vld [vmem:[#allocation2 + $0x34] sm:$0xf]
      %v3049 = vld [vmem:[#allocation2 + $0x38] sm:$0xf]
      %v3050 = vld [vmem:[#allocation2 + $0x3c] sm:$0xf]
      %v3051 = vld [vmem:[#allocation2 + $0x40] sm:$0xf]
      %v3052 = vld [vmem:[#allocation2 + $0x44] sm:$0xf]
      %v3053 = vld [vmem:[#allocation2 + $0x48] sm:$0xf]
      %v3054 = vld [vmem:[#allocation2 + $0x4c] sm:$0xf]
      %v3055 = vld [vmem:[#allocation2 + $0x50] sm:$0xf]
      %v3056 = vld [vmem:[#allocation2 + $0x54] sm:$0xf]
      %v3057 = vld [vmem:[#allocation2 + $0x58] sm:$0xf]
      %v3058 = vld [vmem:[#allocation2 + $0x5c] sm:$0xf]
      %v3059 = vld [vmem:[#allocation2 + $0x60] sm:$0xf]
      %v3060 = vld [vmem:[#allocation2 + $0x64] sm:$0xf]
      %v3061 = vld [vmem:[#allocation2 + $0x68] sm:$0xf]
      %v3062 = vld [vmem:[#allocation2 + $0x6c] sm:$0xf]
      %v3063 = vld [vmem:[#allocation2 + $0x70] sm:$0xf]
      %v3064 = vld [vmem:[#allocation2 + $0x74] sm:$0xf]
      %v3065 = vld [vmem:[#allocation2 + $0x78] sm:$0xf]
      %v3066 = vld [vmem:[#allocation2 + $0x7c] sm:$0xf]
      %v3067 = vld [vmem:[#allocation2 + $0x80] sm:$0xf]
      %v3068 = vld [vmem:[#allocation2 + $0x84] sm:$0xf]
      %v3069 = vld [vmem:[#allocation2 + $0x88] sm:$0xf]
      %v3070 = vld [vmem:[#allocation2 + $0x8c] sm:$0xf]
      %v3071 = vld [vmem:[#allocation2 + $0x90] sm:$0xf]
      %v3072 = vld [vmem:[#allocation2 + $0x94] sm:$0xf]
      %v3073 = vld [vmem:[#allocation2 + $0x98] sm:$0xf]
      %v3074 = vld [vmem:[#allocation2 + $0x9c] sm:$0xf]
      %v3075 = vld [vmem:[#allocation2 + $0xa0] sm:$0xf]
      %v3076 = vld [vmem:[#allocation2 + $0xa4] sm:$0xf]
      %v3077 = vld [vmem:[#allocation2 + $0xa8] sm:$0xf]
      %v3078 = vld [vmem:[#allocation2 + $0xac] sm:$0xf]
      %v3079 = vld [vmem:[#allocation2 + $0xb0] sm:$0xf]
      %v3080 = vld [vmem:[#allocation2 + $0xb4] sm:$0xf]
      %v3081 = vld [vmem:[#allocation2 + $0xb8] sm:$0xf]
      %v3082 = vld [vmem:[#allocation2 + $0xbc] sm:$0xf]
      %v3083 = vld [vmem:[#allocation2 + $0xc0] sm:$0xf]
      %v3084 = vld [vmem:[#allocation2 + $0xc4] sm:$0xf]
      %v3085 = vld [vmem:[#allocation2 + $0xc8] sm:$0xf]
      %v3086 = vld [vmem:[#allocation2 + $0xcc] sm:$0xf]
      %v3087 = vld [vmem:[#allocation2 + $0xd0] sm:$0xf]
      %v3088 = vld [vmem:[#allocation2 + $0xd4] sm:$0xf]
      %v3089 = vld [vmem:[#allocation2 + $0xd8] sm:$0x1]
      %v3145 = vunpack.c.l.b16 %v3035
      %v3146 = vunpack.c.l.b16 %v3036
      %v3147 = vunpack.c.l.b16 %v3037
      %v3148 = vunpack.c.l.b16 %v3038
      %v3149 = vunpack.c.l.b16 %v3039
      %v3150 = vunpack.c.l.b16 %v3040
      %v3151 = vunpack.c.l.b16 %v3041
      %v3152 = vunpack.c.l.b16 %v3042
      %v3153 = vunpack.c.l.b16 %v3043
      %v3154 = vunpack.c.l.b16 %v3044
      %v3155 = vunpack.c.l.b16 %v3045
      %v3156 = vunpack.c.l.b16 %v3046
      %v3157 = vunpack.c.l.b16 %v3047
      %v3158 = vunpack.c.l.b16 %v3048
      %v3159 = vunpack.c.l.b16 %v3049
      %v3160 = vunpack.c.l.b16 %v3050
      %v3161 = vunpack.c.l.b16 %v3051
      %v3162 = vunpack.c.l.b16 %v3052
      %v3163 = vunpack.c.l.b16 %v3053
      %v3164 = vunpack.c.l.b16 %v3054
      %v3165 = vunpack.c.l.b16 %v3055
      %v3166 = vunpack.c.l.b16 %v3056
      %v3167 = vunpack.c.l.b16 %v3057
      %v3168 = vunpack.c.l.b16 %v3058
      %v3169 = vunpack.c.l.b16 %v3059
      %v3170 = vunpack.c.l.b16 %v3060
      %v3171 = vunpack.c.l.b16 %v3061
      %v3172 = vunpack.c.l.b16 %v3062
      %v3173 = vunpack.c.l.b16 %v3063
      %v3174 = vunpack.c.l.b16 %v3064
      %v3175 = vunpack.c.l.b16 %v3065
      %v3176 = vunpack.c.l.b16 %v3066
      %v3177 = vunpack.c.l.b16 %v3067
      %v3178 = vunpack.c.l.b16 %v3068
      %v3179 = vunpack.c.l.b16 %v3069
      %v3180 = vunpack.c.l.b16 %v3070
      %v3181 = vunpack.c.l.b16 %v3071
      %v3182 = vunpack.c.l.b16 %v3072
      %v3183 = vunpack.c.l.b16 %v3073
      %v3184 = vunpack.c.l.b16 %v3074
      %v3185 = vunpack.c.l.b16 %v3075
      %v3186 = vunpack.c.l.b16 %v3076
      %v3187 = vunpack.c.l.b16 %v3077
      %v3188 = vunpack.c.l.b16 %v3078
      %v3189 = vunpack.c.l.b16 %v3079
      %v3190 = vunpack.c.l.b16 %v3080
      %v3191 = vunpack.c.l.b16 %v3081
      %v3192 = vunpack.c.l.b16 %v3082
      %v3193 = vunpack.c.l.b16 %v3083
      %v3194 = vunpack.c.l.b16 %v3084
      %v3195 = vunpack.c.l.b16 %v3085
      %v3196 = vunpack.c.l.b16 %v3086
      %v3197 = vunpack.c.l.b16 %v3087
      %v3198 = vunpack.c.l.b16 %v3088
      %v3199 = vunpack.c.l.b16 %v3089
      %v3200 = vpack.c.b16 %v3146, %v3145
      %v3201 = vpack.c.b16 %v3148, %v3147
      %v3202 = vpack.c.b16 %v3150, %v3149
      %v3203 = vpack.c.b16 %v3152, %v3151
      %v3204 = vpack.c.b16 %v3154, %v3153
      %v3205 = vpack.c.b16 %v3156, %v3155
      %v3206 = vpack.c.b16 %v3158, %v3157
      %v3207 = vpack.c.b16 %v3160, %v3159
      %v3208 = vpack.c.b16 %v3162, %v3161
      %v3209 = vpack.c.b16 %v3164, %v3163
      %v3210 = vpack.c.b16 %v3166, %v3165
      %v3211 = vpack.c.b16 %v3168, %v3167
      %v3212 = vpack.c.b16 %v3170, %v3169
      %v3213 = vpack.c.b16 %v3172, %v3171
      %v3214 = vpack.c.b16 %v3174, %v3173
      %v3215 = vpack.c.b16 %v3176, %v3175
      %v3216 = vpack.c.b16 %v3178, %v3177
      %v3217 = vpack.c.b16 %v3180, %v3179
      %v3218 = vpack.c.b16 %v3182, %v3181
      %v3219 = vpack.c.b16 %v3184, %v3183
      %v3220 = vpack.c.b16 %v3186, %v3185
      %v3221 = vpack.c.b16 %v3188, %v3187
      %v3222 = vpack.c.b16 %v3190, %v3189
      %v3223 = vpack.c.b16 %v3192, %v3191
      %v3224 = vpack.c.b16 %v3194, %v3193
      %v3225 = vpack.c.b16 %v3196, %v3195
      %v3226 = vpack.c.b16 %v3198, %v3197
      %v3227 = vpack.c.b16 %v3199, %v3199
      %vm3228 = vcmask 1046528
      %v3229 = vrot.slane %v3200, 1
      %v3230 = vrot.slane %v3201, 1
      %v3231 = vsel %vm3228, %v3229, %v3230
      %v3232 = vrot.slane %v3202, 1
      %v3233 = vsel %vm3228, %v3230, %v3232
      %v3234 = vrot.slane %v3203, 1
      %v3235 = vsel %vm3228, %v3232, %v3234
      %v3236 = vrot.slane %v3204, 1
      %v3237 = vsel %vm3228, %v3234, %v3236
      %v3238 = vrot.slane %v3205, 1
      %v3239 = vsel %vm3228, %v3236, %v3238
      %v3240 = vrot.slane %v3206, 1
      %v3241 = vsel %vm3228, %v3238, %v3240
      %v3242 = vrot.slane %v3207, 1
      %v3243 = vsel %vm3228, %v3240, %v3242
      %v3244 = vrot.slane %v3208, 1
      %v3245 = vsel %vm3228, %v3242, %v3244
      %v3246 = vrot.slane %v3209, 1
      %v3247 = vsel %vm3228, %v3244, %v3246
      %v3248 = vrot.slane %v3210, 1
      %v3249 = vsel %vm3228, %v3246, %v3248
      %v3250 = vrot.slane %v3211, 1
      %v3251 = vsel %vm3228, %v3248, %v3250
      %v3252 = vrot.slane %v3212, 1
      %v3253 = vsel %vm3228, %v3250, %v3252
      %v3254 = vrot.slane %v3213, 1
      %v3255 = vsel %vm3228, %v3252, %v3254
      %v3256 = vrot.slane %v3214, 1
      %v3257 = vsel %vm3228, %v3254, %v3256
      %v3258 = vrot.slane %v3215, 1
      %v3259 = vsel %vm3228, %v3256, %v3258
      %v3260 = vrot.slane %v3216, 1
      %v3261 = vsel %vm3228, %v3258, %v3260
      %v3262 = vrot.slane %v3217, 1
      %v3263 = vsel %vm3228, %v3260, %v3262
      %v3264 = vrot.slane %v3218, 1
      %v3265 = vsel %vm3228, %v3262, %v3264
      %v3266 = vrot.slane %v3219, 1
      %v3267 = vsel %vm3228, %v3264, %v3266
      %v3268 = vrot.slane %v3220, 1
      %v3269 = vsel %vm3228, %v3266, %v3268
      %v3270 = vrot.slane %v3221, 1
      %v3271 = vsel %vm3228, %v3268, %v3270
      %v3272 = vrot.slane %v3222, 1
      %v3273 = vsel %vm3228, %v3270, %v3272
      %v3274 = vrot.slane %v3223, 1
      %v3275 = vsel %vm3228, %v3272, %v3274
      %v3276 = vrot.slane %v3224, 1
      %v3277 = vsel %vm3228, %v3274, %v3276
      %v3278 = vrot.slane %v3225, 1
      %v3279 = vsel %vm3228, %v3276, %v3278
      %v3280 = vrot.slane %v3226, 1
      %v3281 = vsel %vm3228, %v3278, %v3280
      %v3282 = vrot.slane %v3227, 1
      %v3283 = vsel %vm3228, %v3280, %v3282
      %3311 = vst [vmem:[#allocation3 + $0x10] sm:$0xff] %v3231
      %3312 = vst [vmem:[#allocation3 + $0x28] sm:$0xff] %v3233
      %3313 = vst [vmem:[#allocation3 + $0x40] sm:$0xff] %v3235
      %3314 = vst [vmem:[#allocation3 + $0x58] sm:$0xff] %v3237
      %3315 = vst [vmem:[#allocation3 + $0x70] sm:$0xff] %v3239
      %3316 = vst [vmem:[#allocation3 + $0x88] sm:$0xff] %v3241
      %3317 = vst [vmem:[#allocation3 + $0xa0] sm:$0xff] %v3243
      %3318 = vst [vmem:[#allocation3 + $0xb8] sm:$0xff] %v3245
      %3319 = vst [vmem:[#allocation3 + $0xd0] sm:$0xff] %v3247
      %3320 = vst [vmem:[#allocation3 + $0xe8] sm:$0xff] %v3249
      %3321 = vst [vmem:[#allocation3 + $0x100] sm:$0xff] %v3251
      %3322 = vst [vmem:[#allocation3 + $0x118] sm:$0xff] %v3253
      %3323 = vst [vmem:[#allocation3 + $0x130] sm:$0xff] %v3255
      %3324 = vst [vmem:[#allocation3 + $0x148] sm:$0xff] %v3257
      %3325 = vst [vmem:[#allocation3 + $0x160] sm:$0xff] %v3259
      %3326 = vst [vmem:[#allocation3 + $0x178] sm:$0xff] %v3261
      %3327 = vst [vmem:[#allocation3 + $0x190] sm:$0xff] %v3263
      %3328 = vst [vmem:[#allocation3 + $0x1a8] sm:$0xff] %v3265
      %3329 = vst [vmem:[#allocation3 + $0x1c0] sm:$0xff] %v3267
      %3330 = vst [vmem:[#allocation3 + $0x1d8] sm:$0xff] %v3269
      %3331 = vst [vmem:[#allocation3 + $0x1f0] sm:$0xff] %v3271
      %3332 = vst [vmem:[#allocation3 + $0x208] sm:$0xff] %v3273
      %3333 = vst [vmem:[#allocation3 + $0x220] sm:$0xff] %v3275
      %3334 = vst [vmem:[#allocation3 + $0x238] sm:$0xff] %v3277
      %3335 = vst [vmem:[#allocation3 + $0x250] sm:$0xff] %v3279
      %3336 = vst [vmem:[#allocation3 + $0x268] sm:$0xff] %v3281
      %3337 = vst [vmem:[#allocation3 + $0x280] sm:$0xff] %v3283
      %v3338 = vld [vmem:[#allocation3] sm:$0xff]
      %v3339 = vld [vmem:[#allocation3 + $0x8] sm:$0xff]
      %v3340 = vld [vmem:[#allocation3 + $0x10] sm:$0xff]
      %v3341 = vld [vmem:[#allocation3 + $0x18] sm:$0xff]
      %v3342 = vld [vmem:[#allocation3 + $0x20] sm:$0xff]
      %v3343 = vld [vmem:[#allocation3 + $0x28] sm:$0xff]
      %v3344 = vld [vmem:[#allocation3 + $0x30] sm:$0xff]
      %v3345 = vld [vmem:[#allocation3 + $0x38] sm:$0xff]
      %v3346 = vld [vmem:[#allocation3 + $0x40] sm:$0xff]
      %v3347 = vld [vmem:[#allocation3 + $0x48] sm:$0xff]
      %v3348 = vld [vmem:[#allocation3 + $0x50] sm:$0xff]
      %v3349 = vld [vmem:[#allocation3 + $0x58] sm:$0xff]
      %v3350 = vld [vmem:[#allocation3 + $0x60] sm:$0xff]
      %v3351 = vld [vmem:[#allocation3 + $0x68] sm:$0xff]
      %v3352 = vld [vmem:[#allocation3 + $0x70] sm:$0xff]
      %v3353 = vld [vmem:[#allocation3 + $0x78] sm:$0xff]
      %v3354 = vld [vmem:[#allocation3 + $0x80] sm:$0xff]
      %v3355 = vld [vmem:[#allocation3 + $0x88] sm:$0xff]
      %v3356 = vld [vmem:[#allocation3 + $0x90] sm:$0xff]
      %v3357 = vld [vmem:[#allocation3 + $0x98] sm:$0xff]
      %v3358 = vld [vmem:[#allocation3 + $0xa0] sm:$0xff]
      %v3359 = vld [vmem:[#allocation3 + $0xa8] sm:$0xff]
      %v3360 = vld [vmem:[#allocation3 + $0xb0] sm:$0xff]
      %v3361 = vld [vmem:[#allocation3 + $0xb8] sm:$0xff]
      %v3362 = vld [vmem:[#allocation3 + $0xc0] sm:$0xff]
      %v3363 = vld [vmem:[#allocation3 + $0xc8] sm:$0xff]
      %v3364 = vld [vmem:[#allocation3 + $0xd0] sm:$0xff]
      %v3365 = vld [vmem:[#allocation3 + $0xd8] sm:$0xff]
      %v3366 = vld [vmem:[#allocation3 + $0xe0] sm:$0xff]
      %v3367 = vld [vmem:[#allocation3 + $0xe8] sm:$0xff]
      %v3368 = vld [vmem:[#allocation3 + $0xf0] sm:$0xff]
      %v3369 = vld [vmem:[#allocation3 + $0xf8] sm:$0xff]
      %v3370 = vld [vmem:[#allocation3 + $0x100] sm:$0xff]
      %v3371 = vld [vmem:[#allocation3 + $0x108] sm:$0xff]
      %v3372 = vld [vmem:[#allocation3 + $0x110] sm:$0xff]
      %v3373 = vld [vmem:[#allocation3 + $0x118] sm:$0xff]
      %v3374 = vld [vmem:[#allocation3 + $0x120] sm:$0xff]
      %v3375 = vld [vmem:[#allocation3 + $0x128] sm:$0xff]
      %v3376 = vld [vmem:[#allocation3 + $0x130] sm:$0xff]
      %v3377 = vld [vmem:[#allocation3 + $0x138] sm:$0xff]
      %v3378 = vld [vmem:[#allocation3 + $0x140] sm:$0xff]
      %v3379 = vld [vmem:[#allocation3 + $0x148] sm:$0xff]
      %v3380 = vld [vmem:[#allocation3 + $0x150] sm:$0xff]
      %v3381 = vld [vmem:[#allocation3 + $0x158] sm:$0xff]
      %v3382 = vld [vmem:[#allocation3 + $0x160] sm:$0xff]
      %v3383 = vld [vmem:[#allocation3 + $0x168] sm:$0xff]
      %v3384 = vld [vmem:[#allocation3 + $0x170] sm:$0xff]
      %v3385 = vld [vmem:[#allocation3 + $0x178] sm:$0xff]
      %v3386 = vld [vmem:[#allocation3 + $0x180] sm:$0xff]
      %v3387 = vld [vmem:[#allocation3 + $0x188] sm:$0xff]
      %v3388 = vld [vmem:[#allocation3 + $0x190] sm:$0xff]
      %v3389 = vld [vmem:[#allocation3 + $0x198] sm:$0xff]
      %v3390 = vld [vmem:[#allocation3 + $0x1a0] sm:$0xff]
      %v3391 = vld [vmem:[#allocation3 + $0x1a8] sm:$0xff]
      %v3392 = vld [vmem:[#allocation3 + $0x1b0] sm:$0xff]
      %v3393 = vld [vmem:[#allocation3 + $0x1b8] sm:$0xff]
      %v3394 = vld [vmem:[#allocation3 + $0x1c0] sm:$0xff]
      %v3395 = vld [vmem:[#allocation3 + $0x1c8] sm:$0xff]
      %v3396 = vld [vmem:[#allocation3 + $0x1d0] sm:$0xff]
      %v3397 = vld [vmem:[#allocation3 + $0x1d8] sm:$0xff]
      %v3398 = vld [vmem:[#allocation3 + $0x1e0] sm:$0xff]
      %v3399 = vld [vmem:[#allocation3 + $0x1e8] sm:$0xff]
      %v3400 = vld [vmem:[#allocation3 + $0x1f0] sm:$0xff]
      %v3401 = vld [vmem:[#allocation3 + $0x1f8] sm:$0xff]
      %v3402 = vld [vmem:[#allocation3 + $0x200] sm:$0xff]
      %v3403 = vld [vmem:[#allocation3 + $0x208] sm:$0xff]
      %v3404 = vld [vmem:[#allocation3 + $0x210] sm:$0xff]
      %v3405 = vld [vmem:[#allocation3 + $0x218] sm:$0xff]
      %v3406 = vld [vmem:[#allocation3 + $0x220] sm:$0xff]
      %v3407 = vld [vmem:[#allocation3 + $0x228] sm:$0xff]
      %v3408 = vld [vmem:[#allocation3 + $0x230] sm:$0xff]
      %v3409 = vld [vmem:[#allocation3 + $0x238] sm:$0xff]
      %v3410 = vld [vmem:[#allocation3 + $0x240] sm:$0xff]
      %v3411 = vld [vmem:[#allocation3 + $0x248] sm:$0xff]
      %v3412 = vld [vmem:[#allocation3 + $0x250] sm:$0xff]
      %v3413 = vld [vmem:[#allocation3 + $0x258] sm:$0xff]
      %v3414 = vld [vmem:[#allocation3 + $0x260] sm:$0xff]
      %v3415 = vld [vmem:[#allocation3 + $0x268] sm:$0xff]
      %v3416 = vld [vmem:[#allocation3 + $0x270] sm:$0xff]
      %v3417 = vld [vmem:[#allocation3 + $0x278] sm:$0xff]
      %v3418 = vld [vmem:[#allocation3 + $0x280] sm:$0xff]
      %v3419 = vld [vmem:[%s11] sm:$0xff]
      %v3420 = vld [vmem:[%s11 + $0x8] sm:$0xf]
      %v3421 = vld [vmem:[%s11 + $0xc] sm:$0xff]
      %v3422 = vld [vmem:[%s11 + $0x14] sm:$0xf]
      %v3423 = vld [vmem:[%s11 + $0x18] sm:$0xff]
      %v3424 = vld [vmem:[%s11 + $0x20] sm:$0xf]
      %v3425 = vld [vmem:[%s11 + $0x24] sm:$0xff]
      %v3426 = vld [vmem:[%s11 + $0x2c] sm:$0xf]
      %v3427 = vld [vmem:[%s11 + $0x30] sm:$0xff]
      %v3428 = vld [vmem:[%s11 + $0x38] sm:$0xf]
      %v3429 = vld [vmem:[%s11 + $0x3c] sm:$0xff]
      %v3430 = vld [vmem:[%s11 + $0x44] sm:$0xf]
      %v3431 = vld [vmem:[%s11 + $0x48] sm:$0xff]
      %v3432 = vld [vmem:[%s11 + $0x50] sm:$0xf]
      %v3433 = vld [vmem:[%s11 + $0x54] sm:$0xff]
      %v3434 = vld [vmem:[%s11 + $0x5c] sm:$0xf]
      %v3435 = vld [vmem:[%s11 + $0x60] sm:$0xff]
      %v3436 = vld [vmem:[%s11 + $0x68] sm:$0xf]
      %v3437 = vld [vmem:[%s11 + $0x6c] sm:$0xff]
      %v3438 = vld [vmem:[%s11 + $0x74] sm:$0xf]
      %v3439 = vld [vmem:[%s11 + $0x78] sm:$0xff]
      %v3440 = vld [vmem:[%s11 + $0x80] sm:$0xf]
      %v3441 = vld [vmem:[%s11 + $0x84] sm:$0xff]
      %v3442 = vld [vmem:[%s11 + $0x8c] sm:$0xf]
      %v3443 = vld [vmem:[%s11 + $0x90] sm:$0xff]
      %v3444 = vld [vmem:[%s11 + $0x98] sm:$0xf]
      %v3445 = vld [vmem:[%s11 + $0x9c] sm:$0xff]
      %v3446 = vld [vmem:[%s11 + $0xa4] sm:$0xf]
      %v3447 = vld [vmem:[%s11 + $0xa8] sm:$0xff]
      %v3448 = vld [vmem:[%s11 + $0xb0] sm:$0xf]
      %v3449 = vld [vmem:[%s11 + $0xb4] sm:$0xff]
      %v3450 = vld [vmem:[%s11 + $0xbc] sm:$0xf]
      %v3451 = vld [vmem:[%s11 + $0xc0] sm:$0xff]
      %v3452 = vld [vmem:[%s11 + $0xc8] sm:$0xf]
      %v3453 = vld [vmem:[%s11 + $0xcc] sm:$0xff]
      %v3454 = vld [vmem:[%s11 + $0xd4] sm:$0xf]
      %v3455 = vld [vmem:[%s11 + $0xd8] sm:$0xff]
      %v3456 = vld [vmem:[%s11 + $0xe0] sm:$0xf]
      %v3457 = vld [vmem:[%s11 + $0xe4] sm:$0xff]
      %v3458 = vld [vmem:[%s11 + $0xec] sm:$0xf]
      %v3459 = vld [vmem:[%s11 + $0xf0] sm:$0xff]
      %v3460 = vld [vmem:[%s11 + $0xf8] sm:$0xf]
      %v3461 = vld [vmem:[%s11 + $0xfc] sm:$0xff]
      %v3462 = vld [vmem:[%s11 + $0x104] sm:$0xf]
      %v3463 = vld [vmem:[%s11 + $0x108] sm:$0xff]
      %v3464 = vld [vmem:[%s11 + $0x110] sm:$0xf]
      %v3465 = vld [vmem:[%s11 + $0x114] sm:$0xff]
      %v3466 = vld [vmem:[%s11 + $0x11c] sm:$0xf]
      %v3467 = vld [vmem:[%s11 + $0x120] sm:$0xff]
      %v3468 = vld [vmem:[%s11 + $0x128] sm:$0xf]
      %v3469 = vld [vmem:[%s11 + $0x12c] sm:$0xff]
      %v3470 = vld [vmem:[%s11 + $0x134] sm:$0xf]
      %v3471 = vld [vmem:[%s11 + $0x138] sm:$0xff]
      %v3472 = vld [vmem:[%s11 + $0x140] sm:$0xf]
      %v3473 = vld [vmem:[%s11 + $0x144] sm:$0xff]
      %v3474 = vld [vmem:[%s11 + $0x14c] sm:$0xf]
      %v3475 = vld [vmem:[%s11 + $0x150] sm:$0xff]
      %v3476 = vld [vmem:[%s11 + $0x158] sm:$0xf]
      %v3477 = vld [vmem:[%s11 + $0x15c] sm:$0xff]
      %v3478 = vld [vmem:[%s11 + $0x164] sm:$0xf]
      %v3479 = vld [vmem:[%s11 + $0x168] sm:$0xff]
      %v3480 = vld [vmem:[%s11 + $0x170] sm:$0xf]
      %v3481 = vld [vmem:[%s11 + $0x174] sm:$0xff]
      %v3482 = vld [vmem:[%s11 + $0x17c] sm:$0xf]
      %v3483 = vld [vmem:[%s11 + $0x180] sm:$0xff]
      %v3484 = vld [vmem:[%s11 + $0x188] sm:$0xf]
      %v3485 = vld [vmem:[%s11 + $0x18c] sm:$0xff]
      %v3486 = vld [vmem:[%s11 + $0x194] sm:$0xf]
      %v3487 = vld [vmem:[%s11 + $0x198] sm:$0xff]
      %v3488 = vld [vmem:[%s11 + $0x1a0] sm:$0xf]
      %v3489 = vld [vmem:[%s11 + $0x1a4] sm:$0xff]
      %v3490 = vld [vmem:[%s11 + $0x1ac] sm:$0xf]
      %v3491 = vld [vmem:[%s11 + $0x1b0] sm:$0xff]
      %v3492 = vld [vmem:[%s11 + $0x1b8] sm:$0xf]
      %v3493 = vld [vmem:[%s11 + $0x1bc] sm:$0xff]
      %v3494 = vld [vmem:[%s11 + $0x1c4] sm:$0xf]
      %v3495 = vld [vmem:[%s11 + $0x1c8] sm:$0xff]
      %v3496 = vld [vmem:[%s11 + $0x1d0] sm:$0xf]
      %v3497 = vld [vmem:[%s11 + $0x1d4] sm:$0xff]
      %v3498 = vld [vmem:[%s11 + $0x1dc] sm:$0xf]
      %v3499 = vld [vmem:[%s11 + $0x1e0] sm:$0xff]
      %v3500 = vld [vmem:[%s11 + $0x1e8] sm:$0xf]
      %v3501 = vld [vmem:[%s11 + $0x1ec] sm:$0xff]
      %v3502 = vld [vmem:[%s11 + $0x1f4] sm:$0xf]
      %v3503 = vld [vmem:[%s11 + $0x1f8] sm:$0xff]
      %v3504 = vld [vmem:[%s11 + $0x200] sm:$0xf]
      %v3505 = vld [vmem:[%s11 + $0x204] sm:$0xff]
      %v3506 = vld [vmem:[%s11 + $0x20c] sm:$0xf]
      %v3507 = vld [vmem:[%s11 + $0x210] sm:$0xff]
      %v3508 = vld [vmem:[%s11 + $0x218] sm:$0xf]
      %v3509 = vld [vmem:[%s11 + $0x21c] sm:$0xff]
      %v3510 = vld [vmem:[%s11 + $0x224] sm:$0xf]
      %v3511 = vld [vmem:[%s11 + $0x228] sm:$0xff]
      %v3512 = vld [vmem:[%s11 + $0x230] sm:$0xf]
      %v3513 = vld [vmem:[%s11 + $0x234] sm:$0xff]
      %v3514 = vld [vmem:[%s11 + $0x23c] sm:$0xf]
      %v3611 = vunpack.c.l.b16 %v3419
      %v3612 = vunpack.c.h.b16 %v3419
      %v3613 = vunpack.c.l.b16 %v3420
      %v3614 = vunpack.c.l.b16 %v3421
      %v3615 = vunpack.c.h.b16 %v3421
      %v3616 = vunpack.c.l.b16 %v3422
      %v3617 = vunpack.c.l.b16 %v3423
      %v3618 = vunpack.c.h.b16 %v3423
      %v3619 = vunpack.c.l.b16 %v3424
      %v3620 = vunpack.c.l.b16 %v3425
      %v3621 = vunpack.c.h.b16 %v3425
      %v3622 = vunpack.c.l.b16 %v3426
      %v3623 = vunpack.c.l.b16 %v3427
      %v3624 = vunpack.c.h.b16 %v3427
      %v3625 = vunpack.c.l.b16 %v3428
      %v3626 = vunpack.c.l.b16 %v3429
      %v3627 = vunpack.c.h.b16 %v3429
      %v3628 = vunpack.c.l.b16 %v3430
      %v3629 = vunpack.c.l.b16 %v3431
      %v3630 = vunpack.c.h.b16 %v3431
      %v3631 = vunpack.c.l.b16 %v3432
      %v3632 = vunpack.c.l.b16 %v3433
      %v3633 = vunpack.c.h.b16 %v3433
      %v3634 = vunpack.c.l.b16 %v3434
      %v3635 = vunpack.c.l.b16 %v3435
      %v3636 = vunpack.c.h.b16 %v3435
      %v3637 = vunpack.c.l.b16 %v3436
      %v3638 = vunpack.c.l.b16 %v3437
      %v3639 = vunpack.c.h.b16 %v3437
      %v3640 = vunpack.c.l.b16 %v3438
      %v3641 = vunpack.c.l.b16 %v3439
      %v3642 = vunpack.c.h.b16 %v3439
      %v3643 = vunpack.c.l.b16 %v3440
      %v3644 = vunpack.c.l.b16 %v3441
      %v3645 = vunpack.c.h.b16 %v3441
      %v3646 = vunpack.c.l.b16 %v3442
      %v3647 = vunpack.c.l.b16 %v3443
      %v3648 = vunpack.c.h.b16 %v3443
      %v3649 = vunpack.c.l.b16 %v3444
      %v3650 = vunpack.c.l.b16 %v3445
      %v3651 = vunpack.c.h.b16 %v3445
      %v3652 = vunpack.c.l.b16 %v3446
      %v3653 = vunpack.c.l.b16 %v3447
      %v3654 = vunpack.c.h.b16 %v3447
      %v3655 = vunpack.c.l.b16 %v3448
      %v3656 = vunpack.c.l.b16 %v3449
      %v3657 = vunpack.c.h.b16 %v3449
      %v3658 = vunpack.c.l.b16 %v3450
      %v3659 = vunpack.c.l.b16 %v3451
      %v3660 = vunpack.c.h.b16 %v3451
      %v3661 = vunpack.c.l.b16 %v3452
      %v3662 = vunpack.c.l.b16 %v3453
      %v3663 = vunpack.c.h.b16 %v3453
      %v3664 = vunpack.c.l.b16 %v3454
      %v3665 = vunpack.c.l.b16 %v3455
      %v3666 = vunpack.c.h.b16 %v3455
      %v3667 = vunpack.c.l.b16 %v3456
      %v3668 = vunpack.c.l.b16 %v3457
      %v3669 = vunpack.c.h.b16 %v3457
      %v3670 = vunpack.c.l.b16 %v3458
      %v3671 = vunpack.c.l.b16 %v3459
      %v3672 = vunpack.c.h.b16 %v3459
      %v3673 = vunpack.c.l.b16 %v3460
      %v3674 = vunpack.c.l.b16 %v3461
      %v3675 = vunpack.c.h.b16 %v3461
      %v3676 = vunpack.c.l.b16 %v3462
      %v3677 = vunpack.c.l.b16 %v3463
      %v3678 = vunpack.c.h.b16 %v3463
      %v3679 = vunpack.c.l.b16 %v3464
      %v3680 = vunpack.c.l.b16 %v3465
      %v3681 = vunpack.c.h.b16 %v3465
      %v3682 = vunpack.c.l.b16 %v3466
      %v3683 = vunpack.c.l.b16 %v3467
      %v3684 = vunpack.c.h.b16 %v3467
      %v3685 = vunpack.c.l.b16 %v3468
      %v3686 = vunpack.c.l.b16 %v3469
      %v3687 = vunpack.c.h.b16 %v3469
      %v3688 = vunpack.c.l.b16 %v3470
      %v3689 = vunpack.c.l.b16 %v3471
      %v3690 = vunpack.c.h.b16 %v3471
      %v3691 = vunpack.c.l.b16 %v3472
      %v3692 = vunpack.c.l.b16 %v3473
      %v3693 = vunpack.c.h.b16 %v3473
      %v3694 = vunpack.c.l.b16 %v3474
      %v3695 = vunpack.c.l.b16 %v3475
      %v3696 = vunpack.c.h.b16 %v3475
      %v3697 = vunpack.c.l.b16 %v3476
      %v3698 = vunpack.c.l.b16 %v3477
      %v3699 = vunpack.c.h.b16 %v3477
      %v3700 = vunpack.c.l.b16 %v3478
      %v3701 = vunpack.c.l.b16 %v3479
      %v3702 = vunpack.c.h.b16 %v3479
      %v3703 = vunpack.c.l.b16 %v3480
      %v3704 = vunpack.c.l.b16 %v3481
      %v3705 = vunpack.c.h.b16 %v3481
      %v3706 = vunpack.c.l.b16 %v3482
      %v3707 = vunpack.c.l.b16 %v3483
      %v3708 = vunpack.c.h.b16 %v3483
      %v3709 = vunpack.c.l.b16 %v3484
      %v3710 = vunpack.c.l.b16 %v3485
      %v3711 = vunpack.c.h.b16 %v3485
      %v3712 = vunpack.c.l.b16 %v3486
      %v3713 = vunpack.c.l.b16 %v3487
      %v3714 = vunpack.c.h.b16 %v3487
      %v3715 = vunpack.c.l.b16 %v3488
      %v3716 = vunpack.c.l.b16 %v3489
      %v3717 = vunpack.c.h.b16 %v3489
      %v3718 = vunpack.c.l.b16 %v3490
      %v3719 = vunpack.c.l.b16 %v3491
      %v3720 = vunpack.c.h.b16 %v3491
      %v3721 = vunpack.c.l.b16 %v3492
      %v3722 = vunpack.c.l.b16 %v3493
      %v3723 = vunpack.c.h.b16 %v3493
      %v3724 = vunpack.c.l.b16 %v3494
      %v3725 = vunpack.c.l.b16 %v3495
      %v3726 = vunpack.c.h.b16 %v3495
      %v3727 = vunpack.c.l.b16 %v3496
      %v3728 = vunpack.c.l.b16 %v3497
      %v3729 = vunpack.c.h.b16 %v3497
      %v3730 = vunpack.c.l.b16 %v3498
      %v3731 = vunpack.c.l.b16 %v3499
      %v3732 = vunpack.c.h.b16 %v3499
      %v3733 = vunpack.c.l.b16 %v3500
      %v3734 = vunpack.c.l.b16 %v3501
      %v3735 = vunpack.c.h.b16 %v3501
      %v3736 = vunpack.c.l.b16 %v3502
      %v3737 = vunpack.c.l.b16 %v3503
      %v3738 = vunpack.c.h.b16 %v3503
      %v3739 = vunpack.c.l.b16 %v3504
      %v3740 = vunpack.c.l.b16 %v3505
      %v3741 = vunpack.c.h.b16 %v3505
      %v3742 = vunpack.c.l.b16 %v3506
      %v3743 = vunpack.c.l.b16 %v3507
      %v3744 = vunpack.c.h.b16 %v3507
      %v3745 = vunpack.c.l.b16 %v3508
      %v3746 = vunpack.c.l.b16 %v3509
      %v3747 = vunpack.c.h.b16 %v3509
      %v3748 = vunpack.c.l.b16 %v3510
      %v3749 = vunpack.c.l.b16 %v3511
      %v3750 = vunpack.c.h.b16 %v3511
      %v3751 = vunpack.c.l.b16 %v3512
      %v3752 = vunpack.c.l.b16 %v3513
      %v3753 = vunpack.c.h.b16 %v3513
      %v3754 = vunpack.c.l.b16 %v3514
      %v3755 = vpack.c.b16 %v3614, %v3611
      %v3756 = vpack.c.b16 %v3615, %v3612
      %v3757 = vpack.c.b16 %v3616, %v3613
      %v3758 = vpack.c.b16 %v3620, %v3617
      %v3759 = vpack.c.b16 %v3621, %v3618
      %v3760 = vpack.c.b16 %v3622, %v3619
      %v3761 = vpack.c.b16 %v3626, %v3623
      %v3762 = vpack.c.b16 %v3627, %v3624
      %v3763 = vpack.c.b16 %v3628, %v3625
      %v3764 = vpack.c.b16 %v3632, %v3629
      %v3765 = vpack.c.b16 %v3633, %v3630
      %v3766 = vpack.c.b16 %v3634, %v3631
      %v3767 = vpack.c.b16 %v3638, %v3635
      %v3768 = vpack.c.b16 %v3639, %v3636
      %v3769 = vpack.c.b16 %v3640, %v3637
      %v3770 = vpack.c.b16 %v3644, %v3641
      %v3771 = vpack.c.b16 %v3645, %v3642
      %v3772 = vpack.c.b16 %v3646, %v3643
      %v3773 = vpack.c.b16 %v3650, %v3647
      %v3774 = vpack.c.b16 %v3651, %v3648
      %v3775 = vpack.c.b16 %v3652, %v3649
      %v3776 = vpack.c.b16 %v3656, %v3653
      %v3777 = vpack.c.b16 %v3657, %v3654
      %v3778 = vpack.c.b16 %v3658, %v3655
      %v3779 = vpack.c.b16 %v3662, %v3659
      %v3780 = vpack.c.b16 %v3663, %v3660
      %v3781 = vpack.c.b16 %v3664, %v3661
      %v3782 = vpack.c.b16 %v3668, %v3665
      %v3783 = vpack.c.b16 %v3669, %v3666
      %v3784 = vpack.c.b16 %v3670, %v3667
      %v3785 = vpack.c.b16 %v3674, %v3671
      %v3786 = vpack.c.b16 %v3675, %v3672
      %v3787 = vpack.c.b16 %v3676, %v3673
      %v3788 = vpack.c.b16 %v3680, %v3677
      %v3789 = vpack.c.b16 %v3681, %v3678
      %v3790 = vpack.c.b16 %v3682, %v3679
      %v3791 = vpack.c.b16 %v3686, %v3683
      %v3792 = vpack.c.b16 %v3687, %v3684
      %v3793 = vpack.c.b16 %v3688, %v3685
      %v3794 = vpack.c.b16 %v3692, %v3689
      %v3795 = vpack.c.b16 %v3693, %v3690
      %v3796 = vpack.c.b16 %v3694, %v3691
      %v3797 = vpack.c.b16 %v3698, %v3695
      %v3798 = vpack.c.b16 %v3699, %v3696
      %v3799 = vpack.c.b16 %v3700, %v3697
      %v3800 = vpack.c.b16 %v3704, %v3701
      %v3801 = vpack.c.b16 %v3705, %v3702
      %v3802 = vpack.c.b16 %v3706, %v3703
      %v3803 = vpack.c.b16 %v3710, %v3707
      %v3804 = vpack.c.b16 %v3711, %v3708
      %v3805 = vpack.c.b16 %v3712, %v3709
      %v3806 = vpack.c.b16 %v3716, %v3713
      %v3807 = vpack.c.b16 %v3717, %v3714
      %v3808 = vpack.c.b16 %v3718, %v3715
      %v3809 = vpack.c.b16 %v3722, %v3719
      %v3810 = vpack.c.b16 %v3723, %v3720
      %v3811 = vpack.c.b16 %v3724, %v3721
      %v3812 = vpack.c.b16 %v3728, %v3725
      %v3813 = vpack.c.b16 %v3729, %v3726
      %v3814 = vpack.c.b16 %v3730, %v3727
      %v3815 = vpack.c.b16 %v3734, %v3731
      %v3816 = vpack.c.b16 %v3735, %v3732
      %v3817 = vpack.c.b16 %v3736, %v3733
      %v3818 = vpack.c.b16 %v3740, %v3737
      %v3819 = vpack.c.b16 %v3741, %v3738
      %v3820 = vpack.c.b16 %v3742, %v3739
      %v3821 = vpack.c.b16 %v3746, %v3743
      %v3822 = vpack.c.b16 %v3747, %v3744
      %v3823 = vpack.c.b16 %v3748, %v3745
      %v3824 = vpack.c.b16 %v3752, %v3749
      %v3825 = vpack.c.b16 %v3753, %v3750
      %v3826 = vpack.c.b16 %v3754, %v3751
      %3899 = vmatprep.subr.bf16.mxu0 %v3756
      %3900 = vmatpush1.bf16.msra.mxu0 %v3755
      %3901 = vmatprep.subr.bf16.mxu0 %v3759
      %3902 = vmatpush1.bf16.msra.mxu0 %v3758
      %3903 = vmatprep.subr.bf16.mxu0 %v3762
      %3904 = vmatpush1.bf16.msra.mxu0 %v3761
      %3905 = vmatprep.subr.bf16.mxu0 %v3765
      %3906 = vmatpush1.bf16.msra.mxu0 %v3764
      %3907 = vmatprep.subr.bf16.mxu0 %v3768
      %3908 = vmatpush1.bf16.msra.mxu0 %v3767
      %3909 = vmatprep.subr.bf16.mxu0 %v3771
      %3910 = vmatpush1.bf16.msra.mxu0 %v3770
      %3911 = vmatprep.subr.bf16.mxu0 %v3774
      %3912 = vmatpush1.bf16.msra.mxu0 %v3773
      %3913 = vmatprep.subr.bf16.mxu0 %v3777
      %3914 = vmatpush1.bf16.msra.mxu0 %v3776
      %3915 = vmatprep.subr.bf16.mxu0 %v3780
      %3916 = vmatpush1.bf16.msra.mxu0 %v3779
      %3917 = vmatprep.subr.bf16.mxu0 %v3783
      %3918 = vmatpush1.bf16.msra.mxu0 %v3782
      %3919 = vmatprep.subr.bf16.mxu0 %v3786
      %3920 = vmatpush1.bf16.msra.mxu0 %v3785
      %3921 = vmatprep.subr.bf16.mxu0 %v3789
      %3922 = vmatpush1.bf16.msra.mxu0 %v3788
      %3923 = vmatprep.subr.bf16.mxu0 %v3792
      %3924 = vmatpush1.bf16.msra.mxu0 %v3791
      %3925 = vmatprep.subr.bf16.mxu0 %v3795
      %3926 = vmatpush1.bf16.msra.mxu0 %v3794
      %3927 = vmatprep.subr.bf16.mxu0 %v3798
      %3928 = vmatpush1.bf16.msra.mxu0 %v3797
      %3929 = vmatprep.subr.bf16.mxu0 %v3801
      %3930 = vmatpush1.bf16.msra.mxu0 %v3800
      %3931 = vmatprep.mubr.bf16.mxu0 %v3339
      %3932 = vmatmul.mubr.bf16.gmra.mrb[0].mxu0 %v3338
      %v3933 = vpop.f32.mrb[0].mxu0
      %v3934 = vadd.f32 0.0, %v3933
      %v3935 = vpop.f32.mrb[0].mxu0
      %v3936 = vadd.f32 0.0, %v3935
      %v3937 = vpop.f32.mrb[0].mxu0
      %v3938 = vadd.f32 0.0, %v3937
      %v3939 = vpop.f32.mrb[0].mxu0
      %v3940 = vadd.f32 0.0, %v3939
      %3941 = vmatprep.mubr.bf16.mxu0 %v3342
      %3942 = vmatmul.mubr.bf16.gmra.mrb[0].mxu0 %v3341
      %v3943 = vpop.f32.mrb[0].mxu0
      %v3944 = vadd.f32 0.0, %v3943
      %v3945 = vpop.f32.mrb[0].mxu0
      %v3946 = vadd.f32 0.0, %v3945
      %v3947 = vpop.f32.mrb[0].mxu0
      %v3948 = vadd.f32 0.0, %v3947
      %v3949 = vpop.f32.mrb[0].mxu0
      %v3950 = vadd.f32 0.0, %v3949
      %3951 = vmatprep.mubr.bf16.mxu0 %v3345
      %3952 = vmatmul.mubr.bf16.gmra.mrb[0].mxu0 %v3344
      %v3953 = vpop.f32.mrb[0].mxu0
      %v3954 = vadd.f32 0.0, %v3953
      %v3955 = vpop.f32.mrb[0].mxu0
      %v3956 = vadd.f32 0.0, %v3955
      %v3957 = vpop.f32.mrb[0].mxu0
      %v3958 = vadd.f32 0.0, %v3957
      %v3959 = vpop.f32.mrb[0].mxu0
      %v3960 = vadd.f32 0.0, %v3959
      %3961 = vmatprep.mubr.bf16.mxu0 %v3348
      %3962 = vmatmul.mubr.bf16.gmra.mrb[0].mxu0 %v3347
      %v3963 = vpop.f32.mrb[0].mxu0
      %v3964 = vadd.f32 0.0, %v3963
      %v3965 = vpop.f32.mrb[0].mxu0
      %v3966 = vadd.f32 0.0, %v3965
      %v3967 = vpop.f32.mrb[0].mxu0
      %v3968 = vadd.f32 0.0, %v3967
      %v3969 = vpop.f32.mrb[0].mxu0
      %v3970 = vadd.f32 0.0, %v3969
      %3971 = vmatprep.mubr.bf16.mxu0 %v3351
      %3972 = vmatmul.mubr.bf16.gmra.mrb[0].mxu0 %v3350
      %v3973 = vpop.f32.mrb[0].mxu0
      %v3974 = vadd.f32 0.0, %v3973
      %v3975 = vpop.f32.mrb[0].mxu0
      %v3976 = vadd.f32 0.0, %v3975
      %v3977 = vpop.f32.mrb[0].mxu0
      %v3978 = vadd.f32 0.0, %v3977
      %v3979 = vpop.f32.mrb[0].mxu0
      %v3980 = vadd.f32 0.0, %v3979
      %3981 = vmatprep.mubr.bf16.mxu0 %v3354
      %3982 = vmatmul.mubr.bf16.gmra.mrb[0].mxu0 %v3353
      %v3983 = vpop.f32.mrb[0].mxu0
      %v3984 = vadd.f32 0.0, %v3983
      %v3985 = vpop.f32.mrb[0].mxu0
      %v3986 = vadd.f32 0.0, %v3985
      %v3987 = vpop.f32.mrb[0].mxu0
      %v3988 = vadd.f32 0.0, %v3987
      %v3989 = vpop.f32.mrb[0].mxu0
      %v3990 = vadd.f32 0.0, %v3989
      %3991 = vmatprep.mubr.bf16.mxu0 %v3357
      %3992 = vmatmul.mubr.bf16.gmra.mrb[0].mxu0 %v3356
      %v3993 = vpop.f32.mrb[0].mxu0
      %v3994 = vadd.f32 0.0, %v3993
      %v3995 = vpop.f32.mrb[0].mxu0
      %v3996 = vadd.f32 0.0, %v3995
      %v3997 = vpop.f32.mrb[0].mxu0
      %v3998 = vadd.f32 0.0, %v3997
      %v3999 = vpop.f32.mrb[0].mxu0
      %v4000 = vadd.f32 0.0, %v3999
      %4001 = vmatprep.mubr.bf16.mxu0 %v3360
      %4002 = vmatmul.mubr.bf16.gmra.mrb[0].mxu0 %v3359
      %v4003 = vpop.f32.mrb[0].mxu0
      %v4004 = vadd.f32 0.0, %v4003
      %v4005 = vpop.f32.mrb[0].mxu0
      %v4006 = vadd.f32 0.0, %v4005
      %v4007 = vpop.f32.mrb[0].mxu0
      %v4008 = vadd.f32 0.0, %v4007
      %v4009 = vpop.f32.mrb[0].mxu0
      %v4010 = vadd.f32 0.0, %v4009
      %4011 = vmatprep.mubr.bf16.mxu0 %v3363
      %4012 = vmatmul.mubr.bf16.gmra.mrb[0].mxu0 %v3362
      %v4013 = vpop.f32.mrb[0].mxu0
      %v4014 = vadd.f32 0.0, %v4013
      %v4015 = vpop.f32.mrb[0].mxu0
      %v4016 = vadd.f32 0.0, %v4015
      %v4017 = vpop.f32.mrb[0].mxu0
      %v4018 = vadd.f32 0.0, %v4017
      %v4019 = vpop.f32.mrb[0].mxu0
      %v4020 = vadd.f32 0.0, %v4019
      %4021 = vmatprep.mubr.bf16.mxu0 %v3366
      %4022 = vmatmul.mubr.bf16.gmra.mrb[0].mxu0 %v3365
      %v4023 = vpop.f32.mrb[0].mxu0
      %v4024 = vadd.f32 0.0, %v4023
      %v4025 = vpop.f32.mrb[0].mxu0
      %v4026 = vadd.f32 0.0, %v4025
      %v4027 = vpop.f32.mrb[0].mxu0
      %v4028 = vadd.f32 0.0, %v4027
      %v4029 = vpop.f32.mrb[0].mxu0
      %v4030 = vadd.f32 0.0, %v4029
      %4031 = vmatprep.mubr.bf16.mxu0 %v3369
      %4032 = vmatmul.mubr.bf16.gmra.mrb[0].mxu0 %v3368
      %v4033 = vpop.f32.mrb[0].mxu0
      %v4034 = vadd.f32 0.0, %v4033
      %v4035 = vpop.f32.mrb[0].mxu0
      %v4036 = vadd.f32 0.0, %v4035
      %v4037 = vpop.f32.mrb[0].mxu0
      %v4038 = vadd.f32 0.0, %v4037
      %v4039 = vpop.f32.mrb[0].mxu0
      %v4040 = vadd.f32 0.0, %v4039
      %4041 = vmatprep.mubr.bf16.mxu0 %v3372
      %4042 = vmatmul.mubr.bf16.gmra.mrb[0].mxu0 %v3371
      %v4043 = vpop.f32.mrb[0].mxu0
      %v4044 = vadd.f32 0.0, %v4043
      %v4045 = vpop.f32.mrb[0].mxu0
      %v4046 = vadd.f32 0.0, %v4045
      %v4047 = vpop.f32.mrb[0].mxu0
      %v4048 = vadd.f32 0.0, %v4047
      %v4049 = vpop.f32.mrb[0].mxu0
      %v4050 = vadd.f32 0.0, %v4049
      %4051 = vmatprep.mubr.bf16.mxu0 %v3375
      %4052 = vmatmul.mubr.bf16.gmra.mrb[0].mxu0 %v3374
      %v4053 = vpop.f32.mrb[0].mxu0
      %v4054 = vadd.f32 0.0, %v4053
      %v4055 = vpop.f32.mrb[0].mxu0
      %v4056 = vadd.f32 0.0, %v4055
      %v4057 = vpop.f32.mrb[0].mxu0
      %v4058 = vadd.f32 0.0, %v4057
      %v4059 = vpop.f32.mrb[0].mxu0
      %v4060 = vadd.f32 0.0, %v4059
      %4061 = vmatprep.mubr.bf16.mxu0 %v3378
      %4062 = vmatmul.mubr.bf16.gmra.mrb[0].mxu0 %v3377
      %v4063 = vpop.f32.mrb[0].mxu0
      %v4064 = vadd.f32 0.0, %v4063
      %v4065 = vpop.f32.mrb[0].mxu0
      %v4066 = vadd.f32 0.0, %v4065
      %v4067 = vpop.f32.mrb[0].mxu0
      %v4068 = vadd.f32 0.0, %v4067
      %v4069 = vpop.f32.mrb[0].mxu0
      %v4070 = vadd.f32 0.0, %v4069
      %4071 = vmatprep.mubr.bf16.mxu0 %v3381
      %4072 = vmatmul.mubr.bf16.gmra.mrb[0].mxu0 %v3380
      %v4073 = vpop.f32.mrb[0].mxu0
      %v4074 = vadd.f32 0.0, %v4073
      %v4075 = vpop.f32.mrb[0].mxu0
      %v4076 = vadd.f32 0.0, %v4075
      %v4077 = vpop.f32.mrb[0].mxu0
      %v4078 = vadd.f32 0.0, %v4077
      %v4079 = vpop.f32.mrb[0].mxu0
      %v4080 = vadd.f32 0.0, %v4079
      %4081 = vmatprep.mubr.bf16.mxu0 %v3384
      %4082 = vmatmul.mubr.bf16.gmra.mrb[0].mxu0 %v3383
      %v4083 = vpop.f32.mrb[0].mxu0
      %v4084 = vadd.f32 0.0, %v4083
      %v4085 = vpop.f32.mrb[0].mxu0
      %v4086 = vadd.f32 0.0, %v4085
      %v4087 = vpop.f32.mrb[0].mxu0
      %v4088 = vadd.f32 0.0, %v4087
      %v4089 = vpop.f32.mrb[0].mxu0
      %v4090 = vadd.f32 0.0, %v4089
      %4091 = vmatprep.mubr.bf16.mxu0 %v3387
      %4092 = vmatmul.mubr.bf16.gmra.mrb[0].mxu0 %v3386
      %v4093 = vpop.f32.mrb[0].mxu0
      %v4094 = vadd.f32 0.0, %v4093
      %v4095 = vpop.f32.mrb[0].mxu0
      %v4096 = vadd.f32 0.0, %v4095
      %v4097 = vpop.f32.mrb[0].mxu0
      %v4098 = vadd.f32 0.0, %v4097
      %v4099 = vpop.f32.mrb[0].mxu0
      %v4100 = vadd.f32 0.0, %v4099
      %4101 = vmatprep.mubr.bf16.mxu0 %v3390
      %4102 = vmatmul.mubr.bf16.gmra.mrb[0].mxu0 %v3389
      %v4103 = vpop.f32.mrb[0].mxu0
      %v4104 = vadd.f32 0.0, %v4103
      %v4105 = vpop.f32.mrb[0].mxu0
      %v4106 = vadd.f32 0.0, %v4105
      %v4107 = vpop.f32.mrb[0].mxu0
      %v4108 = vadd.f32 0.0, %v4107
      %v4109 = vpop.f32.mrb[0].mxu0
      %v4110 = vadd.f32 0.0, %v4109
      %4111 = vmatprep.mubr.bf16.mxu0 %v3393
      %4112 = vmatmul.mubr.bf16.gmra.mrb[0].mxu0 %v3392
      %v4113 = vpop.f32.mrb[0].mxu0
      %v4114 = vadd.f32 0.0, %v4113
      %v4115 = vpop.f32.mrb[0].mxu0
      %v4116 = vadd.f32 0.0, %v4115
      %v4117 = vpop.f32.mrb[0].mxu0
      %v4118 = vadd.f32 0.0, %v4117
      %v4119 = vpop.f32.mrb[0].mxu0
      %v4120 = vadd.f32 0.0, %v4119
      %4121 = vmatprep.mubr.bf16.mxu0 %v3396
      %4122 = vmatmul.mubr.bf16.gmra.mrb[0].mxu0 %v3395
      %v4123 = vpop.f32.mrb[0].mxu0
      %v4124 = vadd.f32 0.0, %v4123
      %v4125 = vpop.f32.mrb[0].mxu0
      %v4126 = vadd.f32 0.0, %v4125
      %v4127 = vpop.f32.mrb[0].mxu0
      %v4128 = vadd.f32 0.0, %v4127
      %v4129 = vpop.f32.mrb[0].mxu0
      %v4130 = vadd.f32 0.0, %v4129
      %4131 = vmatprep.mubr.bf16.mxu0 %v3399
      %4132 = vmatmul.mubr.bf16.gmra.mrb[0].mxu0 %v3398
      %v4133 = vpop.f32.mrb[0].mxu0
      %v4134 = vadd.f32 0.0, %v4133
      %v4135 = vpop.f32.mrb[0].mxu0
      %v4136 = vadd.f32 0.0, %v4135
      %v4137 = vpop.f32.mrb[0].mxu0
      %v4138 = vadd.f32 0.0, %v4137
      %v4139 = vpop.f32.mrb[0].mxu0
      %v4140 = vadd.f32 0.0, %v4139
      %4141 = vmatprep.mubr.bf16.mxu0 %v3402
      %4142 = vmatmul.mubr.bf16.gmra.mrb[0].mxu0 %v3401
      %v4143 = vpop.f32.mrb[0].mxu0
      %v4144 = vadd.f32 0.0, %v4143
      %v4145 = vpop.f32.mrb[0].mxu0
      %v4146 = vadd.f32 0.0, %v4145
      %v4147 = vpop.f32.mrb[0].mxu0
      %v4148 = vadd.f32 0.0, %v4147
      %v4149 = vpop.f32.mrb[0].mxu0
      %v4150 = vadd.f32 0.0, %v4149
      %4151 = vmatprep.mubr.bf16.mxu0 %v3405
      %4152 = vmatmul.mubr.bf16.gmra.mrb[0].mxu0 %v3404
      %v4153 = vpop.f32.mrb[0].mxu0
      %v4154 = vadd.f32 0.0, %v4153
      %v4155 = vpop.f32.mrb[0].mxu0
      %v4156 = vadd.f32 0.0, %v4155
      %v4157 = vpop.f32.mrb[0].mxu0
      %v4158 = vadd.f32 0.0, %v4157
      %v4159 = vpop.f32.mrb[0].mxu0
      %v4160 = vadd.f32 0.0, %v4159
      %4161 = vmatprep.mubr.bf16.mxu0 %v3408
      %4162 = vmatmul.mubr.bf16.gmra.mrb[0].mxu0 %v3407
      %v4163 = vpop.f32.mrb[0].mxu0
      %v4164 = vadd.f32 0.0, %v4163
      %v4165 = vpop.f32.mrb[0].mxu0
      %v4166 = vadd.f32 0.0, %v4165
      %v4167 = vpop.f32.mrb[0].mxu0
      %v4168 = vadd.f32 0.0, %v4167
      %v4169 = vpop.f32.mrb[0].mxu0
      %v4170 = vadd.f32 0.0, %v4169
      %4171 = vmatprep.mubr.bf16.mxu0 %v3411
      %4172 = vmatmul.mubr.bf16.gmra.mrb[0].mxu0 %v3410
      %v4173 = vpop.f32.mrb[0].mxu0
      %v4174 = vadd.f32 0.0, %v4173
      %v4175 = vpop.f32.mrb[0].mxu0
      %v4176 = vadd.f32 0.0, %v4175
      %v4177 = vpop.f32.mrb[0].mxu0
      %v4178 = vadd.f32 0.0, %v4177
      %v4179 = vpop.f32.mrb[0].mxu0
      %v4180 = vadd.f32 0.0, %v4179
      %4181 = vmatprep.mubr.bf16.mxu0 %v3414
      %4182 = vmatmul.mubr.bf16.gmra.mrb[0].mxu0 %v3413
      %v4183 = vpop.f32.mrb[0].mxu0
      %v4184 = vadd.f32 0.0, %v4183
      %v4185 = vpop.f32.mrb[0].mxu0
      %v4186 = vadd.f32 0.0, %v4185
      %v4187 = vpop.f32.mrb[0].mxu0
      %v4188 = vadd.f32 0.0, %v4187
      %v4189 = vpop.f32.mrb[0].mxu0
      %v4190 = vadd.f32 0.0, %v4189
      %4191 = vmatprep.mubr.bf16.mxu0 %v3417
      %4192 = vmatmul.mubr.bf16.gmra.mrb[0].mxu0 %v3416
      %v4193 = vpop.f32.mrb[0].mxu0
      %v4194 = vadd.f32 0.0, %v4193
      %v4195 = vpop.f32.mrb[0].mxu0
      %v4196 = vadd.f32 0.0, %v4195
      %v4197 = vpop.f32.mrb[0].mxu0
      %v4198 = vadd.f32 0.0, %v4197
      %v4199 = vpop.f32.mrb[0].mxu0
      %v4200 = vadd.f32 0.0, %v4199
      %4201 = vdwg.mxu0
      %4202 = vmatprep.subr.bf16.mxu0 %v3804
      %4203 = vmatpush1.bf16.msra.mxu0 %v3803
      %4204 = vmatprep.subr.bf16.mxu0 %v3807
      %4205 = vmatpush1.bf16.msra.mxu0 %v3806
      %4206 = vmatprep.subr.bf16.mxu0 %v3810
      %4207 = vmatpush1.bf16.msra.mxu0 %v3809
      %4208 = vmatprep.subr.bf16.mxu0 %v3813
      %4209 = vmatpush1.bf16.msra.mxu0 %v3812
      %4210 = vmatprep.subr.bf16.mxu0 %v3816
      %4211 = vmatpush1.bf16.msra.mxu0 %v3815
      %4212 = vmatprep.subr.bf16.mxu0 %v3819
      %4213 = vmatpush1.bf16.msra.mxu0 %v3818
      %4214 = vmatprep.subr.bf16.mxu0 %v3822
      %4215 = vmatpush1.bf16.msra.mxu0 %v3821
      %4216 = vmatprep.subr.bf16.mxu0 %v3825
      %4217 = vmatpush1.bf16.msra.mxu0 %v3824
      %4218 = vmatprep.subr.bf16.mxu0 0
      %4219 = vmatpush1.bf16.msra.mxu0 0
      %4220 = vmatprep.subr.bf16.mxu0 0
      %4221 = vmatpush1.bf16.msra.mxu0 0
      %4222 = vmatprep.subr.bf16.mxu0 0
      %4223 = vmatpush1.bf16.msra.mxu0 0
      %4224 = vmatprep.subr.bf16.mxu0 0
      %4225 = vmatpush1.bf16.msra.mxu0 0
      %4226 = vmatprep.subr.bf16.mxu0 0
      %4227 = vmatpush1.bf16.msra.mxu0 0
      %4228 = vmatprep.subr.bf16.mxu0 0
      %4229 = vmatpush1.bf16.msra.mxu0 0
      %4230 = vmatprep.subr.bf16.mxu0 0
      %4231 = vmatpush1.bf16.msra.mxu0 0
      %4232 = vmatprep.subr.bf16.mxu0 0
      %4233 = vmatpush1.bf16.msra.mxu0 0
      %4234 = vmatprep.mubr.bf16.mxu0 0
      %4235 = vmatmul.mubr.bf16.gmra.mrb[0].mxu0 %v3340
      %v4236 = vpop.f32.mrb[0].mxu0
      %v4237 = vadd.f32 %v3934, %v4236
      %v4238 = vpop.f32.mrb[0].mxu0
      %v4239 = vadd.f32 %v3936, %v4238
      %v4240 = vpop.f32.mrb[0].mxu0
      %v4241 = vadd.f32 %v3938, %v4240
      %v4242 = vpop.f32.mrb[0].mxu0
      %v4243 = vadd.f32 %v3940, %v4242
      %4244 = vmatprep.mubr.bf16.mxu0 0
      %4245 = vmatmul.mubr.bf16.gmra.mrb[0].mxu0 %v3343
      %v4246 = vpop.f32.mrb[0].mxu0
      %v4247 = vadd.f32 %v3944, %v4246
      %v4248 = vpop.f32.mrb[0].mxu0
      %v4249 = vadd.f32 %v3946, %v4248
      %v4250 = vpop.f32.mrb[0].mxu0
      %v4251 = vadd.f32 %v3948, %v4250
      %v4252 = vpop.f32.mrb[0].mxu0
      %v4253 = vadd.f32 %v3950, %v4252
      %4254 = vmatprep.mubr.bf16.mxu0 0
      %4255 = vmatmul.mubr.bf16.gmra.mrb[0].mxu0 %v3346
      %v4256 = vpop.f32.mrb[0].mxu0
      %v4257 = vadd.f32 %v3954, %v4256
      %v4258 = vpop.f32.mrb[0].mxu0
      %v4259 = vadd.f32 %v3956, %v4258
      %v4260 = vpop.f32.mrb[0].mxu0
      %v4261 = vadd.f32 %v3958, %v4260
      %v4262 = vpop.f32.mrb[0].mxu0
      %v4263 = vadd.f32 %v3960, %v4262
      %4264 = vmatprep.mubr.bf16.mxu0 0
      %4265 = vmatmul.mubr.bf16.gmra.mrb[0].mxu0 %v3349
      %v4266 = vpop.f32.mrb[0].mxu0
      %v4267 = vadd.f32 %v3964, %v4266
      %v4268 = vpop.f32.mrb[0].mxu0
      %v4269 = vadd.f32 %v3966, %v4268
      %v4270 = vpop.f32.mrb[0].mxu0
      %v4271 = vadd.f32 %v3968, %v4270
      %v4272 = vpop.f32.mrb[0].mxu0
      %v4273 = vadd.f32 %v3970, %v4272
      %4274 = vmatprep.mubr.bf16.mxu0 0
      %4275 = vmatmul.mubr.bf16.gmra.mrb[0].mxu0 %v3352
      %v4276 = vpop.f32.mrb[0].mxu0
      %v4277 = vadd.f32 %v3974, %v4276
      %v4278 = vpop.f32.mrb[0].mxu0
      %v4279 = vadd.f32 %v3976, %v4278
      %v4280 = vpop.f32.mrb[0].mxu0
      %v4281 = vadd.f32 %v3978, %v4280
      %v4282 = vpop.f32.mrb[0].mxu0
      %v4283 = vadd.f32 %v3980, %v4282
      %4284 = vmatprep.mubr.bf16.mxu0 0
      %4285 = vmatmul.mubr.bf16.gmra.mrb[0].mxu0 %v3355
      %v4286 = vpop.f32.mrb[0].mxu0
      %v4287 = vadd.f32 %v3984, %v4286
      %v4288 = vpop.f32.mrb[0].mxu0
      %v4289 = vadd.f32 %v3986, %v4288
      %v4290 = vpop.f32.mrb[0].mxu0
      %v4291 = vadd.f32 %v3988, %v4290
      %v4292 = vpop.f32.mrb[0].mxu0
      %v4293 = vadd.f32 %v3990, %v4292
      %4294 = vmatprep.mubr.bf16.mxu0 0
      %4295 = vmatmul.mubr.bf16.gmra.mrb[0].mxu0 %v3358
      %v4296 = vpop.f32.mrb[0].mxu0
      %v4297 = vadd.f32 %v3994, %v4296
      %v4298 = vpop.f32.mrb[0].mxu0
      %v4299 = vadd.f32 %v3996, %v4298
      %v4300 = vpop.f32.mrb[0].mxu0
      %v4301 = vadd.f32 %v3998, %v4300
      %v4302 = vpop.f32.mrb[0].mxu0
      %v4303 = vadd.f32 %v4000, %v4302
      %4304 = vmatprep.mubr.bf16.mxu0 0
      %4305 = vmatmul.mubr.bf16.gmra.mrb[0].mxu0 %v3361
      %v4306 = vpop.f32.mrb[0].mxu0
      %v4307 = vadd.f32 %v4004, %v4306
      %v4308 = vpop.f32.mrb[0].mxu0
      %v4309 = vadd.f32 %v4006, %v4308
      %v4310 = vpop.f32.mrb[0].mxu0
      %v4311 = vadd.f32 %v4008, %v4310
      %v4312 = vpop.f32.mrb[0].mxu0
      %v4313 = vadd.f32 %v4010, %v4312
      %4314 = vmatprep.mubr.bf16.mxu0 0
      %4315 = vmatmul.mubr.bf16.gmra.mrb[0].mxu0 %v3364
      %v4316 = vpop.f32.mrb[0].mxu0
      %v4317 = vadd.f32 %v4014, %v4316
      %v4318 = vpop.f32.mrb[0].mxu0
      %v4319 = vadd.f32 %v4016, %v4318
      %v4320 = vpop.f32.mrb[0].mxu0
      %v4321 = vadd.f32 %v4018, %v4320
      %v4322 = vpop.f32.mrb[0].mxu0
      %v4323 = vadd.f32 %v4020, %v4322
      %4324 = vmatprep.mubr.bf16.mxu0 0
      %4325 = vmatmul.mubr.bf16.gmra.mrb[0].mxu0 %v3367
      %v4326 = vpop.f32.mrb[0].mxu0
      %v4327 = vadd.f32 %v4024, %v4326
      %v4328 = vpop.f32.mrb[0].mxu0
      %v4329 = vadd.f32 %v4026, %v4328
      %v4330 = vpop.f32.mrb[0].mxu0
      %v4331 = vadd.f32 %v4028, %v4330
      %v4332 = vpop.f32.mrb[0].mxu0
      %v4333 = vadd.f32 %v4030, %v4332
      %4334 = vmatprep.mubr.bf16.mxu0 0
      %4335 = vmatmul.mubr.bf16.gmra.mrb[0].mxu0 %v3370
      %v4336 = vpop.f32.mrb[0].mxu0
      %v4337 = vadd.f32 %v4034, %v4336
      %v4338 = vpop.f32.mrb[0].mxu0
      %v4339 = vadd.f32 %v4036, %v4338
      %v4340 = vpop.f32.mrb[0].mxu0
      %v4341 = vadd.f32 %v4038, %v4340
      %v4342 = vpop.f32.mrb[0].mxu0
      %v4343 = vadd.f32 %v4040, %v4342
      %4344 = vmatprep.mubr.bf16.mxu0 0
      %4345 = vmatmul.mubr.bf16.gmra.mrb[0].mxu0 %v3373
      %v4346 = vpop.f32.mrb[0].mxu0
      %v4347 = vadd.f32 %v4044, %v4346
      %v4348 = vpop.f32.mrb[0].mxu0
      %v4349 = vadd.f32 %v4046, %v4348
      %v4350 = vpop.f32.mrb[0].mxu0
      %v4351 = vadd.f32 %v4048, %v4350
      %v4352 = vpop.f32.mrb[0].mxu0
      %v4353 = vadd.f32 %v4050, %v4352
      %4354 = vmatprep.mubr.bf16.mxu0 0
      %4355 = vmatmul.mubr.bf16.gmra.mrb[0].mxu0 %v3376
      %v4356 = vpop.f32.mrb[0].mxu0
      %v4357 = vadd.f32 %v4054, %v4356
      %v4358 = vpop.f32.mrb[0].mxu0
      %v4359 = vadd.f32 %v4056, %v4358
      %v4360 = vpop.f32.mrb[0].mxu0
      %v4361 = vadd.f32 %v4058, %v4360
      %v4362 = vpop.f32.mrb[0].mxu0
      %v4363 = vadd.f32 %v4060, %v4362
      %4364 = vmatprep.mubr.bf16.mxu0 0
      %4365 = vmatmul.mubr.bf16.gmra.mrb[0].mxu0 %v3379
      %v4366 = vpop.f32.mrb[0].mxu0
      %v4367 = vadd.f32 %v4064, %v4366
      %v4368 = vpop.f32.mrb[0].mxu0
      %v4369 = vadd.f32 %v4066, %v4368
      %v4370 = vpop.f32.mrb[0].mxu0
      %v4371 = vadd.f32 %v4068, %v4370
      %v4372 = vpop.f32.mrb[0].mxu0
      %v4373 = vadd.f32 %v4070, %v4372
      %4374 = vmatprep.mubr.bf16.mxu0 0
      %4375 = vmatmul.mubr.bf16.gmra.mrb[0].mxu0 %v3382
      %v4376 = vpop.f32.mrb[0].mxu0
      %v4377 = vadd.f32 %v4074, %v4376
      %v4378 = vpop.f32.mrb[0].mxu0
      %v4379 = vadd.f32 %v4076, %v4378
      %v4380 = vpop.f32.mrb[0].mxu0
      %v4381 = vadd.f32 %v4078, %v4380
      %v4382 = vpop.f32.mrb[0].mxu0
      %v4383 = vadd.f32 %v4080, %v4382
      %4384 = vmatprep.mubr.bf16.mxu0 0
      %4385 = vmatmul.mubr.bf16.gmra.mrb[0].mxu0 %v3385
      %v4386 = vpop.f32.mrb[0].mxu0
      %v4387 = vadd.f32 %v4084, %v4386
      %v4388 = vpop.f32.mrb[0].mxu0
      %v4389 = vadd.f32 %v4086, %v4388
      %v4390 = vpop.f32.mrb[0].mxu0
      %v4391 = vadd.f32 %v4088, %v4390
      %v4392 = vpop.f32.mrb[0].mxu0
      %v4393 = vadd.f32 %v4090, %v4392
      %4394 = vmatprep.mubr.bf16.mxu0 0
      %4395 = vmatmul.mubr.bf16.gmra.mrb[0].mxu0 %v3388
      %v4396 = vpop.f32.mrb[0].mxu0
      %v4397 = vadd.f32 %v4094, %v4396
      %v4398 = vpop.f32.mrb[0].mxu0
      %v4399 = vadd.f32 %v4096, %v4398
      %v4400 = vpop.f32.mrb[0].mxu0
      %v4401 = vadd.f32 %v4098, %v4400
      %v4402 = vpop.f32.mrb[0].mxu0
      %v4403 = vadd.f32 %v4100, %v4402
      %4404 = vmatprep.mubr.bf16.mxu0 0
      %4405 = vmatmul.mubr.bf16.gmra.mrb[0].mxu0 %v3391
      %v4406 = vpop.f32.mrb[0].mxu0
      %v4407 = vadd.f32 %v4104, %v4406
      %v4408 = vpop.f32.mrb[0].mxu0
      %v4409 = vadd.f32 %v4106, %v4408
      %v4410 = vpop.f32.mrb[0].mxu0
      %v4411 = vadd.f32 %v4108, %v4410
      %v4412 = vpop.f32.mrb[0].mxu0
      %v4413 = vadd.f32 %v4110, %v4412
      %4414 = vmatprep.mubr.bf16.mxu0 0
      %4415 = vmatmul.mubr.bf16.gmra.mrb[0].mxu0 %v3394
      %v4416 = vpop.f32.mrb[0].mxu0
      %v4417 = vadd.f32 %v4114, %v4416
      %v4418 = vpop.f32.mrb[0].mxu0
      %v4419 = vadd.f32 %v4116, %v4418
      %v4420 = vpop.f32.mrb[0].mxu0
      %v4421 = vadd.f32 %v4118, %v4420
      %v4422 = vpop.f32.mrb[0].mxu0
      %v4423 = vadd.f32 %v4120, %v4422
      %4424 = vmatprep.mubr.bf16.mxu0 0
      %4425 = vmatmul.mubr.bf16.gmra.mrb[0].mxu0 %v3397
      %v4426 = vpop.f32.mrb[0].mxu0
      %v4427 = vadd.f32 %v4124, %v4426
      %v4428 = vpop.f32.mrb[0].mxu0
      %v4429 = vadd.f32 %v4126, %v4428
      %v4430 = vpop.f32.mrb[0].mxu0
      %v4431 = vadd.f32 %v4128, %v4430
      %v4432 = vpop.f32.mrb[0].mxu0
      %v4433 = vadd.f32 %v4130, %v4432
      %4434 = vmatprep.mubr.bf16.mxu0 0
      %4435 = vmatmul.mubr.bf16.gmra.mrb[0].mxu0 %v3400
      %v4436 = vpop.f32.mrb[0].mxu0
      %v4437 = vadd.f32 %v4134, %v4436
      %v4438 = vpop.f32.mrb[0].mxu0
      %v4439 = vadd.f32 %v4136, %v4438
      %v4440 = vpop.f32.mrb[0].mxu0
      %v4441 = vadd.f32 %v4138, %v4440
      %v4442 = vpop.f32.mrb[0].mxu0
      %v4443 = vadd.f32 %v4140, %v4442
      %4444 = vmatprep.mubr.bf16.mxu0 0
      %4445 = vmatmul.mubr.bf16.gmra.mrb[0].mxu0 %v3403
      %v4446 = vpop.f32.mrb[0].mxu0
      %v4447 = vadd.f32 %v4144, %v4446
      %v4448 = vpop.f32.mrb[0].mxu0
      %v4449 = vadd.f32 %v4146, %v4448
      %v4450 = vpop.f32.mrb[0].mxu0
      %v4451 = vadd.f32 %v4148, %v4450
      %v4452 = vpop.f32.mrb[0].mxu0
      %v4453 = vadd.f32 %v4150, %v4452
      %4454 = vmatprep.mubr.bf16.mxu0 0
      %4455 = vmatmul.mubr.bf16.gmra.mrb[0].mxu0 %v3406
      %v4456 = vpop.f32.mrb[0].mxu0
      %v4457 = vadd.f32 %v4154, %v4456
      %v4458 = vpop.f32.mrb[0].mxu0
      %v4459 = vadd.f32 %v4156, %v4458
      %v4460 = vpop.f32.mrb[0].mxu0
      %v4461 = vadd.f32 %v4158, %v4460
      %v4462 = vpop.f32.mrb[0].mxu0
      %v4463 = vadd.f32 %v4160, %v4462
      %4464 = vmatprep.mubr.bf16.mxu0 0
      %4465 = vmatmul.mubr.bf16.gmra.mrb[0].mxu0 %v3409
      %v4466 = vpop.f32.mrb[0].mxu0
      %v4467 = vadd.f32 %v4164, %v4466
      %v4468 = vpop.f32.mrb[0].mxu0
      %v4469 = vadd.f32 %v4166, %v4468
      %v4470 = vpop.f32.mrb[0].mxu0
      %v4471 = vadd.f32 %v4168, %v4470
      %v4472 = vpop.f32.mrb[0].mxu0
      %v4473 = vadd.f32 %v4170, %v4472
      %4474 = vmatprep.mubr.bf16.mxu0 0
      %4475 = vmatmul.mubr.bf16.gmra.mrb[0].mxu0 %v3412
      %v4476 = vpop.f32.mrb[0].mxu0
      %v4477 = vadd.f32 %v4174, %v4476
      %v4478 = vpop.f32.mrb[0].mxu0
      %v4479 = vadd.f32 %v4176, %v4478
      %v4480 = vpop.f32.mrb[0].mxu0
      %v4481 = vadd.f32 %v4178, %v4480
      %v4482 = vpop.f32.mrb[0].mxu0
      %v4483 = vadd.f32 %v4180, %v4482
      %4484 = vmatprep.mubr.bf16.mxu0 0
      %4485 = vmatmul.mubr.bf16.gmra.mrb[0].mxu0 %v3415
      %v4486 = vpop.f32.mrb[0].mxu0
      %v4487 = vadd.f32 %v4184, %v4486
      %v4488 = vpop.f32.mrb[0].mxu0
      %v4489 = vadd.f32 %v4186, %v4488
      %v4490 = vpop.f32.mrb[0].mxu0
      %v4491 = vadd.f32 %v4188, %v4490
      %v4492 = vpop.f32.mrb[0].mxu0
      %v4493 = vadd.f32 %v4190, %v4492
      %4494 = vmatprep.mubr.bf16.mxu0 0
      %4495 = vmatmul.mubr.bf16.gmra.mrb[0].mxu0 %v3418
      %v4496 = vpop.f32.mrb[0].mxu0
      %v4497 = vadd.f32 %v4194, %v4496
      %v4498 = vpop.f32.mrb[0].mxu0
      %v4499 = vadd.f32 %v4196, %v4498
      %v4500 = vpop.f32.mrb[0].mxu0
      %v4501 = vadd.f32 %v4198, %v4500
      %v4502 = vpop.f32.mrb[0].mxu0
      %v4503 = vadd.f32 %v4200, %v4502
      %4504 = vdwg.mxu0
      %4505 = vmatprep.subr.bf16.mxu0 0
      %4506 = vmatpush1.bf16.msra.mxu0 %v3757
      %4507 = vmatprep.subr.bf16.mxu0 0
      %4508 = vmatpush1.bf16.msra.mxu0 %v3760
      %4509 = vmatprep.subr.bf16.mxu0 0
      %4510 = vmatpush1.bf16.msra.mxu0 %v3763
      %4511 = vmatprep.subr.bf16.mxu0 0
      %4512 = vmatpush1.bf16.msra.mxu0 %v3766
      %4513 = vmatprep.subr.bf16.mxu0 0
      %4514 = vmatpush1.bf16.msra.mxu0 %v3769
      %4515 = vmatprep.subr.bf16.mxu0 0
      %4516 = vmatpush1.bf16.msra.mxu0 %v3772
      %4517 = vmatprep.subr.bf16.mxu0 0
      %4518 = vmatpush1.bf16.msra.mxu0 %v3775
      %4519 = vmatprep.subr.bf16.mxu0 0
      %4520 = vmatpush1.bf16.msra.mxu0 %v3778
      %4521 = vmatprep.subr.bf16.mxu0 0
      %4522 = vmatpush1.bf16.msra.mxu0 %v3781
      %4523 = vmatprep.subr.bf16.mxu0 0
      %4524 = vmatpush1.bf16.msra.mxu0 %v3784
      %4525 = vmatprep.subr.bf16.mxu0 0
      %4526 = vmatpush1.bf16.msra.mxu0 %v3787
      %4527 = vmatprep.subr.bf16.mxu0 0
      %4528 = vmatpush1.bf16.msra.mxu0 %v3790
      %4529 = vmatprep.subr.bf16.mxu0 0
      %4530 = vmatpush1.bf16.msra.mxu0 %v3793
      %4531 = vmatprep.subr.bf16.mxu0 0
      %4532 = vmatpush1.bf16.msra.mxu0 %v3796
      %4533 = vmatprep.subr.bf16.mxu0 0
      %4534 = vmatpush1.bf16.msra.mxu0 %v3799
      %4535 = vmatprep.subr.bf16.mxu0 0
      %4536 = vmatpush1.bf16.msra.mxu0 %v3802
      %4537 = vmatprep.mubr.bf16.mxu0 %v3339
      %4538 = vmatmul.mubr.bf16.gmra.mrb[0].mxu0 %v3338
      %v4539 = vpop.f32.mrb[0].mxu0
      %v4540 = vadd.f32 0.0, %v4539
      %v4541 = vpop.f32.mrb[0].mxu0
      %v4542 = vpop.f32.mrb[0].mxu0
      %v4543 = vadd.f32 0.0, %v4542
      %v4544 = vpop.f32.mrb[0].mxu0
      %4545 = vmatprep.mubr.bf16.mxu0 %v3342
      %4546 = vmatmul.mubr.bf16.gmra.mrb[0].mxu0 %v3341
      %v4547 = vpop.f32.mrb[0].mxu0
      %v4548 = vadd.f32 0.0, %v4547
      %v4549 = vpop.f32.mrb[0].mxu0
      %v4550 = vpop.f32.mrb[0].mxu0
      %v4551 = vadd.f32 0.0, %v4550
      %v4552 = vpop.f32.mrb[0].mxu0
      %4553 = vmatprep.mubr.bf16.mxu0 %v3345
      %4554 = vmatmul.mubr.bf16.gmra.mrb[0].mxu0 %v3344
      %v4555 = vpop.f32.mrb[0].mxu0
      %v4556 = vadd.f32 0.0, %v4555
      %v4557 = vpop.f32.mrb[0].mxu0
      %v4558 = vpop.f32.mrb[0].mxu0
      %v4559 = vadd.f32 0.0, %v4558
      %v4560 = vpop.f32.mrb[0].mxu0
      %4561 = vmatprep.mubr.bf16.mxu0 %v3348
      %4562 = vmatmul.mubr.bf16.gmra.mrb[0].mxu0 %v3347
      %v4563 = vpop.f32.mrb[0].mxu0
      %v4564 = vadd.f32 0.0, %v4563
      %v4565 = vpop.f32.mrb[0].mxu0
      %v4566 = vpop.f32.mrb[0].mxu0
      %v4567 = vadd.f32 0.0, %v4566
      %v4568 = vpop.f32.mrb[0].mxu0
      %4569 = vmatprep.mubr.bf16.mxu0 %v3351
      %4570 = vmatmul.mubr.bf16.gmra.mrb[0].mxu0 %v3350
      %v4571 = vpop.f32.mrb[0].mxu0
      %v4572 = vadd.f32 0.0, %v4571
      %v4573 = vpop.f32.mrb[0].mxu0
      %v4574 = vpop.f32.mrb[0].mxu0
      %v4575 = vadd.f32 0.0, %v4574
      %v4576 = vpop.f32.mrb[0].mxu0
      %4577 = vmatprep.mubr.bf16.mxu0 %v3354
      %4578 = vmatmul.mubr.bf16.gmra.mrb[0].mxu0 %v3353
      %v4579 = vpop.f32.mrb[0].mxu0
      %v4580 = vadd.f32 0.0, %v4579
      %v4581 = vpop.f32.mrb[0].mxu0
      %v4582 = vpop.f32.mrb[0].mxu0
      %v4583 = vadd.f32 0.0, %v4582
      %v4584 = vpop.f32.mrb[0].mxu0
      %4585 = vmatprep.mubr.bf16.mxu0 %v3357
      %4586 = vmatmul.mubr.bf16.gmra.mrb[0].mxu0 %v3356
      %v4587 = vpop.f32.mrb[0].mxu0
      %v4588 = vadd.f32 0.0, %v4587
      %v4589 = vpop.f32.mrb[0].mxu0
      %v4590 = vpop.f32.mrb[0].mxu0
      %v4591 = vadd.f32 0.0, %v4590
      %v4592 = vpop.f32.mrb[0].mxu0
      %4593 = vmatprep.mubr.bf16.mxu0 %v3360
      %4594 = vmatmul.mubr.bf16.gmra.mrb[0].mxu0 %v3359
      %v4595 = vpop.f32.mrb[0].mxu0
      %v4596 = vadd.f32 0.0, %v4595
      %v4597 = vpop.f32.mrb[0].mxu0
      %v4598 = vpop.f32.mrb[0].mxu0
      %v4599 = vadd.f32 0.0, %v4598
      %v4600 = vpop.f32.mrb[0].mxu0
      %4601 = vmatprep.mubr.bf16.mxu0 %v3363
      %4602 = vmatmul.mubr.bf16.gmra.mrb[0].mxu0 %v3362
      %v4603 = vpop.f32.mrb[0].mxu0
      %v4604 = vadd.f32 0.0, %v4603
      %v4605 = vpop.f32.mrb[0].mxu0
      %v4606 = vpop.f32.mrb[0].mxu0
      %v4607 = vadd.f32 0.0, %v4606
      %v4608 = vpop.f32.mrb[0].mxu0
      %4609 = vmatprep.mubr.bf16.mxu0 %v3366
      %4610 = vmatmul.mubr.bf16.gmra.mrb[0].mxu0 %v3365
      %v4611 = vpop.f32.mrb[0].mxu0
      %v4612 = vadd.f32 0.0, %v4611
      %v4613 = vpop.f32.mrb[0].mxu0
      %v4614 = vpop.f32.mrb[0].mxu0
      %v4615 = vadd.f32 0.0, %v4614
      %v4616 = vpop.f32.mrb[0].mxu0
      %4617 = vmatprep.mubr.bf16.mxu0 %v3369
      %4618 = vmatmul.mubr.bf16.gmra.mrb[0].mxu0 %v3368
      %v4619 = vpop.f32.mrb[0].mxu0
      %v4620 = vadd.f32 0.0, %v4619
      %v4621 = vpop.f32.mrb[0].mxu0
      %v4622 = vpop.f32.mrb[0].mxu0
      %v4623 = vadd.f32 0.0, %v4622
      %v4624 = vpop.f32.mrb[0].mxu0
      %4625 = vmatprep.mubr.bf16.mxu0 %v3372
      %4626 = vmatmul.mubr.bf16.gmra.mrb[0].mxu0 %v3371
      %v4627 = vpop.f32.mrb[0].mxu0
      %v4628 = vadd.f32 0.0, %v4627
      %v4629 = vpop.f32.mrb[0].mxu0
      %v4630 = vpop.f32.mrb[0].mxu0
      %v4631 = vadd.f32 0.0, %v4630
      %v4632 = vpop.f32.mrb[0].mxu0
      %4633 = vmatprep.mubr.bf16.mxu0 %v3375
      %4634 = vmatmul.mubr.bf16.gmra.mrb[0].mxu0 %v3374
      %v4635 = vpop.f32.mrb[0].mxu0
      %v4636 = vadd.f32 0.0, %v4635
      %v4637 = vpop.f32.mrb[0].mxu0
      %v4638 = vpop.f32.mrb[0].mxu0
      %v4639 = vadd.f32 0.0, %v4638
      %v4640 = vpop.f32.mrb[0].mxu0
      %4641 = vmatprep.mubr.bf16.mxu0 %v3378
      %4642 = vmatmul.mubr.bf16.gmra.mrb[0].mxu0 %v3377
      %v4643 = vpop.f32.mrb[0].mxu0
      %v4644 = vadd.f32 0.0, %v4643
      %v4645 = vpop.f32.mrb[0].mxu0
      %v4646 = vpop.f32.mrb[0].mxu0
      %v4647 = vadd.f32 0.0, %v4646
      %v4648 = vpop.f32.mrb[0].mxu0
      %4649 = vmatprep.mubr.bf16.mxu0 %v3381
      %4650 = vmatmul.mubr.bf16.gmra.mrb[0].mxu0 %v3380
      %v4651 = vpop.f32.mrb[0].mxu0
      %v4652 = vadd.f32 0.0, %v4651
      %v4653 = vpop.f32.mrb[0].mxu0
      %v4654 = vpop.f32.mrb[0].mxu0
      %v4655 = vadd.f32 0.0, %v4654
      %v4656 = vpop.f32.mrb[0].mxu0
      %4657 = vmatprep.mubr.bf16.mxu0 %v3384
      %4658 = vmatmul.mubr.bf16.gmra.mrb[0].mxu0 %v3383
      %v4659 = vpop.f32.mrb[0].mxu0
      %v4660 = vadd.f32 0.0, %v4659
      %v4661 = vpop.f32.mrb[0].mxu0
      %v4662 = vpop.f32.mrb[0].mxu0
      %v4663 = vadd.f32 0.0, %v4662
      %v4664 = vpop.f32.mrb[0].mxu0
      %4665 = vmatprep.mubr.bf16.mxu0 %v3387
      %4666 = vmatmul.mubr.bf16.gmra.mrb[0].mxu0 %v3386
      %v4667 = vpop.f32.mrb[0].mxu0
      %v4668 = vadd.f32 0.0, %v4667
      %v4669 = vpop.f32.mrb[0].mxu0
      %v4670 = vpop.f32.mrb[0].mxu0
      %v4671 = vadd.f32 0.0, %v4670
      %v4672 = vpop.f32.mrb[0].mxu0
      %4673 = vmatprep.mubr.bf16.mxu0 %v3390
      %4674 = vmatmul.mubr.bf16.gmra.mrb[0].mxu0 %v3389
      %v4675 = vpop.f32.mrb[0].mxu0
      %v4676 = vadd.f32 0.0, %v4675
      %v4677 = vpop.f32.mrb[0].mxu0
      %v4678 = vpop.f32.mrb[0].mxu0
      %v4679 = vadd.f32 0.0, %v4678
      %v4680 = vpop.f32.mrb[0].mxu0
      %4681 = vmatprep.mubr.bf16.mxu0 %v3393
      %4682 = vmatmul.mubr.bf16.gmra.mrb[0].mxu0 %v3392
      %v4683 = vpop.f32.mrb[0].mxu0
      %v4684 = vadd.f32 0.0, %v4683
      %v4685 = vpop.f32.mrb[0].mxu0
      %v4686 = vpop.f32.mrb[0].mxu0
      %v4687 = vadd.f32 0.0, %v4686
      %v4688 = vpop.f32.mrb[0].mxu0
      %4689 = vmatprep.mubr.bf16.mxu0 %v3396
      %4690 = vmatmul.mubr.bf16.gmra.mrb[0].mxu0 %v3395
      %v4691 = vpop.f32.mrb[0].mxu0
      %v4692 = vadd.f32 0.0, %v4691
      %v4693 = vpop.f32.mrb[0].mxu0
      %v4694 = vpop.f32.mrb[0].mxu0
      %v4695 = vadd.f32 0.0, %v4694
      %v4696 = vpop.f32.mrb[0].mxu0
      %4697 = vmatprep.mubr.bf16.mxu0 %v3399
      %4698 = vmatmul.mubr.bf16.gmra.mrb[0].mxu0 %v3398
      %v4699 = vpop.f32.mrb[0].mxu0
      %v4700 = vadd.f32 0.0, %v4699
      %v4701 = vpop.f32.mrb[0].mxu0
      %v4702 = vpop.f32.mrb[0].mxu0
      %v4703 = vadd.f32 0.0, %v4702
      %v4704 = vpop.f32.mrb[0].mxu0
      %4705 = vmatprep.mubr.bf16.mxu0 %v3402
      %4706 = vmatmul.mubr.bf16.gmra.mrb[0].mxu0 %v3401
      %v4707 = vpop.f32.mrb[0].mxu0
      %v4708 = vadd.f32 0.0, %v4707
      %v4709 = vpop.f32.mrb[0].mxu0
      %v4710 = vpop.f32.mrb[0].mxu0
      %v4711 = vadd.f32 0.0, %v4710
      %v4712 = vpop.f32.mrb[0].mxu0
      %4713 = vmatprep.mubr.bf16.mxu0 %v3405
      %4714 = vmatmul.mubr.bf16.gmra.mrb[0].mxu0 %v3404
      %v4715 = vpop.f32.mrb[0].mxu0
      %v4716 = vadd.f32 0.0, %v4715
      %v4717 = vpop.f32.mrb[0].mxu0
      %v4718 = vpop.f32.mrb[0].mxu0
      %v4719 = vadd.f32 0.0, %v4718
      %v4720 = vpop.f32.mrb[0].mxu0
      %4721 = vmatprep.mubr.bf16.mxu0 %v3408
      %4722 = vmatmul.mubr.bf16.gmra.mrb[0].mxu0 %v3407
      %v4723 = vpop.f32.mrb[0].mxu0
      %v4724 = vadd.f32 0.0, %v4723
      %v4725 = vpop.f32.mrb[0].mxu0
      %v4726 = vpop.f32.mrb[0].mxu0
      %v4727 = vadd.f32 0.0, %v4726
      %v4728 = vpop.f32.mrb[0].mxu0
      %4729 = vmatprep.mubr.bf16.mxu0 %v3411
      %4730 = vmatmul.mubr.bf16.gmra.mrb[0].mxu0 %v3410
      %v4731 = vpop.f32.mrb[0].mxu0
      %v4732 = vadd.f32 0.0, %v4731
      %v4733 = vpop.f32.mrb[0].mxu0
      %v4734 = vpop.f32.mrb[0].mxu0
      %v4735 = vadd.f32 0.0, %v4734
      %v4736 = vpop.f32.mrb[0].mxu0
      %4737 = vmatprep.mubr.bf16.mxu0 %v3414
      %4738 = vmatmul.mubr.bf16.gmra.mrb[0].mxu0 %v3413
      %v4739 = vpop.f32.mrb[0].mxu0
      %v4740 = vadd.f32 0.0, %v4739
      %v4741 = vpop.f32.mrb[0].mxu0
      %v4742 = vpop.f32.mrb[0].mxu0
      %v4743 = vadd.f32 0.0, %v4742
      %v4744 = vpop.f32.mrb[0].mxu0
      %4745 = vmatprep.mubr.bf16.mxu0 %v3417
      %4746 = vmatmul.mubr.bf16.gmra.mrb[0].mxu0 %v3416
      %v4747 = vpop.f32.mrb[0].mxu0
      %v4748 = vadd.f32 0.0, %v4747
      %v4749 = vpop.f32.mrb[0].mxu0
      %v4750 = vpop.f32.mrb[0].mxu0
      %v4751 = vadd.f32 0.0, %v4750
      %v4752 = vpop.f32.mrb[0].mxu0
      %4753 = vdwg.mxu0
      %4754 = vmatprep.subr.bf16.mxu0 0
      %4755 = vmatpush1.bf16.msra.mxu0 %v3805
      %4756 = vmatprep.subr.bf16.mxu0 0
      %4757 = vmatpush1.bf16.msra.mxu0 %v3808
      %4758 = vmatprep.subr.bf16.mxu0 0
      %4759 = vmatpush1.bf16.msra.mxu0 %v3811
      %4760 = vmatprep.subr.bf16.mxu0 0
      %4761 = vmatpush1.bf16.msra.mxu0 %v3814
      %4762 = vmatprep.subr.bf16.mxu0 0
      %4763 = vmatpush1.bf16.msra.mxu0 %v3817
      %4764 = vmatprep.subr.bf16.mxu0 0
      %4765 = vmatpush1.bf16.msra.mxu0 %v3820
      %4766 = vmatprep.subr.bf16.mxu0 0
      %4767 = vmatpush1.bf16.msra.mxu0 %v3823
      %4768 = vmatprep.subr.bf16.mxu0 0
      %4769 = vmatpush1.bf16.msra.mxu0 %v3826
      %4770 = vmatprep.subr.bf16.mxu0 0
      %4771 = vmatpush1.bf16.msra.mxu0 0
      %4772 = vmatprep.subr.bf16.mxu0 0
      %4773 = vmatpush1.bf16.msra.mxu0 0
      %4774 = vmatprep.subr.bf16.mxu0 0
      %4775 = vmatpush1.bf16.msra.mxu0 0
      %4776 = vmatprep.subr.bf16.mxu0 0
      %4777 = vmatpush1.bf16.msra.mxu0 0
      %4778 = vmatprep.subr.bf16.mxu0 0
      %4779 = vmatpush1.bf16.msra.mxu0 0
      %4780 = vmatprep.subr.bf16.mxu0 0
      %4781 = vmatpush1.bf16.msra.mxu0 0
      %4782 = vmatprep.subr.bf16.mxu0 0
      %4783 = vmatpush1.bf16.msra.mxu0 0
      %4784 = vmatprep.subr.bf16.mxu0 0
      %4785 = vmatpush1.bf16.msra.mxu0 0
      %4786 = vmatprep.mubr.bf16.mxu0 0
      %4787 = vmatmul.mubr.bf16.gmra.mrb[0].mxu0 %v3340
      %v4788 = vpop.f32.mrb[0].mxu0
      %v4789 = vadd.f32 %v4540, %v4788
      %v4790 = vpop.f32.mrb[0].mxu0
      %v4791 = vpop.f32.mrb[0].mxu0
      %v4792 = vadd.f32 %v4543, %v4791
      %v4793 = vpop.f32.mrb[0].mxu0
      %4794 = vmatprep.mubr.bf16.mxu0 0
      %4795 = vmatmul.mubr.bf16.gmra.mrb[0].mxu0 %v3343
      %v4796 = vpop.f32.mrb[0].mxu0
      %v4797 = vadd.f32 %v4548, %v4796
      %v4798 = vpop.f32.mrb[0].mxu0
      %v4799 = vpop.f32.mrb[0].mxu0
      %v4800 = vadd.f32 %v4551, %v4799
      %v4801 = vpop.f32.mrb[0].mxu0
      %4802 = vmatprep.mubr.bf16.mxu0 0
      %4803 = vmatmul.mubr.bf16.gmra.mrb[0].mxu0 %v3346
      %v4804 = vpop.f32.mrb[0].mxu0
      %v4805 = vadd.f32 %v4556, %v4804
      %v4806 = vpop.f32.mrb[0].mxu0
      %v4807 = vpop.f32.mrb[0].mxu0
      %v4808 = vadd.f32 %v4559, %v4807
      %v4809 = vpop.f32.mrb[0].mxu0
      %4810 = vmatprep.mubr.bf16.mxu0 0
      %4811 = vmatmul.mubr.bf16.gmra.mrb[0].mxu0 %v3349
      %v4812 = vpop.f32.mrb[0].mxu0
      %v4813 = vadd.f32 %v4564, %v4812
      %v4814 = vpop.f32.mrb[0].mxu0
      %v4815 = vpop.f32.mrb[0].mxu0
      %v4816 = vadd.f32 %v4567, %v4815
      %v4817 = vpop.f32.mrb[0].mxu0
      %4818 = vmatprep.mubr.bf16.mxu0 0
      %4819 = vmatmul.mubr.bf16.gmra.mrb[0].mxu0 %v3352
      %v4820 = vpop.f32.mrb[0].mxu0
      %v4821 = vadd.f32 %v4572, %v4820
      %v4822 = vpop.f32.mrb[0].mxu0
      %v4823 = vpop.f32.mrb[0].mxu0
      %v4824 = vadd.f32 %v4575, %v4823
      %v4825 = vpop.f32.mrb[0].mxu0
      %4826 = vmatprep.mubr.bf16.mxu0 0
      %4827 = vmatmul.mubr.bf16.gmra.mrb[0].mxu0 %v3355
      %v4828 = vpop.f32.mrb[0].mxu0
      %v4829 = vadd.f32 %v4580, %v4828
      %v4830 = vpop.f32.mrb[0].mxu0
      %v4831 = vpop.f32.mrb[0].mxu0
      %v4832 = vadd.f32 %v4583, %v4831
      %v4833 = vpop.f32.mrb[0].mxu0
      %4834 = vmatprep.mubr.bf16.mxu0 0
      %4835 = vmatmul.mubr.bf16.gmra.mrb[0].mxu0 %v3358
      %v4836 = vpop.f32.mrb[0].mxu0
      %v4837 = vadd.f32 %v4588, %v4836
      %v4838 = vpop.f32.mrb[0].mxu0
      %v4839 = vpop.f32.mrb[0].mxu0
      %v4840 = vadd.f32 %v4591, %v4839
      %v4841 = vpop.f32.mrb[0].mxu0
      %4842 = vmatprep.mubr.bf16.mxu0 0
      %4843 = vmatmul.mubr.bf16.gmra.mrb[0].mxu0 %v3361
      %v4844 = vpop.f32.mrb[0].mxu0
      %v4845 = vadd.f32 %v4596, %v4844
      %v4846 = vpop.f32.mrb[0].mxu0
      %v4847 = vpop.f32.mrb[0].mxu0
      %v4848 = vadd.f32 %v4599, %v4847
      %v4849 = vpop.f32.mrb[0].mxu0
      %4850 = vmatprep.mubr.bf16.mxu0 0
      %4851 = vmatmul.mubr.bf16.gmra.mrb[0].mxu0 %v3364
      %v4852 = vpop.f32.mrb[0].mxu0
      %v4853 = vadd.f32 %v4604, %v4852
      %v4854 = vpop.f32.mrb[0].mxu0
      %v4855 = vpop.f32.mrb[0].mxu0
      %v4856 = vadd.f32 %v4607, %v4855
      %v4857 = vpop.f32.mrb[0].mxu0
      %4858 = vmatprep.mubr.bf16.mxu0 0
      %4859 = vmatmul.mubr.bf16.gmra.mrb[0].mxu0 %v3367
      %v4860 = vpop.f32.mrb[0].mxu0
      %v4861 = vadd.f32 %v4612, %v4860
      %v4862 = vpop.f32.mrb[0].mxu0
      %v4863 = vpop.f32.mrb[0].mxu0
      %v4864 = vadd.f32 %v4615, %v4863
      %v4865 = vpop.f32.mrb[0].mxu0
      %4866 = vmatprep.mubr.bf16.mxu0 0
      %4867 = vmatmul.mubr.bf16.gmra.mrb[0].mxu0 %v3370
      %v4868 = vpop.f32.mrb[0].mxu0
      %v4869 = vadd.f32 %v4620, %v4868
      %v4870 = vpop.f32.mrb[0].mxu0
      %v4871 = vpop.f32.mrb[0].mxu0
      %v4872 = vadd.f32 %v4623, %v4871
      %v4873 = vpop.f32.mrb[0].mxu0
      %4874 = vmatprep.mubr.bf16.mxu0 0
      %4875 = vmatmul.mubr.bf16.gmra.mrb[0].mxu0 %v3373
      %v4876 = vpop.f32.mrb[0].mxu0
      %v4877 = vadd.f32 %v4628, %v4876
      %v4878 = vpop.f32.mrb[0].mxu0
      %v4879 = vpop.f32.mrb[0].mxu0
      %v4880 = vadd.f32 %v4631, %v4879
      %v4881 = vpop.f32.mrb[0].mxu0
      %4882 = vmatprep.mubr.bf16.mxu0 0
      %4883 = vmatmul.mubr.bf16.gmra.mrb[0].mxu0 %v3376
      %v4884 = vpop.f32.mrb[0].mxu0
      %v4885 = vadd.f32 %v4636, %v4884
      %v4886 = vpop.f32.mrb[0].mxu0
      %v4887 = vpop.f32.mrb[0].mxu0
      %v4888 = vadd.f32 %v4639, %v4887
      %v4889 = vpop.f32.mrb[0].mxu0
      %4890 = vmatprep.mubr.bf16.mxu0 0
      %4891 = vmatmul.mubr.bf16.gmra.mrb[0].mxu0 %v3379
      %v4892 = vpop.f32.mrb[0].mxu0
      %v4893 = vadd.f32 %v4644, %v4892
      %v4894 = vpop.f32.mrb[0].mxu0
      %v4895 = vpop.f32.mrb[0].mxu0
      %v4896 = vadd.f32 %v4647, %v4895
      %v4897 = vpop.f32.mrb[0].mxu0
      %4898 = vmatprep.mubr.bf16.mxu0 0
      %4899 = vmatmul.mubr.bf16.gmra.mrb[0].mxu0 %v3382
      %v4900 = vpop.f32.mrb[0].mxu0
      %v4901 = vadd.f32 %v4652, %v4900
      %v4902 = vpop.f32.mrb[0].mxu0
      %v4903 = vpop.f32.mrb[0].mxu0
      %v4904 = vadd.f32 %v4655, %v4903
      %v4905 = vpop.f32.mrb[0].mxu0
      %4906 = vmatprep.mubr.bf16.mxu0 0
      %4907 = vmatmul.mubr.bf16.gmra.mrb[0].mxu0 %v3385
      %v4908 = vpop.f32.mrb[0].mxu0
      %v4909 = vadd.f32 %v4660, %v4908
      %v4910 = vpop.f32.mrb[0].mxu0
      %v4911 = vpop.f32.mrb[0].mxu0
      %v4912 = vadd.f32 %v4663, %v4911
      %v4913 = vpop.f32.mrb[0].mxu0
      %4914 = vmatprep.mubr.bf16.mxu0 0
      %4915 = vmatmul.mubr.bf16.gmra.mrb[0].mxu0 %v3388
      %v4916 = vpop.f32.mrb[0].mxu0
      %v4917 = vadd.f32 %v4668, %v4916
      %v4918 = vpop.f32.mrb[0].mxu0
      %v4919 = vpop.f32.mrb[0].mxu0
      %v4920 = vadd.f32 %v4671, %v4919
      %v4921 = vpop.f32.mrb[0].mxu0
      %4922 = vmatprep.mubr.bf16.mxu0 0
      %4923 = vmatmul.mubr.bf16.gmra.mrb[0].mxu0 %v3391
      %v4924 = vpop.f32.mrb[0].mxu0
      %v4925 = vadd.f32 %v4676, %v4924
      %v4926 = vpop.f32.mrb[0].mxu0
      %v4927 = vpop.f32.mrb[0].mxu0
      %v4928 = vadd.f32 %v4679, %v4927
      %v4929 = vpop.f32.mrb[0].mxu0
      %4930 = vmatprep.mubr.bf16.mxu0 0
      %4931 = vmatmul.mubr.bf16.gmra.mrb[0].mxu0 %v3394
      %v4932 = vpop.f32.mrb[0].mxu0
      %v4933 = vadd.f32 %v4684, %v4932
      %v4934 = vpop.f32.mrb[0].mxu0
      %v4935 = vpop.f32.mrb[0].mxu0
      %v4936 = vadd.f32 %v4687, %v4935
      %v4937 = vpop.f32.mrb[0].mxu0
      %4938 = vmatprep.mubr.bf16.mxu0 0
      %4939 = vmatmul.mubr.bf16.gmra.mrb[0].mxu0 %v3397
      %v4940 = vpop.f32.mrb[0].mxu0
      %v4941 = vadd.f32 %v4692, %v4940
      %v4942 = vpop.f32.mrb[0].mxu0
      %v4943 = vpop.f32.mrb[0].mxu0
      %v4944 = vadd.f32 %v4695, %v4943
      %v4945 = vpop.f32.mrb[0].mxu0
      %4946 = vmatprep.mubr.bf16.mxu0 0
      %4947 = vmatmul.mubr.bf16.gmra.mrb[0].mxu0 %v3400
      %v4948 = vpop.f32.mrb[0].mxu0
      %v4949 = vadd.f32 %v4700, %v4948
      %v4950 = vpop.f32.mrb[0].mxu0
      %v4951 = vpop.f32.mrb[0].mxu0
      %v4952 = vadd.f32 %v4703, %v4951
      %v4953 = vpop.f32.mrb[0].mxu0
      %4954 = vmatprep.mubr.bf16.mxu0 0
      %4955 = vmatmul.mubr.bf16.gmra.mrb[0].mxu0 %v3403
      %v4956 = vpop.f32.mrb[0].mxu0
      %v4957 = vadd.f32 %v4708, %v4956
      %v4958 = vpop.f32.mrb[0].mxu0
      %v4959 = vpop.f32.mrb[0].mxu0
      %v4960 = vadd.f32 %v4711, %v4959
      %v4961 = vpop.f32.mrb[0].mxu0
      %4962 = vmatprep.mubr.bf16.mxu0 0
      %4963 = vmatmul.mubr.bf16.gmra.mrb[0].mxu0 %v3406
      %v4964 = vpop.f32.mrb[0].mxu0
      %v4965 = vadd.f32 %v4716, %v4964
      %v4966 = vpop.f32.mrb[0].mxu0
      %v4967 = vpop.f32.mrb[0].mxu0
      %v4968 = vadd.f32 %v4719, %v4967
      %v4969 = vpop.f32.mrb[0].mxu0
      %4970 = vmatprep.mubr.bf16.mxu0 0
      %4971 = vmatmul.mubr.bf16.gmra.mrb[0].mxu0 %v3409
      %v4972 = vpop.f32.mrb[0].mxu0
      %v4973 = vadd.f32 %v4724, %v4972
      %v4974 = vpop.f32.mrb[0].mxu0
      %v4975 = vpop.f32.mrb[0].mxu0
      %v4976 = vadd.f32 %v4727, %v4975
      %v4977 = vpop.f32.mrb[0].mxu0
      %4978 = vmatprep.mubr.bf16.mxu0 0
      %4979 = vmatmul.mubr.bf16.gmra.mrb[0].mxu0 %v3412
      %v4980 = vpop.f32.mrb[0].mxu0
      %v4981 = vadd.f32 %v4732, %v4980
      %v4982 = vpop.f32.mrb[0].mxu0
      %v4983 = vpop.f32.mrb[0].mxu0
      %v4984 = vadd.f32 %v4735, %v4983
      %v4985 = vpop.f32.mrb[0].mxu0
      %4986 = vmatprep.mubr.bf16.mxu0 0
      %4987 = vmatmul.mubr.bf16.gmra.mrb[0].mxu0 %v3415
      %v4988 = vpop.f32.mrb[0].mxu0
      %v4989 = vadd.f32 %v4740, %v4988
      %v4990 = vpop.f32.mrb[0].mxu0
      %v4991 = vpop.f32.mrb[0].mxu0
      %v4992 = vadd.f32 %v4743, %v4991
      %v4993 = vpop.f32.mrb[0].mxu0
      %4994 = vmatprep.mubr.bf16.mxu0 0
      %4995 = vmatmul.mubr.bf16.gmra.mrb[0].mxu0 %v3418
      %v4996 = vpop.f32.mrb[0].mxu0
      %v4997 = vadd.f32 %v4748, %v4996
      %v4998 = vpop.f32.mrb[0].mxu0
      %v4999 = vpop.f32.mrb[0].mxu0
      %v5000 = vadd.f32 %v4751, %v4999
      %v5001 = vpop.f32.mrb[0].mxu0
      %5002 = vdwg.mxu0
      %5003 = vst [vmem:[#allocation4] sm:$0xff] %v4237
      %5004 = vst [vmem:[#allocation4 + $0x8] sm:$0xff] %v4239
      %5005 = vst [vmem:[#allocation4 + $0x10] sm:$0xff] %v4789
      %5006 = vst [vmem:[#allocation4 + $0x18] sm:$0xff] %v4241
      %5007 = vst [vmem:[#allocation4 + $0x20] sm:$0xff] %v4243
      %5008 = vst [vmem:[#allocation4 + $0x28] sm:$0xff] %v4792
      %5009 = vst [vmem:[#allocation4 + $0x30] sm:$0xff] %v4247
      %5010 = vst [vmem:[#allocation4 + $0x38] sm:$0xff] %v4249
      %5011 = vst [vmem:[#allocation4 + $0x40] sm:$0xff] %v4797
      %5012 = vst [vmem:[#allocation4 + $0x48] sm:$0xff] %v4251
      %5013 = vst [vmem:[#allocation4 + $0x50] sm:$0xff] %v4253
      %5014 = vst [vmem:[#allocation4 + $0x58] sm:$0xff] %v4800
      %5015 = vst [vmem:[#allocation4 + $0x60] sm:$0xff] %v4257
      %5016 = vst [vmem:[#allocation4 + $0x68] sm:$0xff] %v4259
      %5017 = vst [vmem:[#allocation4 + $0x70] sm:$0xff] %v4805
      %5018 = vst [vmem:[#allocation4 + $0x78] sm:$0xff] %v4261
      %5019 = vst [vmem:[#allocation4 + $0x80] sm:$0xff] %v4263
      %5020 = vst [vmem:[#allocation4 + $0x88] sm:$0xff] %v4808
      %5021 = vst [vmem:[#allocation4 + $0x90] sm:$0xff] %v4267
      %5022 = vst [vmem:[#allocation4 + $0x98] sm:$0xff] %v4269
      %5023 = vst [vmem:[#allocation4 + $0xa0] sm:$0xff] %v4813
      %5024 = vst [vmem:[#allocation4 + $0xa8] sm:$0xff] %v4271
      %5025 = vst [vmem:[#allocation4 + $0xb0] sm:$0xff] %v4273
      %5026 = vst [vmem:[#allocation4 + $0xb8] sm:$0xff] %v4816
      %5027 = vst [vmem:[#allocation4 + $0xc0] sm:$0xff] %v4277
      %5028 = vst [vmem:[#allocation4 + $0xc8] sm:$0xff] %v4279
      %5029 = vst [vmem:[#allocation4 + $0xd0] sm:$0xff] %v4821
      %5030 = vst [vmem:[#allocation4 + $0xd8] sm:$0xff] %v4281
      %5031 = vst [vmem:[#allocation4 + $0xe0] sm:$0xff] %v4283
      %5032 = vst [vmem:[#allocation4 + $0xe8] sm:$0xff] %v4824
      %5033 = vst [vmem:[#allocation4 + $0xf0] sm:$0xff] %v4287
      %5034 = vst [vmem:[#allocation4 + $0xf8] sm:$0xff] %v4289
      %5035 = vst [vmem:[#allocation4 + $0x100] sm:$0xff] %v4829
      %5036 = vst [vmem:[#allocation4 + $0x108] sm:$0xff] %v4291
      %5037 = vst [vmem:[#allocation4 + $0x110] sm:$0xff] %v4293
      %5038 = vst [vmem:[#allocation4 + $0x118] sm:$0xff] %v4832
      %5039 = vst [vmem:[#allocation4 + $0x120] sm:$0xff] %v4297
      %5040 = vst [vmem:[#allocation4 + $0x128] sm:$0xff] %v4299
      %5041 = vst [vmem:[#allocation4 + $0x130] sm:$0xff] %v4837
      %5042 = vst [vmem:[#allocation4 + $0x138] sm:$0xff] %v4301
      %5043 = vst [vmem:[#allocation4 + $0x140] sm:$0xff] %v4303
      %5044 = vst [vmem:[#allocation4 + $0x148] sm:$0xff] %v4840
      %5045 = vst [vmem:[#allocation4 + $0x150] sm:$0xff] %v4307
      %5046 = vst [vmem:[#allocation4 + $0x158] sm:$0xff] %v4309
      %5047 = vst [vmem:[#allocation4 + $0x160] sm:$0xff] %v4845
      %5048 = vst [vmem:[#allocation4 + $0x168] sm:$0xff] %v4311
      %5049 = vst [vmem:[#allocation4 + $0x170] sm:$0xff] %v4313
      %5050 = vst [vmem:[#allocation4 + $0x178] sm:$0xff] %v4848
      %5051 = vst [vmem:[#allocation4 + $0x180] sm:$0xff] %v4317
      %5052 = vst [vmem:[#allocation4 + $0x188] sm:$0xff] %v4319
      %5053 = vst [vmem:[#allocation4 + $0x190] sm:$0xff] %v4853
      %5054 = vst [vmem:[#allocation4 + $0x198] sm:$0xff] %v4321
      %5055 = vst [vmem:[#allocation4 + $0x1a0] sm:$0xff] %v4323
      %5056 = vst [vmem:[#allocation4 + $0x1a8] sm:$0xff] %v4856
      %5057 = vst [vmem:[#allocation4 + $0x1b0] sm:$0xff] %v4327
      %5058 = vst [vmem:[#allocation4 + $0x1b8] sm:$0xff] %v4329
      %5059 = vst [vmem:[#allocation4 + $0x1c0] sm:$0xff] %v4861
      %5060 = vst [vmem:[#allocation4 + $0x1c8] sm:$0xff] %v4331
      %5061 = vst [vmem:[#allocation4 + $0x1d0] sm:$0xff] %v4333
      %5062 = vst [vmem:[#allocation4 + $0x1d8] sm:$0xff] %v4864
      %5063 = vst [vmem:[#allocation4 + $0x1e0] sm:$0xff] %v4337
      %5064 = vst [vmem:[#allocation4 + $0x1e8] sm:$0xff] %v4339
      %5065 = vst [vmem:[#allocation4 + $0x1f0] sm:$0xff] %v4869
      %5066 = vst [vmem:[#allocation4 + $0x1f8] sm:$0xff] %v4341
      %5067 = vst [vmem:[#allocation4 + $0x200] sm:$0xff] %v4343
      %5068 = vst [vmem:[#allocation4 + $0x208] sm:$0xff] %v4872
      %5069 = vst [vmem:[#allocation4 + $0x210] sm:$0xff] %v4347
      %5070 = vst [vmem:[#allocation4 + $0x218] sm:$0xff] %v4349
      %5071 = vst [vmem:[#allocation4 + $0x220] sm:$0xff] %v4877
      %5072 = vst [vmem:[#allocation4 + $0x228] sm:$0xff] %v4351
      %5073 = vst [vmem:[#allocation4 + $0x230] sm:$0xff] %v4353
      %5074 = vst [vmem:[#allocation4 + $0x238] sm:$0xff] %v4880
      %5075 = vst [vmem:[#allocation4 + $0x240] sm:$0xff] %v4357
      %5076 = vst [vmem:[#allocation4 + $0x248] sm:$0xff] %v4359
      %5077 = vst [vmem:[#allocation4 + $0x250] sm:$0xff] %v4885
      %5078 = vst [vmem:[#allocation4 + $0x258] sm:$0xff] %v4361
      %5079 = vst [vmem:[#allocation4 + $0x260] sm:$0xff] %v4363
      %5080 = vst [vmem:[#allocation4 + $0x268] sm:$0xff] %v4888
      %5081 = vst [vmem:[#allocation4 + $0x270] sm:$0xff] %v4367
      %5082 = vst [vmem:[#allocation4 + $0x278] sm:$0xff] %v4369
      %5083 = vst [vmem:[#allocation4 + $0x280] sm:$0xff] %v4893
      %5084 = vst [vmem:[#allocation4 + $0x288] sm:$0xff] %v4371
      %5085 = vst [vmem:[#allocation4 + $0x290] sm:$0xff] %v4373
      %5086 = vst [vmem:[#allocation4 + $0x298] sm:$0xff] %v4896
      %5087 = vst [vmem:[#allocation4 + $0x2a0] sm:$0xff] %v4377
      %5088 = vst [vmem:[#allocation4 + $0x2a8] sm:$0xff] %v4379
      %5089 = vst [vmem:[#allocation4 + $0x2b0] sm:$0xff] %v4901
      %5090 = vst [vmem:[#allocation4 + $0x2b8] sm:$0xff] %v4381
      %5091 = vst [vmem:[#allocation4 + $0x2c0] sm:$0xff] %v4383
      %5092 = vst [vmem:[#allocation4 + $0x2c8] sm:$0xff] %v4904
      %5093 = vst [vmem:[#allocation4 + $0x2d0] sm:$0xff] %v4387
      %5094 = vst [vmem:[#allocation4 + $0x2d8] sm:$0xff] %v4389
      %5095 = vst [vmem:[#allocation4 + $0x2e0] sm:$0xff] %v4909
      %5096 = vst [vmem:[#allocation4 + $0x2e8] sm:$0xff] %v4391
      %5097 = vst [vmem:[#allocation4 + $0x2f0] sm:$0xff] %v4393
      %5098 = vst [vmem:[#allocation4 + $0x2f8] sm:$0xff] %v4912
      %5099 = vst [vmem:[#allocation4 + $0x300] sm:$0xff] %v4397
      %5100 = vst [vmem:[#allocation4 + $0x308] sm:$0xff] %v4399
      %5101 = vst [vmem:[#allocation4 + $0x310] sm:$0xff] %v4917
      %5102 = vst [vmem:[#allocation4 + $0x318] sm:$0xff] %v4401
      %5103 = vst [vmem:[#allocation4 + $0x320] sm:$0xff] %v4403
      %5104 = vst [vmem:[#allocation4 + $0x328] sm:$0xff] %v4920
      %5105 = vst [vmem:[#allocation4 + $0x330] sm:$0xff] %v4407
      %5106 = vst [vmem:[#allocation4 + $0x338] sm:$0xff] %v4409
      %5107 = vst [vmem:[#allocation4 + $0x340] sm:$0xff] %v4925
      %5108 = vst [vmem:[#allocation4 + $0x348] sm:$0xff] %v4411
      %5109 = vst [vmem:[#allocation4 + $0x350] sm:$0xff] %v4413
      %5110 = vst [vmem:[#allocation4 + $0x358] sm:$0xff] %v4928
      %5111 = vst [vmem:[#allocation4 + $0x360] sm:$0xff] %v4417
      %5112 = vst [vmem:[#allocation4 + $0x368] sm:$0xff] %v4419
      %5113 = vst [vmem:[#allocation4 + $0x370] sm:$0xff] %v4933
      %5114 = vst [vmem:[#allocation4 + $0x378] sm:$0xff] %v4421
      %5115 = vst [vmem:[#allocation4 + $0x380] sm:$0xff] %v4423
      %5116 = vst [vmem:[#allocation4 + $0x388] sm:$0xff] %v4936
      %5117 = vst [vmem:[#allocation4 + $0x390] sm:$0xff] %v4427
      %5118 = vst [vmem:[#allocation4 + $0x398] sm:$0xff] %v4429
      %5119 = vst [vmem:[#allocation4 + $0x3a0] sm:$0xff] %v4941
      %5120 = vst [vmem:[#allocation4 + $0x3a8] sm:$0xff] %v4431
      %5121 = vst [vmem:[#allocation4 + $0x3b0] sm:$0xff] %v4433
      %5122 = vst [vmem:[#allocation4 + $0x3b8] sm:$0xff] %v4944
      %5123 = vst [vmem:[#allocation4 + $0x3c0] sm:$0xff] %v4437
      %5124 = vst [vmem:[#allocation4 + $0x3c8] sm:$0xff] %v4439
      %5125 = vst [vmem:[#allocation4 + $0x3d0] sm:$0xff] %v4949
      %5126 = vst [vmem:[#allocation4 + $0x3d8] sm:$0xff] %v4441
      %5127 = vst [vmem:[#allocation4 + $0x3e0] sm:$0xff] %v4443
      %5128 = vst [vmem:[#allocation4 + $0x3e8] sm:$0xff] %v4952
      %5129 = vst [vmem:[#allocation4 + $0x3f0] sm:$0xff] %v4447
      %5130 = vst [vmem:[#allocation4 + $0x3f8] sm:$0xff] %v4449
      %5131 = vst [vmem:[#allocation4 + $0x400] sm:$0xff] %v4957
      %5132 = vst [vmem:[#allocation4 + $0x408] sm:$0xff] %v4451
      %5133 = vst [vmem:[#allocation4 + $0x410] sm:$0xff] %v4453
      %5134 = vst [vmem:[#allocation4 + $0x418] sm:$0xff] %v4960
      %5135 = vst [vmem:[#allocation4 + $0x420] sm:$0xff] %v4457
      %5136 = vst [vmem:[#allocation4 + $0x428] sm:$0xff] %v4459
      %5137 = vst [vmem:[#allocation4 + $0x430] sm:$0xff] %v4965
      %5138 = vst [vmem:[#allocation4 + $0x438] sm:$0xff] %v4461
      %5139 = vst [vmem:[#allocation4 + $0x440] sm:$0xff] %v4463
      %5140 = vst [vmem:[#allocation4 + $0x448] sm:$0xff] %v4968
      %5141 = vst [vmem:[#allocation4 + $0x450] sm:$0xff] %v4467
      %5142 = vst [vmem:[#allocation4 + $0x458] sm:$0xff] %v4469
      %5143 = vst [vmem:[#allocation4 + $0x460] sm:$0xff] %v4973
      %5144 = vst [vmem:[#allocation4 + $0x468] sm:$0xff] %v4471
      %5145 = vst [vmem:[#allocation4 + $0x470] sm:$0xff] %v4473
      %5146 = vst [vmem:[#allocation4 + $0x478] sm:$0xff] %v4976
      %5147 = vst [vmem:[#allocation4 + $0x480] sm:$0xff] %v4477
      %5148 = vst [vmem:[#allocation4 + $0x488] sm:$0xff] %v4479
      %5149 = vst [vmem:[#allocation4 + $0x490] sm:$0xff] %v4981
      %5150 = vst [vmem:[#allocation4 + $0x498] sm:$0xff] %v4481
      %5151 = vst [vmem:[#allocation4 + $0x4a0] sm:$0xff] %v4483
      %5152 = vst [vmem:[#allocation4 + $0x4a8] sm:$0xff] %v4984
      %5153 = vst [vmem:[#allocation4 + $0x4b0] sm:$0xff] %v4487
      %5154 = vst [vmem:[#allocation4 + $0x4b8] sm:$0xff] %v4489
      %5155 = vst [vmem:[#allocation4 + $0x4c0] sm:$0xff] %v4989
      %5156 = vst [vmem:[#allocation4 + $0x4c8] sm:$0xff] %v4491
      %5157 = vst [vmem:[#allocation4 + $0x4d0] sm:$0xff] %v4493
      %5158 = vst [vmem:[#allocation4 + $0x4d8] sm:$0xff] %v4992
      %5159 = vst [vmem:[#allocation4 + $0x4e0] sm:$0xff] %v4497
      %5160 = vst [vmem:[#allocation4 + $0x4e8] sm:$0xff] %v4499
      %5161 = vst [vmem:[#allocation4 + $0x4f0] sm:$0xff] %v4997
      %5162 = vst [vmem:[#allocation4 + $0x4f8] sm:$0xff] %v4501
      %5163 = vst [vmem:[#allocation4 + $0x500] sm:$0xff] %v4503
      %5164 = vst [vmem:[#allocation4 + $0x508] sm:$0xff] %v5000
      %v5165 = vld [vmem:[#allocation4] sm:$0xff]
      %v5166 = vld [vmem:[#allocation4 + $0x18] sm:$0xff]
      %v5167 = vld [vmem:[#allocation4 + $0x30] sm:$0xff]
      %v5168 = vld [vmem:[#allocation4 + $0x48] sm:$0xff]
      %v5169 = vld [vmem:[#allocation4 + $0x60] sm:$0xff]
      %v5170 = vld [vmem:[#allocation4 + $0x78] sm:$0xff]
      %v5171 = vld [vmem:[#allocation4 + $0x90] sm:$0xff]
      %v5172 = vld [vmem:[#allocation4 + $0xa8] sm:$0xff]
      %v5173 = vld [vmem:[#allocation4 + $0xc0] sm:$0xff]
      %v5174 = vld [vmem:[#allocation4 + $0xd8] sm:$0xff]
      %v5175 = vld [vmem:[#allocation4 + $0xf0] sm:$0xff]
      %v5176 = vld [vmem:[#allocation4 + $0x108] sm:$0xff]
      %v5177 = vld [vmem:[#allocation4 + $0x120] sm:$0xff]
      %v5178 = vld [vmem:[#allocation4 + $0x138] sm:$0xff]
      %v5179 = vld [vmem:[#allocation4 + $0x150] sm:$0xff]
      %v5180 = vld [vmem:[#allocation4 + $0x168] sm:$0xff]
      %v5181 = vld [vmem:[#allocation4 + $0x180] sm:$0xff]
      %v5182 = vld [vmem:[#allocation4 + $0x198] sm:$0xff]
      %v5183 = vld [vmem:[#allocation4 + $0x1b0] sm:$0xff]
      %v5184 = vld [vmem:[#allocation4 + $0x1c8] sm:$0xff]
      %v5185 = vld [vmem:[#allocation4 + $0x1e0] sm:$0xff]
      %v5186 = vld [vmem:[#allocation4 + $0x1f8] sm:$0xff]
      %v5187 = vld [vmem:[#allocation4 + $0x210] sm:$0xff]
      %v5188 = vld [vmem:[#allocation4 + $0x228] sm:$0xff]
      %v5189 = vld [vmem:[#allocation4 + $0x240] sm:$0xff]
      %v5190 = vld [vmem:[#allocation4 + $0x258] sm:$0xff]
      %v5191 = vld [vmem:[#allocation4 + $0x270] sm:$0xff]
      %v5192 = vld [vmem:[#allocation4 + $0x288] sm:$0xff]
      %v5193 = vld [vmem:[#allocation4 + $0x2a0] sm:$0xff]
      %v5194 = vld [vmem:[#allocation4 + $0x2b8] sm:$0xff]
      %v5195 = vld [vmem:[#allocation4 + $0x2d0] sm:$0xff]
      %v5196 = vld [vmem:[#allocation4 + $0x2e8] sm:$0xff]
      %v5197 = vld [vmem:[#allocation4 + $0x300] sm:$0xff]
      %v5198 = vld [vmem:[#allocation4 + $0x318] sm:$0xff]
      %v5199 = vld [vmem:[#allocation4 + $0x330] sm:$0xff]
      %v5200 = vld [vmem:[#allocation4 + $0x348] sm:$0xff]
      %v5201 = vld [vmem:[#allocation4 + $0x360] sm:$0xff]
      %v5202 = vld [vmem:[#allocation4 + $0x378] sm:$0xff]
      %v5203 = vld [vmem:[#allocation4 + $0x390] sm:$0xff]
      %v5204 = vld [vmem:[#allocation4 + $0x3a8] sm:$0xff]
      %v5205 = vld [vmem:[#allocation4 + $0x3c0] sm:$0xff]
      %v5206 = vld [vmem:[#allocation4 + $0x3d8] sm:$0xff]
      %v5207 = vld [vmem:[#allocation4 + $0x3f0] sm:$0xff]
      %v5208 = vld [vmem:[#allocation4 + $0x408] sm:$0xff]
      %v5209 = vld [vmem:[#allocation4 + $0x420] sm:$0xff]
      %v5210 = vld [vmem:[#allocation4 + $0x438] sm:$0xff]
      %v5211 = vld [vmem:[#allocation4 + $0x450] sm:$0xff]
      %v5212 = vld [vmem:[#allocation4 + $0x468] sm:$0xff]
      %v5213 = vld [vmem:[#allocation4 + $0x50] sm:$0xff]
      %v5214 = vld [vmem:[#allocation4 + $0x68] sm:$0xff]
      %v5215 = vld [vmem:[#allocation4 + $0x80] sm:$0xff]
      %v5216 = vld [vmem:[#allocation4 + $0x98] sm:$0xff]
      %v5217 = vld [vmem:[#allocation4 + $0xb0] sm:$0xff]
      %v5218 = vld [vmem:[#allocation4 + $0xc8] sm:$0xff]
      %v5219 = vld [vmem:[#allocation4 + $0xe0] sm:$0xff]
      %v5220 = vld [vmem:[#allocation4 + $0xf8] sm:$0xff]
      %v5221 = vld [vmem:[#allocation4 + $0x110] sm:$0xff]
      %v5222 = vld [vmem:[#allocation4 + $0x128] sm:$0xff]
      %v5223 = vld [vmem:[#allocation4 + $0x140] sm:$0xff]
      %v5224 = vld [vmem:[#allocation4 + $0x158] sm:$0xff]
      %v5225 = vld [vmem:[#allocation4 + $0x170] sm:$0xff]
      %v5226 = vld [vmem:[#allocation4 + $0x188] sm:$0xff]
      %v5227 = vld [vmem:[#allocation4 + $0x1a0] sm:$0xff]
      %v5228 = vld [vmem:[#allocation4 + $0x1b8] sm:$0xff]
      %v5229 = vld [vmem:[#allocation4 + $0x1d0] sm:$0xff]
      %v5230 = vld [vmem:[#allocation4 + $0x1e8] sm:$0xff]
      %v5231 = vld [vmem:[#allocation4 + $0x200] sm:$0xff]
      %v5232 = vld [vmem:[#allocation4 + $0x218] sm:$0xff]
      %v5233 = vld [vmem:[#allocation4 + $0x230] sm:$0xff]
      %v5234 = vld [vmem:[#allocation4 + $0x248] sm:$0xff]
      %v5235 = vld [vmem:[#allocation4 + $0x260] sm:$0xff]
      %v5236 = vld [vmem:[#allocation4 + $0x278] sm:$0xff]
      %v5237 = vld [vmem:[#allocation4 + $0x290] sm:$0xff]
      %v5238 = vld [vmem:[#allocation4 + $0x2a8] sm:$0xff]
      %v5239 = vld [vmem:[#allocation4 + $0x2c0] sm:$0xff]
      %v5240 = vld [vmem:[#allocation4 + $0x2d8] sm:$0xff]
      %v5241 = vld [vmem:[#allocation4 + $0x2f0] sm:$0xff]
      %v5242 = vld [vmem:[#allocation4 + $0x308] sm:$0xff]
      %v5243 = vld [vmem:[#allocation4 + $0x320] sm:$0xff]
      %v5244 = vld [vmem:[#allocation4 + $0x338] sm:$0xff]
      %v5245 = vld [vmem:[#allocation4 + $0x350] sm:$0xff]
      %v5246 = vld [vmem:[#allocation4 + $0x368] sm:$0xff]
      %v5247 = vld [vmem:[#allocation4 + $0x380] sm:$0xff]
      %v5248 = vld [vmem:[#allocation4 + $0x398] sm:$0xff]
      %v5249 = vld [vmem:[#allocation4 + $0x3b0] sm:$0xff]
      %v5250 = vld [vmem:[#allocation4 + $0x3c8] sm:$0xff]
      %v5251 = vld [vmem:[#allocation4 + $0x3e0] sm:$0xff]
      %v5252 = vld [vmem:[#allocation4 + $0x3f8] sm:$0xff]
      %v5253 = vld [vmem:[#allocation4 + $0x410] sm:$0xff]
      %v5254 = vld [vmem:[#allocation4 + $0x428] sm:$0xff]
      %v5255 = vld [vmem:[#allocation4 + $0x440] sm:$0xff]
      %v5256 = vld [vmem:[#allocation4 + $0x458] sm:$0xff]
      %v5257 = vld [vmem:[#allocation4 + $0x470] sm:$0xff]
      %v5258 = vld [vmem:[#allocation4 + $0x488] sm:$0xff]
      %v5259 = vld [vmem:[#allocation4 + $0x4a0] sm:$0xff]
      %v5260 = vld [vmem:[#allocation4 + $0x4b8] sm:$0xff]
      %v5261 = vadd.f32 %v5165, %v5213
      %v5262 = vadd.f32 %v5166, %v5214
      %v5263 = vadd.f32 %v5167, %v5215
      %v5264 = vadd.f32 %v5168, %v5216
      %v5265 = vadd.f32 %v5169, %v5217
      %v5266 = vadd.f32 %v5170, %v5218
      %v5267 = vadd.f32 %v5171, %v5219
      %v5268 = vadd.f32 %v5172, %v5220
      %v5269 = vadd.f32 %v5173, %v5221
      %v5270 = vadd.f32 %v5174, %v5222
      %v5271 = vadd.f32 %v5175, %v5223
      %v5272 = vadd.f32 %v5176, %v5224
      %v5273 = vadd.f32 %v5177, %v5225
      %v5274 = vadd.f32 %v5178, %v5226
      %v5275 = vadd.f32 %v5179, %v5227
      %v5276 = vadd.f32 %v5180, %v5228
      %v5277 = vadd.f32 %v5181, %v5229
      %v5278 = vadd.f32 %v5182, %v5230
      %v5279 = vadd.f32 %v5183, %v5231
      %v5280 = vadd.f32 %v5184, %v5232
      %v5281 = vadd.f32 %v5185, %v5233
      %v5282 = vadd.f32 %v5186, %v5234
      %v5283 = vadd.f32 %v5187, %v5235
      %v5284 = vadd.f32 %v5188, %v5236
      %v5285 = vadd.f32 %v5189, %v5237
      %v5286 = vadd.f32 %v5190, %v5238
      %v5287 = vadd.f32 %v5191, %v5239
      %v5288 = vadd.f32 %v5192, %v5240
      %v5289 = vadd.f32 %v5193, %v5241
      %v5290 = vadd.f32 %v5194, %v5242
      %v5291 = vadd.f32 %v5195, %v5243
      %v5292 = vadd.f32 %v5196, %v5244
      %v5293 = vadd.f32 %v5197, %v5245
      %v5294 = vadd.f32 %v5198, %v5246
      %v5295 = vadd.f32 %v5199, %v5247
      %v5296 = vadd.f32 %v5200, %v5248
      %v5297 = vadd.f32 %v5201, %v5249
      %v5298 = vadd.f32 %v5202, %v5250
      %v5299 = vadd.f32 %v5203, %v5251
      %v5300 = vadd.f32 %v5204, %v5252
      %v5301 = vadd.f32 %v5205, %v5253
      %v5302 = vadd.f32 %v5206, %v5254
      %v5303 = vadd.f32 %v5207, %v5255
      %v5304 = vadd.f32 %v5208, %v5256
      %v5305 = vadd.f32 %v5209, %v5257
      %v5306 = vadd.f32 %v5210, %v5258
      %v5307 = vadd.f32 %v5211, %v5259
      %v5308 = vadd.f32 %v5212, %v5260
      %v5309 = vld [vmem:[#allocation4 + $0xa0] sm:$0xff]
      %v5310 = vld [vmem:[#allocation4 + $0xb8] sm:$0xff]
      %v5311 = vld [vmem:[#allocation4 + $0xd0] sm:$0xff]
      %v5312 = vld [vmem:[#allocation4 + $0xe8] sm:$0xff]
      %v5313 = vld [vmem:[#allocation4 + $0x100] sm:$0xff]
      %v5314 = vld [vmem:[#allocation4 + $0x118] sm:$0xff]
      %v5315 = vld [vmem:[#allocation4 + $0x130] sm:$0xff]
      %v5316 = vld [vmem:[#allocation4 + $0x148] sm:$0xff]
      %v5317 = vld [vmem:[#allocation4 + $0x160] sm:$0xff]
      %v5318 = vld [vmem:[#allocation4 + $0x178] sm:$0xff]
      %v5319 = vld [vmem:[#allocation4 + $0x190] sm:$0xff]
      %v5320 = vld [vmem:[#allocation4 + $0x1a8] sm:$0xff]
      %v5321 = vld [vmem:[#allocation4 + $0x1c0] sm:$0xff]
      %v5322 = vld [vmem:[#allocation4 + $0x1d8] sm:$0xff]
      %v5323 = vld [vmem:[#allocation4 + $0x1f0] sm:$0xff]
      %v5324 = vld [vmem:[#allocation4 + $0x208] sm:$0xff]
      %v5325 = vld [vmem:[#allocation4 + $0x220] sm:$0xff]
      %v5326 = vld [vmem:[#allocation4 + $0x238] sm:$0xff]
      %v5327 = vld [vmem:[#allocation4 + $0x250] sm:$0xff]
      %v5328 = vld [vmem:[#allocation4 + $0x268] sm:$0xff]
      %v5329 = vld [vmem:[#allocation4 + $0x280] sm:$0xff]
      %v5330 = vld [vmem:[#allocation4 + $0x298] sm:$0xff]
      %v5331 = vld [vmem:[#allocation4 + $0x2b0] sm:$0xff]
      %v5332 = vld [vmem:[#allocation4 + $0x2c8] sm:$0xff]
      %v5333 = vld [vmem:[#allocation4 + $0x2e0] sm:$0xff]
      %v5334 = vld [vmem:[#allocation4 + $0x2f8] sm:$0xff]
      %v5335 = vld [vmem:[#allocation4 + $0x310] sm:$0xff]
      %v5336 = vld [vmem:[#allocation4 + $0x328] sm:$0xff]
      %v5337 = vld [vmem:[#allocation4 + $0x340] sm:$0xff]
      %v5338 = vld [vmem:[#allocation4 + $0x358] sm:$0xff]
      %v5339 = vld [vmem:[#allocation4 + $0x370] sm:$0xff]
      %v5340 = vld [vmem:[#allocation4 + $0x388] sm:$0xff]
      %v5341 = vld [vmem:[#allocation4 + $0x3a0] sm:$0xff]
      %v5342 = vld [vmem:[#allocation4 + $0x3b8] sm:$0xff]
      %v5343 = vld [vmem:[#allocation4 + $0x3d0] sm:$0xff]
      %v5344 = vld [vmem:[#allocation4 + $0x3e8] sm:$0xff]
      %v5345 = vld [vmem:[#allocation4 + $0x400] sm:$0xff]
      %v5346 = vld [vmem:[#allocation4 + $0x418] sm:$0xff]
      %v5347 = vld [vmem:[#allocation4 + $0x430] sm:$0xff]
      %v5348 = vld [vmem:[#allocation4 + $0x448] sm:$0xff]
      %v5349 = vld [vmem:[#allocation4 + $0x460] sm:$0xff]
      %v5350 = vld [vmem:[#allocation4 + $0x478] sm:$0xff]
      %v5351 = vld [vmem:[#allocation4 + $0x490] sm:$0xff]
      %v5352 = vld [vmem:[#allocation4 + $0x4a8] sm:$0xff]
      %v5353 = vld [vmem:[#allocation4 + $0x4c0] sm:$0xff]
      %v5354 = vld [vmem:[#allocation4 + $0x4d8] sm:$0xff]
      %v5355 = vld [vmem:[#allocation4 + $0x4f0] sm:$0xff]
      %v5356 = vld [vmem:[#allocation4 + $0x508] sm:$0xff]
      %v5357 = vadd.f32 %v5261, %v5309
      %v5358 = vadd.f32 %v5262, %v5310
      %v5359 = vadd.f32 %v5263, %v5311
      %v5360 = vadd.f32 %v5264, %v5312
      %v5361 = vadd.f32 %v5265, %v5313
      %v5362 = vadd.f32 %v5266, %v5314
      %v5363 = vadd.f32 %v5267, %v5315
      %v5364 = vadd.f32 %v5268, %v5316
      %v5365 = vadd.f32 %v5269, %v5317
      %v5366 = vadd.f32 %v5270, %v5318
      %v5367 = vadd.f32 %v5271, %v5319
      %v5368 = vadd.f32 %v5272, %v5320
      %v5369 = vadd.f32 %v5273, %v5321
      %v5370 = vadd.f32 %v5274, %v5322
      %v5371 = vadd.f32 %v5275, %v5323
      %v5372 = vadd.f32 %v5276, %v5324
      %v5373 = vadd.f32 %v5277, %v5325
      %v5374 = vadd.f32 %v5278, %v5326
      %v5375 = vadd.f32 %v5279, %v5327
      %v5376 = vadd.f32 %v5280, %v5328
      %v5377 = vadd.f32 %v5281, %v5329
      %v5378 = vadd.f32 %v5282, %v5330
      %v5379 = vadd.f32 %v5283, %v5331
      %v5380 = vadd.f32 %v5284, %v5332
      %v5381 = vadd.f32 %v5285, %v5333
      %v5382 = vadd.f32 %v5286, %v5334
      %v5383 = vadd.f32 %v5287, %v5335
      %v5384 = vadd.f32 %v5288, %v5336
      %v5385 = vadd.f32 %v5289, %v5337
      %v5386 = vadd.f32 %v5290, %v5338
      %v5387 = vadd.f32 %v5291, %v5339
      %v5388 = vadd.f32 %v5292, %v5340
      %v5389 = vadd.f32 %v5293, %v5341
      %v5390 = vadd.f32 %v5294, %v5342
      %v5391 = vadd.f32 %v5295, %v5343
      %v5392 = vadd.f32 %v5296, %v5344
      %v5393 = vadd.f32 %v5297, %v5345
      %v5394 = vadd.f32 %v5298, %v5346
      %v5395 = vadd.f32 %v5299, %v5347
      %v5396 = vadd.f32 %v5300, %v5348
      %v5397 = vadd.f32 %v5301, %v5349
      %v5398 = vadd.f32 %v5302, %v5350
      %v5399 = vadd.f32 %v5303, %v5351
      %v5400 = vadd.f32 %v5304, %v5352
      %v5401 = vadd.f32 %v5305, %v5353
      %v5402 = vadd.f32 %v5306, %v5354
      %v5403 = vadd.f32 %v5307, %v5355
      %v5404 = vadd.f32 %v5308, %v5356
      %v5405 = vld [vmem:[%s12] sm:$0x1]
      %v5407 = vlaneseq
      %v5408 = vshrl.u32 %v5407, 7
      %v5409 = vsub.s32 0, %v5408
      %v5410 = vrot.slane %v5405, %v5409
      %v5412 = vadd.f32 %v5357, %v5410
      %v5413 = vadd.f32 %v5358, %v5410
      %v5414 = vadd.f32 %v5359, %v5410
      %v5415 = vadd.f32 %v5360, %v5410
      %v5416 = vadd.f32 %v5361, %v5410
      %v5417 = vadd.f32 %v5362, %v5410
      %v5418 = vadd.f32 %v5363, %v5410
      %v5419 = vadd.f32 %v5364, %v5410
      %v5420 = vadd.f32 %v5365, %v5410
      %v5421 = vadd.f32 %v5366, %v5410
      %v5422 = vadd.f32 %v5367, %v5410
      %v5423 = vadd.f32 %v5368, %v5410
      %v5424 = vadd.f32 %v5369, %v5410
      %v5425 = vadd.f32 %v5370, %v5410
      %v5426 = vadd.f32 %v5371, %v5410
      %v5427 = vadd.f32 %v5372, %v5410
      %v5428 = vadd.f32 %v5373, %v5410
      %v5429 = vadd.f32 %v5374, %v5410
      %v5430 = vadd.f32 %v5375, %v5410
      %v5431 = vadd.f32 %v5376, %v5410
      %v5432 = vadd.f32 %v5377, %v5410
      %v5433 = vadd.f32 %v5378, %v5410
      %v5434 = vadd.f32 %v5379, %v5410
      %v5435 = vadd.f32 %v5380, %v5410
      %v5436 = vadd.f32 %v5381, %v5410
      %v5437 = vadd.f32 %v5382, %v5410
      %v5438 = vadd.f32 %v5383, %v5410
      %v5439 = vadd.f32 %v5384, %v5410
      %v5440 = vadd.f32 %v5385, %v5410
      %v5441 = vadd.f32 %v5386, %v5410
      %v5442 = vadd.f32 %v5387, %v5410
      %v5443 = vadd.f32 %v5388, %v5410
      %v5444 = vadd.f32 %v5389, %v5410
      %v5445 = vadd.f32 %v5390, %v5410
      %v5446 = vadd.f32 %v5391, %v5410
      %v5447 = vadd.f32 %v5392, %v5410
      %v5448 = vadd.f32 %v5393, %v5410
      %v5449 = vadd.f32 %v5394, %v5410
      %v5450 = vadd.f32 %v5395, %v5410
      %v5451 = vadd.f32 %v5396, %v5410
      %v5452 = vadd.f32 %v5397, %v5410
      %v5453 = vadd.f32 %v5398, %v5410
      %v5454 = vadd.f32 %v5399, %v5410
      %v5455 = vadd.f32 %v5400, %v5410
      %v5456 = vadd.f32 %v5401, %v5410
      %v5457 = vadd.f32 %v5402, %v5410
      %v5458 = vadd.f32 %v5403, %v5410
      %v5459 = vadd.f32 %v5404, %v5410
      %v5460 = vmax.f32 %v5412, 0.0
      %v5461 = vmax.f32 %v5413, 0.0
      %v5462 = vmax.f32 %v5414, 0.0
      %v5463 = vmax.f32 %v5415, 0.0
      %v5464 = vmax.f32 %v5416, 0.0
      %v5465 = vmax.f32 %v5417, 0.0
      %v5466 = vmax.f32 %v5418, 0.0
      %v5467 = vmax.f32 %v5419, 0.0
      %v5468 = vmax.f32 %v5420, 0.0
      %v5469 = vmax.f32 %v5421, 0.0
      %v5470 = vmax.f32 %v5422, 0.0
      %v5471 = vmax.f32 %v5423, 0.0
      %v5472 = vmax.f32 %v5424, 0.0
      %v5473 = vmax.f32 %v5425, 0.0
      %v5474 = vmax.f32 %v5426, 0.0
      %v5475 = vmax.f32 %v5427, 0.0
      %v5476 = vmax.f32 %v5428, 0.0
      %v5477 = vmax.f32 %v5429, 0.0
      %v5478 = vmax.f32 %v5430, 0.0
      %v5479 = vmax.f32 %v5431, 0.0
      %v5480 = vmax.f32 %v5432, 0.0
      %v5481 = vmax.f32 %v5433, 0.0
      %v5482 = vmax.f32 %v5434, 0.0
      %v5483 = vmax.f32 %v5435, 0.0
      %v5484 = vmax.f32 %v5436, 0.0
      %v5485 = vmax.f32 %v5437, 0.0
      %v5486 = vmax.f32 %v5438, 0.0
      %v5487 = vmax.f32 %v5439, 0.0
      %v5488 = vmax.f32 %v5440, 0.0
      %v5489 = vmax.f32 %v5441, 0.0
      %v5490 = vmax.f32 %v5442, 0.0
      %v5491 = vmax.f32 %v5443, 0.0
      %v5492 = vmax.f32 %v5444, 0.0
      %v5493 = vmax.f32 %v5445, 0.0
      %v5494 = vmax.f32 %v5446, 0.0
      %v5495 = vmax.f32 %v5447, 0.0
      %v5496 = vmax.f32 %v5448, 0.0
      %v5497 = vmax.f32 %v5449, 0.0
      %v5498 = vmax.f32 %v5450, 0.0
      %v5499 = vmax.f32 %v5451, 0.0
      %v5500 = vmax.f32 %v5452, 0.0
      %v5501 = vmax.f32 %v5453, 0.0
      %v5502 = vmax.f32 %v5454, 0.0
      %v5503 = vmax.f32 %v5455, 0.0
      %v5504 = vmax.f32 %v5456, 0.0
      %v5505 = vmax.f32 %v5457, 0.0
      %v5506 = vmax.f32 %v5458, 0.0
      %v5507 = vmax.f32 %v5459, 0.0
      %v5508 = vmin.f32 %v5460, 6.0
      %v5509 = vmin.f32 %v5461, 6.0
      %v5510 = vmin.f32 %v5462, 6.0
      %v5511 = vmin.f32 %v5463, 6.0
      %v5512 = vmin.f32 %v5464, 6.0
      %v5513 = vmin.f32 %v5465, 6.0
      %v5514 = vmin.f32 %v5466, 6.0
      %v5515 = vmin.f32 %v5467, 6.0
      %v5516 = vmin.f32 %v5468, 6.0
      %v5517 = vmin.f32 %v5469, 6.0
      %v5518 = vmin.f32 %v5470, 6.0
      %v5519 = vmin.f32 %v5471, 6.0
      %v5520 = vmin.f32 %v5472, 6.0
      %v5521 = vmin.f32 %v5473, 6.0
      %v5522 = vmin.f32 %v5474, 6.0
      %v5523 = vmin.f32 %v5475, 6.0
      %v5524 = vmin.f32 %v5476, 6.0
      %v5525 = vmin.f32 %v5477, 6.0
      %v5526 = vmin.f32 %v5478, 6.0
      %v5527 = vmin.f32 %v5479, 6.0
      %v5528 = vmin.f32 %v5480, 6.0
      %v5529 = vmin.f32 %v5481, 6.0
      %v5530 = vmin.f32 %v5482, 6.0
      %v5531 = vmin.f32 %v5483, 6.0
      %v5532 = vmin.f32 %v5484, 6.0
      %v5533 = vmin.f32 %v5485, 6.0
      %v5534 = vmin.f32 %v5486, 6.0
      %v5535 = vmin.f32 %v5487, 6.0
      %v5536 = vmin.f32 %v5488, 6.0
      %v5537 = vmin.f32 %v5489, 6.0
      %v5538 = vmin.f32 %v5490, 6.0
      %v5539 = vmin.f32 %v5491, 6.0
      %v5540 = vmin.f32 %v5492, 6.0
      %v5541 = vmin.f32 %v5493, 6.0
      %v5542 = vmin.f32 %v5494, 6.0
      %v5543 = vmin.f32 %v5495, 6.0
      %v5544 = vmin.f32 %v5496, 6.0
      %v5545 = vmin.f32 %v5497, 6.0
      %v5546 = vmin.f32 %v5498, 6.0
      %v5547 = vmin.f32 %v5499, 6.0
      %v5548 = vmin.f32 %v5500, 6.0
      %v5549 = vmin.f32 %v5501, 6.0
      %v5550 = vmin.f32 %v5502, 6.0
      %v5551 = vmin.f32 %v5503, 6.0
      %v5552 = vmin.f32 %v5504, 6.0
      %v5553 = vmin.f32 %v5505, 6.0
      %v5554 = vmin.f32 %v5506, 6.0
      %v5555 = vmin.f32 %v5507, 6.0
      %v5556 = vpack.c.bf16 %v5509, %v5508
      %v5557 = vpack.c.bf16 %v5511, %v5510
      %v5558 = vpack.c.bf16 %v5513, %v5512
      %v5559 = vpack.c.bf16 %v5515, %v5514
      %v5560 = vpack.c.bf16 %v5517, %v5516
      %v5561 = vpack.c.bf16 %v5519, %v5518
      %v5562 = vpack.c.bf16 %v5521, %v5520
      %v5563 = vpack.c.bf16 %v5523, %v5522
      %v5564 = vpack.c.bf16 %v5525, %v5524
      %v5565 = vpack.c.bf16 %v5527, %v5526
      %v5566 = vpack.c.bf16 %v5529, %v5528
      %v5567 = vpack.c.bf16 %v5531, %v5530
      %v5568 = vpack.c.bf16 %v5533, %v5532
      %v5569 = vpack.c.bf16 %v5535, %v5534
      %v5570 = vpack.c.bf16 %v5537, %v5536
      %v5571 = vpack.c.bf16 %v5539, %v5538
      %v5572 = vpack.c.bf16 %v5541, %v5540
      %v5573 = vpack.c.bf16 %v5543, %v5542
      %v5574 = vpack.c.bf16 %v5545, %v5544
      %v5575 = vpack.c.bf16 %v5547, %v5546
      %v5576 = vpack.c.bf16 %v5549, %v5548
      %v5577 = vpack.c.bf16 %v5551, %v5550
      %v5578 = vpack.c.bf16 %v5553, %v5552
      %v5579 = vpack.c.bf16 %v5555, %v5554
      %v5604 = vunpack.c.l.b16 %v5556
      %v5605 = vunpack.c.h.b16 %v5556
      %v5606 = vunpack.c.l.b16 %v5557
      %v5607 = vunpack.c.h.b16 %v5557
      %v5608 = vunpack.c.l.b16 %v5558
      %v5609 = vunpack.c.h.b16 %v5558
      %v5610 = vunpack.c.l.b16 %v5559
      %v5611 = vunpack.c.h.b16 %v5559
      %v5612 = vunpack.c.l.b16 %v5560
      %v5613 = vunpack.c.h.b16 %v5560
      %v5614 = vunpack.c.l.b16 %v5561
      %v5615 = vunpack.c.h.b16 %v5561
      %v5616 = vunpack.c.l.b16 %v5562
      %v5617 = vunpack.c.h.b16 %v5562
      %v5618 = vunpack.c.l.b16 %v5563
      %v5619 = vunpack.c.h.b16 %v5563
      %v5620 = vunpack.c.l.b16 %v5564
      %v5621 = vunpack.c.h.b16 %v5564
      %v5622 = vunpack.c.l.b16 %v5565
      %v5623 = vunpack.c.h.b16 %v5565
      %v5624 = vunpack.c.l.b16 %v5566
      %v5625 = vunpack.c.h.b16 %v5566
      %v5626 = vunpack.c.l.b16 %v5567
      %v5627 = vunpack.c.h.b16 %v5567
      %v5628 = vunpack.c.l.b16 %v5568
      %v5629 = vunpack.c.h.b16 %v5568
      %v5630 = vunpack.c.l.b16 %v5569
      %v5631 = vunpack.c.h.b16 %v5569
      %v5632 = vunpack.c.l.b16 %v5570
      %v5633 = vunpack.c.h.b16 %v5570
      %v5634 = vunpack.c.l.b16 %v5571
      %v5635 = vunpack.c.h.b16 %v5571
      %v5636 = vunpack.c.l.b16 %v5572
      %v5637 = vunpack.c.h.b16 %v5572
      %v5638 = vunpack.c.l.b16 %v5573
      %v5639 = vunpack.c.h.b16 %v5573
      %v5640 = vunpack.c.l.b16 %v5574
      %v5641 = vunpack.c.h.b16 %v5574
      %v5642 = vunpack.c.l.b16 %v5575
      %v5643 = vunpack.c.h.b16 %v5575
      %v5644 = vunpack.c.l.b16 %v5576
      %v5645 = vunpack.c.h.b16 %v5576
      %v5646 = vunpack.c.l.b16 %v5577
      %v5647 = vunpack.c.h.b16 %v5577
      %v5648 = vunpack.c.l.b16 %v5578
      %v5649 = vunpack.c.h.b16 %v5578
      %v5650 = vunpack.c.l.b16 %v5579
      %v5651 = vunpack.c.h.b16 %v5579
      %v5652 = vpack.c.b16 %v5604, %v5604
      %v5653 = vpack.c.b16 %v5605, %v5605
      %v5654 = vpack.c.b16 %v5606, %v5606
      %v5655 = vpack.c.b16 %v5607, %v5607
      %v5656 = vpack.c.b16 %v5608, %v5608
      %v5657 = vpack.c.b16 %v5609, %v5609
      %v5658 = vpack.c.b16 %v5610, %v5610
      %v5659 = vpack.c.b16 %v5611, %v5611
      %v5660 = vpack.c.b16 %v5612, %v5612
      %v5661 = vpack.c.b16 %v5613, %v5613
      %v5662 = vpack.c.b16 %v5614, %v5614
      %v5663 = vpack.c.b16 %v5615, %v5615
      %v5664 = vpack.c.b16 %v5616, %v5616
      %v5665 = vpack.c.b16 %v5617, %v5617
      %v5666 = vpack.c.b16 %v5618, %v5618
      %v5667 = vpack.c.b16 %v5619, %v5619
      %v5668 = vpack.c.b16 %v5620, %v5620
      %v5669 = vpack.c.b16 %v5621, %v5621
      %v5670 = vpack.c.b16 %v5622, %v5622
      %v5671 = vpack.c.b16 %v5623, %v5623
      %v5672 = vpack.c.b16 %v5624, %v5624
      %v5673 = vpack.c.b16 %v5625, %v5625
      %v5674 = vpack.c.b16 %v5626, %v5626
      %v5675 = vpack.c.b16 %v5627, %v5627
      %v5676 = vpack.c.b16 %v5628, %v5628
      %v5677 = vpack.c.b16 %v5629, %v5629
      %v5678 = vpack.c.b16 %v5630, %v5630
      %v5679 = vpack.c.b16 %v5631, %v5631
      %v5680 = vpack.c.b16 %v5632, %v5632
      %v5681 = vpack.c.b16 %v5633, %v5633
      %v5682 = vpack.c.b16 %v5634, %v5634
      %v5683 = vpack.c.b16 %v5635, %v5635
      %v5684 = vpack.c.b16 %v5636, %v5636
      %v5685 = vpack.c.b16 %v5637, %v5637
      %v5686 = vpack.c.b16 %v5638, %v5638
      %v5687 = vpack.c.b16 %v5639, %v5639
      %v5688 = vpack.c.b16 %v5640, %v5640
      %v5689 = vpack.c.b16 %v5641, %v5641
      %v5690 = vpack.c.b16 %v5642, %v5642
      %v5691 = vpack.c.b16 %v5643, %v5643
      %v5692 = vpack.c.b16 %v5644, %v5644
      %v5693 = vpack.c.b16 %v5645, %v5645
      %v5694 = vpack.c.b16 %v5646, %v5646
      %v5695 = vpack.c.b16 %v5647, %v5647
      %v5696 = vpack.c.b16 %v5648, %v5648
      %v5697 = vpack.c.b16 %v5649, %v5649
      %v5698 = vpack.c.b16 %v5650, %v5650
      %v5699 = vpack.c.b16 %v5651, %v5651
      %5748 = vst [vmem:[%s914] sm:$0xf] %v5652
      %5749 = vst [vmem:[%s914 + $0x4] sm:$0xf] %v5653
      %5750 = vst [vmem:[%s914 + $0x8] sm:$0xf] %v5654
      %5751 = vst [vmem:[%s914 + $0xc] sm:$0xf] %v5655
      %5752 = vst [vmem:[%s914 + $0x10] sm:$0xf] %v5656
      %5753 = vst [vmem:[%s914 + $0x14] sm:$0xf] %v5657
      %5754 = vst [vmem:[%s914 + $0x18] sm:$0xf] %v5658
      %5755 = vst [vmem:[%s914 + $0x1c] sm:$0xf] %v5659
      %5756 = vst [vmem:[%s914 + $0x20] sm:$0xf] %v5660
      %5757 = vst [vmem:[%s914 + $0x24] sm:$0xf] %v5661
      %5758 = vst [vmem:[%s914 + $0x28] sm:$0xf] %v5662
      %5759 = vst [vmem:[%s914 + $0x2c] sm:$0xf] %v5663
      %5760 = vst [vmem:[%s914 + $0x30] sm:$0xf] %v5664
      %5761 = vst [vmem:[%s914 + $0x34] sm:$0xf] %v5665
      %5762 = vst [vmem:[%s914 + $0x38] sm:$0xf] %v5666
      %5763 = vst [vmem:[%s914 + $0x3c] sm:$0xf] %v5667
      %5764 = vst [vmem:[%s914 + $0x40] sm:$0xf] %v5668
      %5765 = vst [vmem:[%s914 + $0x44] sm:$0xf] %v5669
      %5766 = vst [vmem:[%s914 + $0x48] sm:$0xf] %v5670
      %5767 = vst [vmem:[%s914 + $0x4c] sm:$0xf] %v5671
      %5768 = vst [vmem:[%s914 + $0x50] sm:$0xf] %v5672
      %5769 = vst [vmem:[%s914 + $0x54] sm:$0xf] %v5673
      %5770 = vst [vmem:[%s914 + $0x58] sm:$0xf] %v5674
      %5771 = vst [vmem:[%s914 + $0x5c] sm:$0xf] %v5675
      %5772 = vst [vmem:[%s914 + $0x60] sm:$0xf] %v5676
      %5773 = vst [vmem:[%s914 + $0x64] sm:$0xf] %v5677
      %5774 = vst [vmem:[%s914 + $0x68] sm:$0xf] %v5678
      %5775 = vst [vmem:[%s914 + $0x6c] sm:$0xf] %v5679
      %5776 = vst [vmem:[%s914 + $0x70] sm:$0xf] %v5680
      %5777 = vst [vmem:[%s914 + $0x74] sm:$0xf] %v5681
      %5778 = vst [vmem:[%s914 + $0x78] sm:$0xf] %v5682
      %5779 = vst [vmem:[%s914 + $0x7c] sm:$0xf] %v5683
      %5780 = vst [vmem:[%s914 + $0x80] sm:$0xf] %v5684
      %5781 = vst [vmem:[%s914 + $0x84] sm:$0xf] %v5685
      %5782 = vst [vmem:[%s914 + $0x88] sm:$0xf] %v5686
      %5783 = vst [vmem:[%s914 + $0x8c] sm:$0xf] %v5687
      %5784 = vst [vmem:[%s914 + $0x90] sm:$0xf] %v5688
      %5785 = vst [vmem:[%s914 + $0x94] sm:$0xf] %v5689
      %5786 = vst [vmem:[%s914 + $0x98] sm:$0xf] %v5690
      %5787 = vst [vmem:[%s914 + $0x9c] sm:$0xf] %v5691
      %5788 = vst [vmem:[%s914 + $0xa0] sm:$0xf] %v5692
      %5789 = vst [vmem:[%s914 + $0xa4] sm:$0xf] %v5693
      %5790 = vst [vmem:[%s914 + $0xa8] sm:$0xf] %v5694
      %5791 = vst [vmem:[%s914 + $0xac] sm:$0xf] %v5695
      %5792 = vst [vmem:[%s914 + $0xb0] sm:$0xf] %v5696
      %5793 = vst [vmem:[%s914 + $0xb4] sm:$0xf] %v5697
      %5794 = vst [vmem:[%s914 + $0xb8] sm:$0xf] %v5698
      %5795 = vst [vmem:[%s914 + $0xbc] sm:$0xf] %v5699
      %s5796 = smul.u32 48, %s35
      %p5797 = scmp.lt.s32.totalorder %s34, 1
      %s5798 = scalar_select %p5797, %s34, 1
      %p5799 = scmp.lt.s32.totalorder %s5796, 47
      %s5800 = scalar_select %p5799, %s5796, 47
      %s5801 = smul.addr %s5798, 48
      %s5802 = sadd.s32 %s5800, %s5801
      %s5803 = smul.addr %s5802, 4
      %s5804 = scalar_lea.vmem %s13, %s5803
      // Predicated region
      $region85: #{ws_forward.1} parent=67 // pred_check
        %p5805 = pneg %p425
      $region86: #{ws_forward.1} parent=67 // pred_check_branch
        %5807 = sbr.rel (%p5805) target = $region88
      $region87: #{ws_forward.1} parent=67 // pred_region
        %s5808 = smul.u32 48, %s35
      $region88: #{ws_forward.1} parent=67 // pred_fallthru
        _
    $region68: #{ws_forward.1} parent=5 // pred_fallthru
      _
    %p5809 = scmp.le.s32.totalorder 2, %s25
    // Predicated region
    $region89: #{ws_forward.1} parent=5 // pred_check
      %p5810 = pneg %p5809
    $region90: #{ws_forward.1} parent=5 // pred_check_branch
      %5812 = sbr.rel (%p5810) target = $region92
    $region91: #{ws_forward.1} parent=5 // pred_region
      %s5813 = ssub.s32 %s25, 2
      // Predicated region
      $region93: #{ws_forward.1} parent=91 // pred_check
        %p5814 = pneg %p431
      $region94: #{ws_forward.1} parent=91 // pred_check_branch
        %5816 = sbr.rel (%p5814) target = $region96
      $region95: #{ws_forward.1} parent=91 // pred_region
        %s5817 = smul.u32 48, %s37
        %p5818 = scmp.lt.s32.totalorder %s36, 1
        %s5819 = scalar_select %p5818, %s36, 1
        %p5820 = scmp.lt.s32.totalorder %s5817, 47
        %s5821 = scalar_select %p5820, %s5817, 47
        %s5822 = smul.addr %s5819, 48
        %s5823 = sadd.s32 %s5821, %s5822
        %s5824 = smul.addr %s5823, 4
        %s5825 = scalar_lea.vmem %s13, %s5824
      $region96: #{ws_forward.1} parent=91 // pred_fallthru
        _
    $region92: #{ws_forward.1} parent=5 // pred_fallthru
      _
  $region6: #{ws_forward.1} parent=0 // loop_footer
    %s29 = sadd.s32 1, %s25
  $region7: #{ws_forward.1} parent=0 // loop_footer_branch
    %24 = sbr.rel target = $region3
  $region8: #{ws_forward.1} parent=0 // loop_exit
    _

</llo_original>
